<compile_context>
chip_gen: v7x
topology: tpu7x:2x2x1
jax: 0.10.0
libtpu: 0.0.40
codegen_flags: <defaults>
</compile_context>

<pallas_src>
import functools
import math

import jax
import jax.numpy as jnp
from jax import lax
from jax.experimental import pallas as pl
from jax.experimental.pallas import tpu as pltpu

# per-atom feature indices (precomputed in build_inputs)
X, Y, Z, RAD, SQWD, LKC, ILAM, VOL, POLH, ACC, OHDON, NHDON = range(12)
NUM_FEATS = 12

_TWO_PI_32 = 2.0 * math.pi ** 1.5


def _hermite(x, x0, h, inv_h, f0, df0, f1, df1):
    """Cubic hermite between (x0, f0, df0) and (x0+h, f1, df1); 1/h supplied."""
    t = (x - x0) * inv_h
    t2 = t * t
    t3 = t2 * t
    return ((2.0 * t3 - 3.0 * t2 + 1.0) * f0
            + (t3 - 2.0 * t2 + t) * h * df0
            + (-2.0 * t3 + 3.0 * t2) * f1
            + (t3 - t2) * h * df1)


def _hermite_to_zero(x, x0, h, inv_h, f0, df0):
    """Hermite switch to (f1=0, df1=0) at x0+h."""
    t = (x - x0) * inv_h
    t2 = t * t
    t3 = t2 * t
    return (2.0 * t3 - 3.0 * t2 + 1.0) * f0 + (t3 - 2.0 * t2 + t) * h * df0


def ljlk_kernel(it_ref, jt_ref, frow_ref, fcol_ref, bsep_ref, out_ref,
                acc_lj_ref, acc_lk_ref, *,
                lj_hbond_dis, lj_hbond_OH_donor_dis, lj_hbond_hdis):
    # it_ref/jt_ref: (n_tri,) int32 SMEM (scalar prefetch): upper-triangle tile coords
    # frow_ref: (F, T)   fcol_ref: (T, F)   bsep_ref: (T, T) int8
    # out_ref:  (8, 128)  acc_*_ref: (T, T) f32 persistent scratch
    t_idx = pl.program_id(1)

    @pl.when(t_idx == 0)
    def _init():
        acc_lj_ref[...] = jnp.zeros_like(acc_lj_ref)
        acc_lk_ref[...] = jnp.zeros_like(acc_lk_ref)

    def r(f):  # (1, T)  -> atom-j broadcast (lanes)
        return frow_ref[f:f + 1, :]

    def c(f):  # (T, 1)  -> atom-i broadcast (sublanes)
        return fcol_ref[:, f:f + 1]

    # --- pair distances (one rsqrt; all 1/d powers derived) ---
    dx = c(X) - r(X)
    dy = c(Y) - r(Y)
    dz = c(Z) - r(Z)
    d2 = dx * dx + dy * dy + dz * dz
    inv_d = lax.rsqrt(jnp.maximum(d2, 1e-12))
    d = d2 * inv_d
    inv_d2 = inv_d * inv_d
    inv_d3 = inv_d2 * inv_d

    # --- chemical-bond path separation weight (int8 input, integer thresholds) ---
    sep = bsep_ref[...].astype(jnp.int32)
    w = jnp.where(sep >= 5, 1.0, jnp.where(sep == 4, 0.2, 0.0))
    # symmetric-tile weight: diagonal tiles count half, off-diagonal tiles stand in for
    # their (un-enumerated) transpose -> full weight.
    tile_w = jnp.where(it_ref[t_idx] == jt_ref[t_idx], 0.5, 1.0).astype(jnp.float32)
    w = w * tile_w

    # --- hbond-aware lj_sigma (precedence: nh-donor > OH-donor > polar-H > radii sum) ---
    rad_i, rad_j = c(RAD), r(RAD)
    acc_i, acc_j = c(ACC), r(ACC)
    sigma = rad_i + rad_j
    cond_h = (c(POLH) * acc_j + r(POLH) * acc_i) > 0
    cond_oh = (c(OHDON) * acc_j + r(OHDON) * acc_i) > 0
    cond_don = (c(NHDON) * acc_j + r(NHDON) * acc_i) > 0
    sigma = jnp.where(cond_h, lj_hbond_hdis, sigma)
    sigma = jnp.where(cond_oh, lj_hbond_OH_donor_dis, sigma)
    sigma = jnp.where(cond_don, lj_hbond_dis, sigma)
    sigma2 = sigma * sigma
    inv_sigma = pl.reciprocal(sigma, approx=True)

    eps = c(SQWD) * r(SQWD)            # sqrt(wd_i * wd_j), zero for invalid atoms

    # --- LJ ---
    # linear region d < 0.6*sigma: (sigma/dlin)^2 = 1/0.36 is a compile-time constant
    SD2L = 1.0 / 0.36
    SD6L = SD2L * SD2L * SD2L
    SD12L = SD6L * SD6L
    C1 = SD12L - 2.0 * SD6L
    C2 = -20.0 * (SD12L - SD6L)        # = -12/(0.6) * (sd12 - sd6)
    dlin = 0.6 * sigma
    lj_lin = eps * (C1 + C2 * inv_sigma * (d - dlin))

    # 12-6 region
    sd2 = sigma2 * inv_d2
    sd6 = sd2 * sd2 * sd2
    sd12 = sd6 * sd6
    lj_mid = eps * (sd12 - 2.0 * sd6)

    # switch-to-zero region [4.5, 6.0]: share powers between f(4.5) and df(4.5)
    sd2_45 = sigma2 * (1.0 / (4.5 * 4.5))
    sd6_45 = sd2_45 * sd2_45 * sd2_45
    sd12_45 = sd6_45 * sd6_45
    f45 = eps * (sd12_45 - 2.0 * sd6_45)
    df45 = eps * (-12.0 / 4.5) * (sd12_45 - sd6_45)
    lj_far = _hermite_to_zero(d, 4.5, 1.5, 1.0 / 1.5, f45, df45)

    lj = jnp.where(d < dlin, lj_lin,
                   jnp.where(d < 4.5, lj_mid,
                             jnp.where(d < 6.0, lj_far, 0.0)))

    # --- LK isotropic solvation (hydrogen / invalid atoms have vol = coeff = 0) ---
    vol_i, vol_j = c(VOL), r(VOL)
    co_i, co_j = c(LKC), r(LKC)        # dg / (2*pi^1.5*lambda) * heavy
    il_i, il_j = c(ILAM), r(ILAM)      # 1/lambda

    def lk_fdf(dd, idd2, idd3, need_df):
        # shared exp(-x^2) between f and df
        x_i = (dd - rad_i) * il_i
        x_j = (dd - rad_j) * il_j
        g_i = -vol_j * co_i * jnp.exp(-x_i * x_i)
        g_j = -vol_i * co_j * jnp.exp(-x_j * x_j)
        f = (g_i + g_j) * idd2
        if not need_df:
            return f, None
        df = (-2.0 * idd2) * (g_i * x_i * il_i + g_j * x_j * il_j) \
             + (-2.0 * idd3) * (g_i + g_j)
        return f, df

    d_min = 0.89 * sigma
    d_min2 = d_min * d_min
    inv_dmin2 = inv_sigma * inv_sigma * (1.0 / (0.89 * 0.89))
    f_dmin, _ = lk_fdf(d_min, inv_dmin2, None, False)

    cdmin = jnp.sqrt(jnp.maximum(d_min2 - 1.45, 1e-4))
    cdmax2 = d_min2 + 1.05
    inv_cdmax = lax.rsqrt(cdmax2)
    cdmax = cdmax2 * inv_cdmax
    inv_cdmax2 = inv_cdmax * inv_cdmax
    inv_cdmax3 = inv_cdmax2 * inv_cdmax
    f_cmax, df_cmax = lk_fdf(cdmax, inv_cdmax2, inv_cdmax3, True)

    h_near = cdmax - cdmin             # always > ~0.3, safe for approx reciprocal
    inv_h_near = pl.reciprocal(h_near, approx=True)
    lk_near = _hermite(d, cdmin, h_near, inv_h_near, f_dmin, 0.0, f_cmax, df_cmax)

    lk_mid, _ = lk_fdf(d, inv_d2, None, False)

    INV45 = 1.0 / 4.5
    f_45k, df_45k = lk_fdf(4.5, INV45 * INV45, INV45 * INV45 * INV45, True)
    lk_far = _hermite_to_zero(d, 4.5, 1.5, 1.0 / 1.5, f_45k, df_45k)

    lk = jnp.where(d < cdmin, f_dmin,
                   jnp.where(d < cdmax, lk_near,
                             jnp.where(d < 4.5, lk_mid,
                                       jnp.where(d < 6.0, lk_far, 0.0))))

    acc_lj_ref[...] += lj * w
    acc_lk_ref[...] += lk * w

    @pl.when(t_idx == pl.num_programs(1) - 1)
    def _finalize():
        # triangle enumeration with 0.5 on diagonal tiles already equals 0.5 * full sum
        lj_sum = jnp.sum(acc_lj_ref[...])
        lk_sum = jnp.sum(acc_lk_ref[...])
        rowm = lax.broadcasted_iota(jnp.int32, (8, 128), 0)
        colm = lax.broadcasted_iota(jnp.int32, (8, 128), 1)
        out_ref[...] = jnp.where((rowm == 0) & (colm == 0), lj_sum,
                                 jnp.where((rowm == 0) & (colm == 1), lk_sum, 0.0))


def _pick_tile(n, candidates):
    for c in candidates:
        if n % c == 0:
            return c
    return n


def ljlk_pose_scores_pallas(frow, fcol, bsep, global_params, *, tile=None):
    P, F, N = frow.shape
    # default 256x256 pair tiles (comfortably within default scoped VMEM on v5e/v6e/v7x)
    tsz = tile if tile is not None else _pick_tile(N, (256, 128))
    assert N % tsz == 0, "padded atom count must be divisible by the tile size"
    n_tiles = N // tsz

    # upper-triangle tile enumeration (scalar-prefetch lookup tables)
    tri = [(i, j) for i in range(n_tiles) for j in range(i, n_tiles)]
    it_map = jnp.asarray([ij[0] for ij in tri], dtype=jnp.int32)
    jt_map = jnp.asarray([ij[1] for ij in tri], dtype=jnp.int32)
    n_tri = len(tri)

    g = [float(v) for v in global_params[0]]
    kern = functools.partial(ljlk_kernel,
                             lj_hbond_dis=g[0],
                             lj_hbond_OH_donor_dis=g[1],
                             lj_hbond_hdis=g[2])
    out = pl.pallas_call(
        kern,
        out_shape=jax.ShapeDtypeStruct((P, 8, 128), jnp.float32),
        grid_spec=pltpu.PrefetchScalarGridSpec(
            num_scalar_prefetch=2,
            grid=(P, n_tri),
            in_specs=[
                pl.BlockSpec((None, F, tsz), lambda p, t, it, jt: (p, 0, jt[t])),
                pl.BlockSpec((None, tsz, F), lambda p, t, it, jt: (p, it[t], 0)),
                pl.BlockSpec((None, tsz, tsz), lambda p, t, it, jt: (p, it[t], jt[t])),
            ],
            out_specs=pl.BlockSpec((None, 8, 128), lambda p, t, it, jt: (p, 0, 0)),
            scratch_shapes=[pltpu.VMEM((tsz, tsz), jnp.float32),
                            pltpu.VMEM((tsz, tsz), jnp.float32)],
        ),
        compiler_params=pltpu.CompilerParams(
            dimension_semantics=("parallel", "arbitrary")),
    )(it_map, jt_map, frow, fcol, bsep)
    lj = out[:, 0, 0]
    lk = out[:, 0, 1]
    return jnp.stack([lj, lk], axis=0)  # (2, n_poses), same layout as ljlk_pose_scores


# ----------------------------------------------------------------------------------
# JAX glue: flatten block-structured pose data into per-atom features + bond-sep matrix
# ----------------------------------------------------------------------------------
def build_inputs(coords, offsets, block_types, inter_bondsep,
                 bt_n_atoms, bt_atom_types, bt_conn_atoms, bt_n_conn,
                 bt_path_dist, type_params, type_is_hydrogen, *, pad_to=128):
    P, Nmax, _ = coords.shape
    B = block_types.shape[1]
    A = bt_atom_types.shape[1]
    C = bt_conn_atoms.shape[1]

    # pad atom dimension to a lane-dense multiple of 128
    N = ((max(Nmax, pad_to) + pad_to - 1) // pad_to) * pad_to
    coords = coords.astype(jnp.float32)
    if N > Nmax:
        coords = jnp.concatenate(
            [coords, jnp.zeros((P, N - Nmax, 3), jnp.float32)], axis=1)

    bt_safe = jnp.maximum(block_types, 0)
    block_valid = block_types >= 0
    a_idx = jnp.arange(A)
    n_at = bt_n_atoms[bt_safe]                                            # (P, B)
    atom_valid = block_valid[:, :, None] & (a_idx[None, None, :] < n_at[:, :, None])
    gidx = offsets[:, :, None] + a_idx[None, None, :]
    gidx = jnp.where(atom_valid, gidx, N)                                 # OOB -> dropped
    p_ix = jnp.broadcast_to(jnp.arange(P)[:, None, None], (P, B, A))

    atype = jnp.zeros((P, N), jnp.int32).at[p_ix, gidx].set(
        bt_atom_types[bt_safe].astype(jnp.int32), mode="drop")
    atom_block = jnp.zeros((P, N), jnp.int32).at[p_ix, gidx].set(
        jnp.broadcast_to(jnp.arange(B, dtype=jnp.int32)[None, :, None], (P, B, A)),
        mode="drop")
    atom_loc = jnp.zeros((P, N), jnp.int32).at[p_ix, gidx].set(
        jnp.broadcast_to(a_idx.astype(jnp.int32)[None, None, :], (P, B, A)), mode="drop")
    valid = jnp.zeros((P, N), jnp.float32).at[p_ix, gidx].set(
        atom_valid.astype(jnp.float32), mode="drop")

    params = type_params[atype]                                           # (P, N, 9)
    heavy = (1.0 - type_is_hydrogen[atype]) * valid
    rad = jnp.where(valid > 0, params[..., 0], 1.0)
    sqwd = jnp.sqrt(jnp.maximum(params[..., 1], 0.0)) * valid             # sqrt(lj_wdepth)
    lam = jnp.where(valid > 0, params[..., 3], 1.0)
    inv_lam = 1.0 / lam
    lkc = params[..., 2] * inv_lam * (1.0 / _TWO_PI_32) * heavy           # dg/(2pi^1.5 lam)
    vol = params[..., 4] * heavy
    don = params[..., 5] * valid
    hyd = params[..., 6]
    polh = params[..., 7] * valid
    acc_ = params[..., 8] * valid
    ohdon = don * hyd
    nhdon = don * (1.0 - hyd)

    feats = jnp.stack([coords[..., 0], coords[..., 1], coords[..., 2],
                       rad, sqwd, lkc, inv_lam, vol, polh, acc_, ohdon, nhdon],
                      axis=-1).astype(jnp.float32)                        # (P, N, F)

    # per-atom-pair chemical-bond separation (int8)
    bt_of_atom = jnp.take_along_axis(bt_safe, atom_block, axis=1)         # (P, N)
    intra = bt_path_dist[bt_of_atom[:, :, None], atom_loc[:, :, None], atom_loc[:, None, :]]
    same_block = atom_block[:, :, None] == atom_block[:, None, :]

    conn_atoms = bt_conn_atoms[bt_of_atom]                                # (P, N, C)
    d_to_conn = bt_path_dist[bt_of_atom[:, :, None], atom_loc[:, :, None], conn_atoms]
    conn_ok = jnp.arange(C)[None, None, :] < bt_n_conn[bt_of_atom][:, :, None]
    d_to_conn = jnp.where(conn_ok, d_to_conn, 100)                        # (P, N, C)

    # reduce over the CxC connection pairs without materializing (P,N,N,C,C)
    p_r = jnp.arange(P)[:, None, None]
    inter_min = jnp.full((P, N, N), 127, jnp.int32)
    for ci in range(C):
        for cj in range(C):
            ib = inter_bondsep[p_r, atom_block[:, :, None], atom_block[:, None, :], ci, cj]
            total = d_to_conn[:, :, None, ci] + ib + d_to_conn[:, None, :, cj]
            inter_min = jnp.minimum(inter_min, total)

    sep = jnp.where(same_block, intra, inter_min)
    sep = jnp.minimum(sep, 6).astype(jnp.int8)                            # (P, N, N) int8

    frow = jnp.transpose(feats, (0, 2, 1))                                # (P, F, N)
    return frow, feats, sep


if __name__ == "__main__":
    key = jax.random.PRNGKey(0)

    # --- small synthetic pose stack ---
    n_poses, max_n_blocks, n_block_types = 2, 4, 3
    max_n_block_atoms, n_atom_types, max_n_conn = 8, 5, 2
    max_n_pose_atoms = max_n_blocks * max_n_block_atoms                   # 32

    bt_n_atoms = jnp.array([8, 6, 7], dtype=jnp.int32)
    k_at, k_co = jax.random.split(key)
    bt_atom_types = jax.random.randint(k_at, (n_block_types, max_n_block_atoms), 0,
                                       n_atom_types, dtype=jnp.int32)
    type_is_hydrogen = jnp.array([0.0, 0.0, 0.0, 0.0, 1.0], jnp.float32)  # atom type 4 = H

    # chain topology within each block type: path distance = |a - b| capped at 6
    ar = jnp.arange(max_n_block_atoms)
    bt_path_distance = jnp.minimum(jnp.abs(ar[:, None] - ar[None, :]), 6).astype(jnp.int32)
    bt_path_distance = jnp.broadcast_to(
        bt_path_distance, (n_block_types, max_n_block_atoms, max_n_block_atoms))

    bt_n_interblock_bonds = jnp.array([2, 2, 2], dtype=jnp.int32)
    bt_atoms_forming_chemical_bonds = jnp.stack(
        [jnp.zeros(n_block_types, jnp.int32), bt_n_atoms - 1], axis=1)    # (bt, 2)

    pose_stack_block_types = jnp.array([[0, 1, 2, 0], [1, 2, 0, -1]], dtype=jnp.int32)
    pose_stack_block_coord_offset = jnp.array([[0, 8, 14, 21], [0, 6, 13, 21]],
                                              dtype=jnp.int32)

    # inter-block bond separation between connection atoms (adjacent blocks bonded, sep 1)
    ibs = jnp.full((n_poses, max_n_blocks, max_n_blocks, max_n_conn, max_n_conn), 6,
                   jnp.int32)
    for p in range(n_poses):
        nb = 4 if p == 0 else 3
        for b in range(nb - 1):
            ibs = ibs.at[p, b, b + 1, 1, 0].set(1)
            ibs = ibs.at[p, b + 1, b, 0, 1].set(1)
    pose_stack_inter_block_bondsep = ibs
    pose_stack_min_block_bondsep = jnp.min(ibs, axis=(-1, -2))            # unused in fwd math

    # LJLK atom-type params: [lj_radius, lj_wdepth, lk_dgfree, lk_lambda, lk_volume,
    #                         is_donor, is_hydroxyl, is_polarh, is_acceptor]
    ljlk_type_params = jnp.array([
        [1.55, 0.16, -5.0, 3.5, 10.0, 1.0, 0.0, 0.0, 0.0],
        [1.70, 0.12,  1.0, 3.5, 14.0, 0.0, 0.0, 0.0, 0.0],
        [1.60, 0.21, -10., 3.5, 11.0, 0.0, 0.0, 0.0, 1.0],
        [1.50, 0.19, -6.0, 3.5, 12.0, 1.0, 1.0, 0.0, 1.0],
        [1.00, 0.05,  0.0, 3.5,  0.0, 0.0, 0.0, 1.0, 0.0],
    ], dtype=jnp.float32)
    global_params = jnp.array([[3.0, 2.6, 1.75]], dtype=jnp.float32)      # hbond sigmas

    # coords: roughly a jittered chain so pairs cover all distance regimes
    base = jnp.arange(max_n_pose_atoms, dtype=jnp.float32)[:, None] * jnp.array([1.7, 0.0, 0.0])
    jitter = 0.4 * jax.random.normal(k_co, (n_poses, max_n_pose_atoms, 3), dtype=jnp.float32)
    coords = base[None, :, :] + jitter                                    # (2, 32, 3)

    frow, fcol, bsep = build_inputs(
        coords, pose_stack_block_coord_offset, pose_stack_block_types,
        pose_stack_inter_block_bondsep, bt_n_atoms, bt_atom_types,
        bt_atoms_forming_chemical_bonds, bt_n_interblock_bonds,
        bt_path_distance, ljlk_type_params, type_is_hydrogen)

    scores = ljlk_pose_scores_pallas(frow, fcol, bsep, global_params)     # (2, n_poses)
    scores = jax.block_until_ready(scores)
    assert scores.shape == (2, n_poses)
    assert bool(jnp.all(jnp.isfinite(scores)))
    print("KERNEL_OK")
</pallas_src>

<mosaic_0001>
module attributes {stable_mosaic.version = 11 : i64} {
  func.func @ljlk_kernel(%arg0: i32, %arg1: i32, %arg2: memref<1xi32, #tpu.memory_space<smem>>, %arg3: memref<1xi32, #tpu.memory_space<smem>>, %arg4: memref<1x12x128xf32, #tpu.memory_space<vmem>>, %arg5: memref<1x128x12xf32, #tpu.memory_space<vmem>>, %arg6: memref<1x128x128xi8, #tpu.memory_space<vmem>>, %arg7: memref<1x8x128xf32, #tpu.memory_space<vmem>>, %arg8: memref<128x128xf32, #tpu.memory_space<vmem>>, %arg9: memref<128x128xf32, #tpu.memory_space<vmem>>) attributes {dimension_semantics = [#tpu.dimension_semantics<parallel>, #tpu.dimension_semantics<arbitrary>], iteration_bounds = array<i64: 2, 1>, scalar_prefetch = 2 : i64, scratch_operands = 2 : i64, tpu.core_type = #tpu.core_type<tc>, window_params = [{transform_indices = @transform_0, window_bounds = array<i64: 1, 12, 128>}, {transform_indices = @transform_1, window_bounds = array<i64: 1, 128, 12>}, {transform_indices = @transform_2, window_bounds = array<i64: 1, 128, 128>}, {transform_indices = @transform_3, window_bounds = array<i64: 1, 8, 128>}]} {
    %c0_i32 = arith.constant 0 : i32
    %0 = arith.cmpi eq, %arg1, %c0_i32 : i32
    %1 = arith.extui %0 : i1 to i32
    %c0_i32_0 = arith.constant 0 : i32
    %2 = arith.cmpi ne, %1, %c0_i32_0 : i32
    scf.if %2 {
      %cst_147 = arith.constant 0.000000e+00 : f32
      %437 = vector.broadcast %cst_147 : f32 to vector<128x128xf32>
      %c0_148 = arith.constant 0 : index
      %c0_149 = arith.constant 0 : index
      %438 = vector.load %arg8[%c0_148, %c0_149] : memref<128x128xf32, #tpu.memory_space<vmem>>, vector<128x128xf32>
      tpu.vector_store %arg8[%c0_148, %c0_149], %437 {strides = array<i32>} : memref<128x128xf32, #tpu.memory_space<vmem>>, vector<128x128xf32>,
      %cst_150 = arith.constant 0.000000e+00 : f32
      %439 = vector.broadcast %cst_150 : f32 to vector<128x128xf32>
      %c0_151 = arith.constant 0 : index
      %c0_152 = arith.constant 0 : index
      %440 = vector.load %arg9[%c0_151, %c0_152] : memref<128x128xf32, #tpu.memory_space<vmem>>, vector<128x128xf32>
      tpu.vector_store %arg9[%c0_151, %c0_152], %439 {strides = array<i32>} : memref<128x128xf32, #tpu.memory_space<vmem>>, vector<128x128xf32>,
    } else {
    }
    %c0 = arith.constant 0 : index
    %c0_1 = arith.constant 0 : index
    %c0_2 = arith.constant 0 : index
    %3 = vector.load %arg5[%c0, %c0_1, %c0_2] : memref<1x128x12xf32, #tpu.memory_space<vmem>>, vector<1x128x1xf32>
    %4 = vector.shape_cast %3 : vector<1x128x1xf32> to vector<128x1xf32>
    %c0_3 = arith.constant 0 : index
    %c0_4 = arith.constant 0 : index
    %c0_5 = arith.constant 0 : index
    %5 = vector.load %arg4[%c0_3, %c0_4, %c0_5] : memref<1x12x128xf32, #tpu.memory_space<vmem>>, vector<1x1x128xf32>
    %6 = vector.shape_cast %5 : vector<1x1x128xf32> to vector<1x128xf32>
    %7 = vector.broadcast %4 : vector<128x1xf32> to vector<128x128xf32>
    %8 = vector.broadcast %6 : vector<1x128xf32> to vector<128x128xf32>
    %9 = arith.subf %7, %8 : vector<128x128xf32>
    %c0_6 = arith.constant 0 : index
    %c0_7 = arith.constant 0 : index
    %c1 = arith.constant 1 : index
    %10 = vector.load %arg5[%c0_6, %c0_7, %c1] : memref<1x128x12xf32, #tpu.memory_space<vmem>>, vector<1x128x1xf32>
    %11 = vector.shape_cast %10 : vector<1x128x1xf32> to vector<128x1xf32>
    %c0_8 = arith.constant 0 : index
    %c1_9 = arith.constant 1 : index
    %c0_10 = arith.constant 0 : index
    %12 = vector.load %arg4[%c0_8, %c1_9, %c0_10] : memref<1x12x128xf32, #tpu.memory_space<vmem>>, vector<1x1x128xf32>
    %13 = vector.shape_cast %12 : vector<1x1x128xf32> to vector<1x128xf32>
    %14 = vector.broadcast %11 : vector<128x1xf32> to vector<128x128xf32>
    %15 = vector.broadcast %13 : vector<1x128xf32> to vector<128x128xf32>
    %16 = arith.subf %14, %15 : vector<128x128xf32>
    %c0_11 = arith.constant 0 : index
    %c0_12 = arith.constant 0 : index
    %c2 = arith.constant 2 : index
    %17 = vector.load %arg5[%c0_11, %c0_12, %c2] : memref<1x128x12xf32, #tpu.memory_space<vmem>>, vector<1x128x1xf32>
    %18 = vector.shape_cast %17 : vector<1x128x1xf32> to vector<128x1xf32>
    %c0_13 = arith.constant 0 : index
    %c2_14 = arith.constant 2 : index
    %c0_15 = arith.constant 0 : index
    %19 = vector.load %arg4[%c0_13, %c2_14, %c0_15] : memref<1x12x128xf32, #tpu.memory_space<vmem>>, vector<1x1x128xf32>
    %20 = vector.shape_cast %19 : vector<1x1x128xf32> to vector<1x128xf32>
    %21 = vector.broadcast %18 : vector<128x1xf32> to vector<128x128xf32>
    %22 = vector.broadcast %20 : vector<1x128xf32> to vector<128x128xf32>
    %23 = arith.subf %21, %22 : vector<128x128xf32>
    %24 = arith.mulf %9, %9 : vector<128x128xf32>
    %25 = arith.mulf %16, %16 : vector<128x128xf32>
    %26 = arith.addf %24, %25 : vector<128x128xf32>
    %27 = arith.mulf %23, %23 : vector<128x128xf32>
    %28 = arith.addf %26, %27 : vector<128x128xf32>
    %cst = arith.constant 9.99999996E-13 : f32
    %29 = vector.broadcast %cst : f32 to vector<128x128xf32>
    %30 = arith.maximumf %28, %29 : vector<128x128xf32>
    %31 = math.rsqrt %30 : vector<128x128xf32>
    %32 = arith.mulf %28, %31 : vector<128x128xf32>
    %33 = arith.mulf %31, %31 : vector<128x128xf32>
    %c0_16 = arith.constant 0 : index
    %c0_17 = arith.constant 0 : index
    %c0_18 = arith.constant 0 : index
    %34 = vector.load %arg6[%c0_16, %c0_17, %c0_18] : memref<1x128x128xi8, #tpu.memory_space<vmem>>, vector<1x128x128xi8>
    %35 = vector.shape_cast %34 : vector<1x128x128xi8> to vector<128x128xi8>
    %36 = arith.extsi %35 : vector<128x128xi8> to vector<128x128xi32>
    %c5_i32 = arith.constant 5 : i32
    %37 = vector.broadcast %c5_i32 : i32 to vector<128x128xi32>
    %38 = arith.cmpi sge, %36, %37 : vector<128x128xi32>
    %c4_i32 = arith.constant 4 : i32
    %39 = vector.broadcast %c4_i32 : i32 to vector<128x128xi32>
    %40 = arith.cmpi eq, %36, %39 : vector<128x128xi32>
    %cst_19 = arith.constant 2.000000e-01 : f32
    %cst_20 = arith.constant 0.000000e+00 : f32
    %41 = vector.broadcast %cst_19 : f32 to vector<128x128xf32>
    %42 = vector.broadcast %cst_20 : f32 to vector<128x128xf32>
    %43 = arith.select %40, %41, %42 : vector<128x128xi1>, vector<128x128xf32>
    %cst_21 = arith.constant 1.000000e+00 : f32
    %44 = vector.broadcast %cst_21 : f32 to vector<128x128xf32>
    %45 = arith.select %38, %44, %43 : vector<128x128xi1>, vector<128x128xf32>
    %46 = arith.index_cast %arg1 : i32 to index
    %47 = memref.load %arg2[%46] : memref<1xi32, #tpu.memory_space<smem>>
    %48 = arith.index_cast %arg1 : i32 to index
    %49 = memref.load %arg3[%48] : memref<1xi32, #tpu.memory_space<smem>>
    %50 = arith.cmpi eq, %47, %49 : i32
    %cst_22 = arith.constant 5.000000e-01 : f32
    %cst_23 = arith.constant 1.000000e+00 : f32
    %51 = arith.select %50, %cst_22, %cst_23 : f32
    %52 = vector.broadcast %51 : f32 to vector<128x128xf32>
    %53 = arith.mulf %45, %52 : vector<128x128xf32>
    %c0_24 = arith.constant 0 : index
    %c0_25 = arith.constant 0 : index
    %c3 = arith.constant 3 : index
    %54 = vector.load %arg5[%c0_24, %c0_25, %c3] : memref<1x128x12xf32, #tpu.memory_space<vmem>>, vector<1x128x1xf32>
    %55 = vector.shape_cast %54 : vector<1x128x1xf32> to vector<128x1xf32>
    %c0_26 = arith.constant 0 : index
    %c3_27 = arith.constant 3 : index
    %c0_28 = arith.constant 0 : index
    %56 = vector.load %arg4[%c0_26, %c3_27, %c0_28] : memref<1x12x128xf32, #tpu.memory_space<vmem>>, vector<1x1x128xf32>
    %57 = vector.shape_cast %56 : vector<1x1x128xf32> to vector<1x128xf32>
    %c0_29 = arith.constant 0 : index
    %c0_30 = arith.constant 0 : index
    %c9 = arith.constant 9 : index
    %58 = vector.load %arg5[%c0_29, %c0_30, %c9] : memref<1x128x12xf32, #tpu.memory_space<vmem>>, vector<1x128x1xf32>
    %59 = vector.shape_cast %58 : vector<1x128x1xf32> to vector<128x1xf32>
    %c0_31 = arith.constant 0 : index
    %c9_32 = arith.constant 9 : index
    %c0_33 = arith.constant 0 : index
    %60 = vector.load %arg4[%c0_31, %c9_32, %c0_33] : memref<1x12x128xf32, #tpu.memory_space<vmem>>, vector<1x1x128xf32>
    %61 = vector.shape_cast %60 : vector<1x1x128xf32> to vector<1x128xf32>
    %62 = vector.broadcast %55 : vector<128x1xf32> to vector<128x128xf32>
    %63 = vector.broadcast %57 : vector<1x128xf32> to vector<128x128xf32>
    %64 = arith.addf %62, %63 : vector<128x128xf32>
    %c0_34 = arith.constant 0 : index
    %c0_35 = arith.constant 0 : index
    %c8 = arith.constant 8 : index
    %65 = vector.load %arg5[%c0_34, %c0_35, %c8] : memref<1x128x12xf32, #tpu.memory_space<vmem>>, vector<1x128x1xf32>
    %66 = vector.shape_cast %65 : vector<1x128x1xf32> to vector<128x1xf32>
    %67 = vector.broadcast %66 : vector<128x1xf32> to vector<128x128xf32>
    %68 = vector.broadcast %61 : vector<1x128xf32> to vector<128x128xf32>
    %69 = arith.mulf %67, %68 : vector<128x128xf32>
    %c0_36 = arith.constant 0 : index
    %c8_37 = arith.constant 8 : index
    %c0_38 = arith.constant 0 : index
    %70 = vector.load %arg4[%c0_36, %c8_37, %c0_38] : memref<1x12x128xf32, #tpu.memory_space<vmem>>, vector<1x1x128xf32>
    %71 = vector.shape_cast %70 : vector<1x1x128xf32> to vector<1x128xf32>
    %72 = vector.broadcast %71 : vector<1x128xf32> to vector<128x128xf32>
    %73 = vector.broadcast %59 : vector<128x1xf32> to vector<128x128xf32>
    %74 = arith.mulf %72, %73 : vector<128x128xf32>
    %75 = arith.addf %69, %74 : vector<128x128xf32>
    %cst_39 = arith.constant 0.000000e+00 : f32
    %76 = vector.broadcast %cst_39 : f32 to vector<128x128xf32>
    %77 = arith.cmpf ogt, %75, %76 : vector<128x128xf32>
    %c0_40 = arith.constant 0 : index
    %c0_41 = arith.constant 0 : index
    %c10 = arith.constant 10 : index
    %78 = vector.load %arg5[%c0_40, %c0_41, %c10] : memref<1x128x12xf32, #tpu.memory_space<vmem>>, vector<1x128x1xf32>
    %79 = vector.shape_cast %78 : vector<1x128x1xf32> to vector<128x1xf32>
    %80 = vector.broadcast %79 : vector<128x1xf32> to vector<128x128xf32>
    %81 = vector.broadcast %61 : vector<1x128xf32> to vector<128x128xf32>
    %82 = arith.mulf %80, %81 : vector<128x128xf32>
    %c0_42 = arith.constant 0 : index
    %c10_43 = arith.constant 10 : index
    %c0_44 = arith.constant 0 : index
    %83 = vector.load %arg4[%c0_42, %c10_43, %c0_44] : memref<1x12x128xf32, #tpu.memory_space<vmem>>, vector<1x1x128xf32>
    %84 = vector.shape_cast %83 : vector<1x1x128xf32> to vector<1x128xf32>
    %85 = vector.broadcast %84 : vector<1x128xf32> to vector<128x128xf32>
    %86 = vector.broadcast %59 : vector<128x1xf32> to vector<128x128xf32>
    %87 = arith.mulf %85, %86 : vector<128x128xf32>
    %88 = arith.addf %82, %87 : vector<128x128xf32>
    %cst_45 = arith.constant 0.000000e+00 : f32
    %89 = vector.broadcast %cst_45 : f32 to vector<128x128xf32>
    %90 = arith.cmpf ogt, %88, %89 : vector<128x128xf32>
    %c0_46 = arith.constant 0 : index
    %c0_47 = arith.constant 0 : index
    %c11 = arith.constant 11 : index
    %91 = vector.load %arg5[%c0_46, %c0_47, %c11] : memref<1x128x12xf32, #tpu.memory_space<vmem>>, vector<1x128x1xf32>
    %92 = vector.shape_cast %91 : vector<1x128x1xf32> to vector<128x1xf32>
    %93 = vector.broadcast %92 : vector<128x1xf32> to vector<128x128xf32>
    %94 = vector.broadcast %61 : vector<1x128xf32> to vector<128x128xf32>
    %95 = arith.mulf %93, %94 : vector<128x128xf32>
    %c0_48 = arith.constant 0 : index
    %c11_49 = arith.constant 11 : index
    %c0_50 = arith.constant 0 : index
    %96 = vector.load %arg4[%c0_48, %c11_49, %c0_50] : memref<1x12x128xf32, #tpu.memory_space<vmem>>, vector<1x1x128xf32>
    %97 = vector.shape_cast %96 : vector<1x1x128xf32> to vector<1x128xf32>
    %98 = vector.broadcast %97 : vector<1x128xf32> to vector<128x128xf32>
    %99 = vector.broadcast %59 : vector<128x1xf32> to vector<128x128xf32>
    %100 = arith.mulf %98, %99 : vector<128x128xf32>
    %101 = arith.addf %95, %100 : vector<128x128xf32>
    %cst_51 = arith.constant 0.000000e+00 : f32
    %102 = vector.broadcast %cst_51 : f32 to vector<128x128xf32>
    %103 = arith.cmpf ogt, %101, %102 : vector<128x128xf32>
    %cst_52 = arith.constant 1.750000e+00 : f32
    %104 = vector.broadcast %cst_52 : f32 to vector<128x128xf32>
    %105 = arith.select %77, %104, %64 : vector<128x128xi1>, vector<128x128xf32>
    %cst_53 = arith.constant 2.600000e+00 : f32
    %106 = vector.broadcast %cst_53 : f32 to vector<128x128xf32>
    %107 = arith.select %90, %106, %105 : vector<128x128xi1>, vector<128x128xf32>
    %cst_54 = arith.constant 3.000000e+00 : f32
    %108 = vector.broadcast %cst_54 : f32 to vector<128x128xf32>
    %109 = arith.select %103, %108, %107 : vector<128x128xi1>, vector<128x128xf32>
    %110 = arith.mulf %109, %109 : vector<128x128xf32>
    %111 = tpu.reciprocal %109 {approx = true} : vector<128x128xf32> -> vector<128x128xf32>
    %c0_55 = arith.constant 0 : index
    %c0_56 = arith.constant 0 : index
    %c4 = arith.constant 4 : index
    %112 = vector.load %arg5[%c0_55, %c0_56, %c4] : memref<1x128x12xf32, #tpu.memory_space<vmem>>, vector<1x128x1xf32>
    %113 = vector.shape_cast %112 : vector<1x128x1xf32> to vector<128x1xf32>
    %c0_57 = arith.constant 0 : index
    %c4_58 = arith.constant 4 : index
    %c0_59 = arith.constant 0 : index
    %114 = vector.load %arg4[%c0_57, %c4_58, %c0_59] : memref<1x12x128xf32, #tpu.memory_space<vmem>>, vector<1x1x128xf32>
    %115 = vector.shape_cast %114 : vector<1x1x128xf32> to vector<1x128xf32>
    %116 = vector.broadcast %113 : vector<128x1xf32> to vector<128x128xf32>
    %117 = vector.broadcast %115 : vector<1x128xf32> to vector<128x128xf32>
    %118 = arith.mulf %116, %117 : vector<128x128xf32>
    %cst_60 = arith.constant 6.000000e-01 : f32
    %119 = vector.broadcast %cst_60 : f32 to vector<128x128xf32>
    %120 = arith.mulf %119, %109 : vector<128x128xf32>
    %cst_61 = arith.constant -8759.2041 : f32
    %121 = vector.broadcast %cst_61 : f32 to vector<128x128xf32>
    %122 = arith.mulf %121, %111 : vector<128x128xf32>
    %123 = arith.subf %32, %120 : vector<128x128xf32>
    %124 = arith.mulf %122, %123 : vector<128x128xf32>
    %cst_62 = arith.constant 416.526703 : f32
    %125 = vector.broadcast %cst_62 : f32 to vector<128x128xf32>
    %126 = arith.addf %125, %124 : vector<128x128xf32>
    %127 = arith.mulf %118, %126 : vector<128x128xf32>
    %128 = arith.mulf %110, %33 : vector<128x128xf32>
    %129 = arith.mulf %128, %128 : vector<128x128xf32>
    %130 = arith.mulf %129, %128 : vector<128x128xf32>
    %131 = arith.mulf %130, %130 : vector<128x128xf32>
    %cst_63 = arith.constant 2.000000e+00 : f32
    %132 = vector.broadcast %cst_63 : f32 to vector<128x128xf32>
    %133 = arith.mulf %132, %130 : vector<128x128xf32>
    %134 = arith.subf %131, %133 : vector<128x128xf32>
    %135 = arith.mulf %118, %134 : vector<128x128xf32>
    %cst_64 = arith.constant 0.0493827164 : f32
    %136 = vector.broadcast %cst_64 : f32 to vector<128x128xf32>
    %137 = arith.mulf %110, %136 : vector<128x128xf32>
    %138 = arith.mulf %137, %137 : vector<128x128xf32>
    %139 = arith.mulf %138, %137 : vector<128x128xf32>
    %140 = arith.mulf %139, %139 : vector<128x128xf32>
    %cst_65 = arith.constant 2.000000e+00 : f32
    %141 = vector.broadcast %cst_65 : f32 to vector<128x128xf32>
    %142 = arith.mulf %141, %139 : vector<128x128xf32>
    %143 = arith.subf %140, %142 : vector<128x128xf32>
    %144 = arith.mulf %118, %143 : vector<128x128xf32>
    %cst_66 = arith.constant -2.66666675 : f32
    %145 = vector.broadcast %cst_66 : f32 to vector<128x128xf32>
    %146 = arith.mulf %118, %145 : vector<128x128xf32>
    %147 = arith.subf %140, %139 : vector<128x128xf32>
    %148 = arith.mulf %146, %147 : vector<128x128xf32>
    %cst_67 = arith.constant 4.500000e+00 : f32
    %149 = vector.broadcast %cst_67 : f32 to vector<128x128xf32>
    %150 = arith.subf %32, %149 : vector<128x128xf32>
    %cst_68 = arith.constant 0.666666686 : f32
    %151 = vector.broadcast %cst_68 : f32 to vector<128x128xf32>
    %152 = arith.mulf %150, %151 : vector<128x128xf32>
    %153 = arith.mulf %152, %152 : vector<128x128xf32>
    %154 = arith.mulf %153, %152 : vector<128x128xf32>
    %cst_69 = arith.constant 2.000000e+00 : f32
    %155 = vector.broadcast %cst_69 : f32 to vector<128x128xf32>
    %156 = arith.mulf %155, %154 : vector<128x128xf32>
    %cst_70 = arith.constant 3.000000e+00 : f32
    %157 = vector.broadcast %cst_70 : f32 to vector<128x128xf32>
    %158 = arith.mulf %157, %153 : vector<128x128xf32>
    %159 = arith.subf %156, %158 : vector<128x128xf32>
    %cst_71 = arith.constant 1.000000e+00 : f32
    %160 = vector.broadcast %cst_71 : f32 to vector<128x128xf32>
    %161 = arith.addf %159, %160 : vector<128x128xf32>
    %162 = arith.mulf %161, %144 : vector<128x128xf32>
    %cst_72 = arith.constant 2.000000e+00 : f32
    %163 = vector.broadcast %cst_72 : f32 to vector<128x128xf32>
    %164 = arith.mulf %163, %153 : vector<128x128xf32>
    %165 = arith.subf %154, %164 : vector<128x128xf32>
    %166 = arith.addf %165, %152 : vector<128x128xf32>
    %cst_73 = arith.constant 1.500000e+00 : f32
    %167 = vector.broadcast %cst_73 : f32 to vector<128x128xf32>
    %168 = arith.mulf %166, %167 : vector<128x128xf32>
    %169 = arith.mulf %168, %148 : vector<128x128xf32>
    %170 = arith.addf %162, %169 : vector<128x128xf32>
    %171 = arith.cmpf olt, %32, %120 : vector<128x128xf32>
    %cst_74 = arith.constant 4.500000e+00 : f32
    %172 = vector.broadcast %cst_74 : f32 to vector<128x128xf32>
    %173 = arith.cmpf olt, %32, %172 : vector<128x128xf32>
    %cst_75 = arith.constant 6.000000e+00 : f32
    %174 = vector.broadcast %cst_75 : f32 to vector<128x128xf32>
    %175 = arith.cmpf olt, %32, %174 : vector<128x128xf32>
    %cst_76 = arith.constant 0.000000e+00 : f32
    %176 = vector.broadcast %cst_76 : f32 to vector<128x128xf32>
    %177 = arith.select %175, %170, %176 : vector<128x128xi1>, vector<128x128xf32>
    %178 = arith.select %173, %135, %177 : vector<128x128xi1>, vector<128x128xf32>
    %179 = arith.select %171, %127, %178 : vector<128x128xi1>, vector<128x128xf32>
    %c0_77 = arith.constant 0 : index
    %c0_78 = arith.constant 0 : index
    %c7 = arith.constant 7 : index
    %180 = vector.load %arg5[%c0_77, %c0_78, %c7] : memref<1x128x12xf32, #tpu.memory_space<vmem>>, vector<1x128x1xf32>
    %181 = vector.shape_cast %180 : vector<1x128x1xf32> to vector<128x1xf32>
    %c0_79 = arith.constant 0 : index
    %c7_80 = arith.constant 7 : index
    %c0_81 = arith.constant 0 : index
    %182 = vector.load %arg4[%c0_79, %c7_80, %c0_81] : memref<1x12x128xf32, #tpu.memory_space<vmem>>, vector<1x1x128xf32>
    %183 = vector.shape_cast %182 : vector<1x1x128xf32> to vector<1x128xf32>
    %c0_82 = arith.constant 0 : index
    %c0_83 = arith.constant 0 : index
    %c5 = arith.constant 5 : index
    %184 = vector.load %arg5[%c0_82, %c0_83, %c5] : memref<1x128x12xf32, #tpu.memory_space<vmem>>, vector<1x128x1xf32>
    %185 = vector.shape_cast %184 : vector<1x128x1xf32> to vector<128x1xf32>
    %c0_84 = arith.constant 0 : index
    %c5_85 = arith.constant 5 : index
    %c0_86 = arith.constant 0 : index
    %186 = vector.load %arg4[%c0_84, %c5_85, %c0_86] : memref<1x12x128xf32, #tpu.memory_space<vmem>>, vector<1x1x128xf32>
    %187 = vector.shape_cast %186 : vector<1x1x128xf32> to vector<1x128xf32>
    %c0_87 = arith.constant 0 : index
    %c0_88 = arith.constant 0 : index
    %c6 = arith.constant 6 : index
    %188 = vector.load %arg5[%c0_87, %c0_88, %c6] : memref<1x128x12xf32, #tpu.memory_space<vmem>>, vector<1x128x1xf32>
    %189 = vector.shape_cast %188 : vector<1x128x1xf32> to vector<128x1xf32>
    %c0_89 = arith.constant 0 : index
    %c6_90 = arith.constant 6 : index
    %c0_91 = arith.constant 0 : index
    %190 = vector.load %arg4[%c0_89, %c6_90, %c0_91] : memref<1x12x128xf32, #tpu.memory_space<vmem>>, vector<1x1x128xf32>
    %191 = vector.shape_cast %190 : vector<1x1x128xf32> to vector<1x128xf32>
    %cst_92 = arith.constant 0.889999985 : f32
    %192 = vector.broadcast %cst_92 : f32 to vector<128x128xf32>
    %193 = arith.mulf %192, %109 : vector<128x128xf32>
    %194 = arith.mulf %193, %193 : vector<128x128xf32>
    %195 = arith.mulf %111, %111 : vector<128x128xf32>
    %cst_93 = arith.constant 1.26246691 : f32
    %196 = vector.broadcast %cst_93 : f32 to vector<128x128xf32>
    %197 = arith.mulf %195, %196 : vector<128x128xf32>
    %198 = vector.broadcast %55 : vector<128x1xf32> to vector<128x128xf32>
    %199 = arith.subf %193, %198 : vector<128x128xf32>
    %200 = vector.broadcast %189 : vector<128x1xf32> to vector<128x128xf32>
    %201 = arith.mulf %199, %200 : vector<128x128xf32>
    %202 = vector.broadcast %57 : vector<1x128xf32> to vector<128x128xf32>
    %203 = arith.subf %193, %202 : vector<128x128xf32>
    %204 = vector.broadcast %191 : vector<1x128xf32> to vector<128x128xf32>
    %205 = arith.mulf %203, %204 : vector<128x128xf32>
    %cst_94 = arith.constant 0.000000e+00 : f32
    %206 = vector.broadcast %cst_94 : f32 to vector<1x128xf32>
    %207 = arith.subf %206, %183 : vector<1x128xf32>
    %208 = vector.broadcast %207 : vector<1x128xf32> to vector<128x128xf32>
    %209 = vector.broadcast %185 : vector<128x1xf32> to vector<128x128xf32>
    %210 = arith.mulf %208, %209 : vector<128x128xf32>
    %cst_95 = arith.constant 0.000000e+00 : f32
    %211 = vector.broadcast %cst_95 : f32 to vector<128x128xf32>
    %212 = arith.subf %211, %201 : vector<128x128xf32>
    %213 = arith.mulf %212, %201 : vector<128x128xf32>
    %214 = math.exp %213 : vector<128x128xf32>
    %215 = arith.mulf %210, %214 : vector<128x128xf32>
    %cst_96 = arith.constant 0.000000e+00 : f32
    %216 = vector.broadcast %cst_96 : f32 to vector<128x1xf32>
    %217 = arith.subf %216, %181 : vector<128x1xf32>
    %218 = vector.broadcast %217 : vector<128x1xf32> to vector<128x128xf32>
    %219 = vector.broadcast %187 : vector<1x128xf32> to vector<128x128xf32>
    %220 = arith.mulf %218, %219 : vector<128x128xf32>
    %cst_97 = arith.constant 0.000000e+00 : f32
    %221 = vector.broadcast %cst_97 : f32 to vector<128x128xf32>
    %222 = arith.subf %221, %205 : vector<128x128xf32>
    %223 = arith.mulf %222, %205 : vector<128x128xf32>
    %224 = math.exp %223 : vector<128x128xf32>
    %225 = arith.mulf %220, %224 : vector<128x128xf32>
    %226 = arith.addf %215, %225 : vector<128x128xf32>
    %227 = arith.mulf %226, %197 : vector<128x128xf32>
    %cst_98 = arith.constant 1.450000e+00 : f32
    %228 = vector.broadcast %cst_98 : f32 to vector<128x128xf32>
    %229 = arith.subf %194, %228 : vector<128x128xf32>
    %cst_99 = arith.constant 9.99999974E-5 : f32
    %230 = vector.broadcast %cst_99 : f32 to vector<128x128xf32>
    %231 = arith.maximumf %229, %230 : vector<128x128xf32>
    %232 = math.sqrt %231 : vector<128x128xf32>
    %cst_100 = arith.constant 1.050000e+00 : f32
    %233 = vector.broadcast %cst_100 : f32 to vector<128x128xf32>
    %234 = arith.addf %194, %233 : vector<128x128xf32>
    %235 = math.rsqrt %234 : vector<128x128xf32>
    %236 = arith.mulf %234, %235 : vector<128x128xf32>
    %237 = arith.mulf %235, %235 : vector<128x128xf32>
    %238 = arith.mulf %237, %235 : vector<128x128xf32>
    %239 = vector.broadcast %55 : vector<128x1xf32> to vector<128x128xf32>
    %240 = arith.subf %236, %239 : vector<128x128xf32>
    %241 = vector.broadcast %189 : vector<128x1xf32> to vector<128x128xf32>
    %242 = arith.mulf %240, %241 : vector<128x128xf32>
    %243 = vector.broadcast %57 : vector<1x128xf32> to vector<128x128xf32>
    %244 = arith.subf %236, %243 : vector<128x128xf32>
    %245 = vector.broadcast %191 : vector<1x128xf32> to vector<128x128xf32>
    %246 = arith.mulf %244, %245 : vector<128x128xf32>
    %cst_101 = arith.constant 0.000000e+00 : f32
    %247 = vector.broadcast %cst_101 : f32 to vector<1x128xf32>
    %248 = arith.subf %247, %183 : vector<1x128xf32>
    %249 = vector.broadcast %248 : vector<1x128xf32> to vector<128x128xf32>
    %250 = vector.broadcast %185 : vector<128x1xf32> to vector<128x128xf32>
    %251 = arith.mulf %249, %250 : vector<128x128xf32>
    %cst_102 = arith.constant 0.000000e+00 : f32
    %252 = vector.broadcast %cst_102 : f32 to vector<128x128xf32>
    %253 = arith.subf %252, %242 : vector<128x128xf32>
    %254 = arith.mulf %253, %242 : vector<128x128xf32>
    %255 = math.exp %254 : vector<128x128xf32>
    %256 = arith.mulf %251, %255 : vector<128x128xf32>
    %cst_103 = arith.constant 0.000000e+00 : f32
    %257 = vector.broadcast %cst_103 : f32 to vector<128x1xf32>
    %258 = arith.subf %257, %181 : vector<128x1xf32>
    %259 = vector.broadcast %258 : vector<128x1xf32> to vector<128x128xf32>
    %260 = vector.broadcast %187 : vector<1x128xf32> to vector<128x128xf32>
    %261 = arith.mulf %259, %260 : vector<128x128xf32>
    %cst_104 = arith.constant 0.000000e+00 : f32
    %262 = vector.broadcast %cst_104 : f32 to vector<128x128xf32>
    %263 = arith.subf %262, %246 : vector<128x128xf32>
    %264 = arith.mulf %263, %246 : vector<128x128xf32>
    %265 = math.exp %264 : vector<128x128xf32>
    %266 = arith.mulf %261, %265 : vector<128x128xf32>
    %267 = arith.addf %256, %266 : vector<128x128xf32>
    %268 = arith.mulf %267, %237 : vector<128x128xf32>
    %cst_105 = arith.constant -2.000000e+00 : f32
    %269 = vector.broadcast %cst_105 : f32 to vector<128x128xf32>
    %270 = arith.mulf %269, %237 : vector<128x128xf32>
    %271 = arith.mulf %256, %242 : vector<128x128xf32>
    %272 = vector.broadcast %189 : vector<128x1xf32> to vector<128x128xf32>
    %273 = arith.mulf %271, %272 : vector<128x128xf32>
    %274 = arith.mulf %266, %246 : vector<128x128xf32>
    %275 = vector.broadcast %191 : vector<1x128xf32> to vector<128x128xf32>
    %276 = arith.mulf %274, %275 : vector<128x128xf32>
    %277 = arith.addf %273, %276 : vector<128x128xf32>
    %278 = arith.mulf %270, %277 : vector<128x128xf32>
    %cst_106 = arith.constant -2.000000e+00 : f32
    %279 = vector.broadcast %cst_106 : f32 to vector<128x128xf32>
    %280 = arith.mulf %279, %238 : vector<128x128xf32>
    %281 = arith.addf %256, %266 : vector<128x128xf32>
    %282 = arith.mulf %280, %281 : vector<128x128xf32>
    %283 = arith.addf %278, %282 : vector<128x128xf32>
    %284 = arith.subf %236, %232 : vector<128x128xf32>
    %285 = tpu.reciprocal %284 {approx = true} : vector<128x128xf32> -> vector<128x128xf32>
    %286 = arith.subf %32, %232 : vector<128x128xf32>
    %287 = arith.mulf %286, %285 : vector<128x128xf32>
    %288 = arith.mulf %287, %287 : vector<128x128xf32>
    %289 = arith.mulf %288, %287 : vector<128x128xf32>
    %cst_107 = arith.constant 2.000000e+00 : f32
    %290 = vector.broadcast %cst_107 : f32 to vector<128x128xf32>
    %291 = arith.mulf %290, %289 : vector<128x128xf32>
    %cst_108 = arith.constant 3.000000e+00 : f32
    %292 = vector.broadcast %cst_108 : f32 to vector<128x128xf32>
    %293 = arith.mulf %292, %288 : vector<128x128xf32>
    %294 = arith.subf %291, %293 : vector<128x128xf32>
    %cst_109 = arith.constant 1.000000e+00 : f32
    %295 = vector.broadcast %cst_109 : f32 to vector<128x128xf32>
    %296 = arith.addf %294, %295 : vector<128x128xf32>
    %297 = arith.mulf %296, %227 : vector<128x128xf32>
    %cst_110 = arith.constant 2.000000e+00 : f32
    %298 = vector.broadcast %cst_110 : f32 to vector<128x128xf32>
    %299 = arith.mulf %298, %288 : vector<128x128xf32>
    %300 = arith.subf %289, %299 : vector<128x128xf32>
    %301 = arith.addf %300, %287 : vector<128x128xf32>
    %302 = arith.mulf %301, %284 : vector<128x128xf32>
    %cst_111 = arith.constant 0.000000e+00 : f32
    %303 = vector.broadcast %cst_111 : f32 to vector<128x128xf32>
    %304 = arith.mulf %302, %303 : vector<128x128xf32>
    %305 = arith.addf %297, %304 : vector<128x128xf32>
    %cst_112 = arith.constant -2.000000e+00 : f32
    %306 = vector.broadcast %cst_112 : f32 to vector<128x128xf32>
    %307 = arith.mulf %306, %289 : vector<128x128xf32>
    %cst_113 = arith.constant 3.000000e+00 : f32
    %308 = vector.broadcast %cst_113 : f32 to vector<128x128xf32>
    %309 = arith.mulf %308, %288 : vector<128x128xf32>
    %310 = arith.addf %307, %309 : vector<128x128xf32>
    %311 = arith.mulf %310, %268 : vector<128x128xf32>
    %312 = arith.addf %305, %311 : vector<128x128xf32>
    %313 = arith.subf %289, %288 : vector<128x128xf32>
    %314 = arith.mulf %313, %284 : vector<128x128xf32>
    %315 = arith.mulf %314, %283 : vector<128x128xf32>
    %316 = arith.addf %312, %315 : vector<128x128xf32>
    %317 = vector.broadcast %55 : vector<128x1xf32> to vector<128x128xf32>
    %318 = arith.subf %32, %317 : vector<128x128xf32>
    %319 = vector.broadcast %189 : vector<128x1xf32> to vector<128x128xf32>
    %320 = arith.mulf %318, %319 : vector<128x128xf32>
    %321 = vector.broadcast %57 : vector<1x128xf32> to vector<128x128xf32>
    %322 = arith.subf %32, %321 : vector<128x128xf32>
    %323 = vector.broadcast %191 : vector<1x128xf32> to vector<128x128xf32>
    %324 = arith.mulf %322, %323 : vector<128x128xf32>
    %cst_114 = arith.constant 0.000000e+00 : f32
    %325 = vector.broadcast %cst_114 : f32 to vector<1x128xf32>
    %326 = arith.subf %325, %183 : vector<1x128xf32>
    %327 = vector.broadcast %326 : vector<1x128xf32> to vector<128x128xf32>
    %328 = vector.broadcast %185 : vector<128x1xf32> to vector<128x128xf32>
    %329 = arith.mulf %327, %328 : vector<128x128xf32>
    %cst_115 = arith.constant 0.000000e+00 : f32
    %330 = vector.broadcast %cst_115 : f32 to vector<128x128xf32>
    %331 = arith.subf %330, %320 : vector<128x128xf32>
    %332 = arith.mulf %331, %320 : vector<128x128xf32>
    %333 = math.exp %332 : vector<128x128xf32>
    %334 = arith.mulf %329, %333 : vector<128x128xf32>
    %cst_116 = arith.constant 0.000000e+00 : f32
    %335 = vector.broadcast %cst_116 : f32 to vector<128x1xf32>
    %336 = arith.subf %335, %181 : vector<128x1xf32>
    %337 = vector.broadcast %336 : vector<128x1xf32> to vector<128x128xf32>
    %338 = vector.broadcast %187 : vector<1x128xf32> to vector<128x128xf32>
    %339 = arith.mulf %337, %338 : vector<128x128xf32>
    %cst_117 = arith.constant 0.000000e+00 : f32
    %340 = vector.broadcast %cst_117 : f32 to vector<128x128xf32>
    %341 = arith.subf %340, %324 : vector<128x128xf32>
    %342 = arith.mulf %341, %324 : vector<128x128xf32>
    %343 = math.exp %342 : vector<128x128xf32>
    %344 = arith.mulf %339, %343 : vector<128x128xf32>
    %345 = arith.addf %334, %344 : vector<128x128xf32>
    %346 = arith.mulf %345, %33 : vector<128x128xf32>
    %cst_118 = arith.constant 4.500000e+00 : f32
    %347 = vector.broadcast %cst_118 : f32 to vector<128x1xf32>
    %348 = arith.subf %347, %55 : vector<128x1xf32>
    %349 = arith.mulf %348, %189 : vector<128x1xf32>
    %cst_119 = arith.constant 4.500000e+00 : f32
    %350 = vector.broadcast %cst_119 : f32 to vector<1x128xf32>
    %351 = arith.subf %350, %57 : vector<1x128xf32>
    %352 = arith.mulf %351, %191 : vector<1x128xf32>
    %cst_120 = arith.constant 0.000000e+00 : f32
    %353 = vector.broadcast %cst_120 : f32 to vector<1x128xf32>
    %354 = arith.subf %353, %183 : vector<1x128xf32>
    %355 = vector.broadcast %354 : vector<1x128xf32> to vector<128x128xf32>
    %356 = vector.broadcast %185 : vector<128x1xf32> to vector<128x128xf32>
    %357 = arith.mulf %355, %356 : vector<128x128xf32>
    %cst_121 = arith.constant 0.000000e+00 : f32
    %358 = vector.broadcast %cst_121 : f32 to vector<128x1xf32>
    %359 = arith.subf %358, %349 : vector<128x1xf32>
    %360 = arith.mulf %359, %349 : vector<128x1xf32>
    %361 = math.exp %360 : vector<128x1xf32>
    %362 = vector.broadcast %361 : vector<128x1xf32> to vector<128x128xf32>
    %363 = arith.mulf %357, %362 : vector<128x128xf32>
    %cst_122 = arith.constant 0.000000e+00 : f32
    %364 = vector.broadcast %cst_122 : f32 to vector<128x1xf32>
    %365 = arith.subf %364, %181 : vector<128x1xf32>
    %366 = vector.broadcast %365 : vector<128x1xf32> to vector<128x128xf32>
    %367 = vector.broadcast %187 : vector<1x128xf32> to vector<128x128xf32>
    %368 = arith.mulf %366, %367 : vector<128x128xf32>
    %cst_123 = arith.constant 0.000000e+00 : f32
    %369 = vector.broadcast %cst_123 : f32 to vector<1x128xf32>
    %370 = arith.subf %369, %352 : vector<1x128xf32>
    %371 = arith.mulf %370, %352 : vector<1x128xf32>
    %372 = math.exp %371 : vector<1x128xf32>
    %373 = vector.broadcast %372 : vector<1x128xf32> to vector<128x128xf32>
    %374 = arith.mulf %368, %373 : vector<128x128xf32>
    %375 = arith.addf %363, %374 : vector<128x128xf32>
    %cst_124 = arith.constant 0.0493827164 : f32
    %376 = vector.broadcast %cst_124 : f32 to vector<128x128xf32>
    %377 = arith.mulf %375, %376 : vector<128x128xf32>
    %378 = vector.broadcast %349 : vector<128x1xf32> to vector<128x128xf32>
    %379 = arith.mulf %363, %378 : vector<128x128xf32>
    %380 = vector.broadcast %189 : vector<128x1xf32> to vector<128x128xf32>
    %381 = arith.mulf %379, %380 : vector<128x128xf32>
    %382 = vector.broadcast %352 : vector<1x128xf32> to vector<128x128xf32>
    %383 = arith.mulf %374, %382 : vector<128x128xf32>
    %384 = vector.broadcast %191 : vector<1x128xf32> to vector<128x128xf32>
    %385 = arith.mulf %383, %384 : vector<128x128xf32>
    %386 = arith.addf %381, %385 : vector<128x128xf32>
    %cst_125 = arith.constant -0.0987654328 : f32
    %387 = vector.broadcast %cst_125 : f32 to vector<128x128xf32>
    %388 = arith.mulf %387, %386 : vector<128x128xf32>
    %389 = arith.addf %363, %374 : vector<128x128xf32>
    %cst_126 = arith.constant -0.0219478738 : f32
    %390 = vector.broadcast %cst_126 : f32 to vector<128x128xf32>
    %391 = arith.mulf %390, %389 : vector<128x128xf32>
    %392 = arith.addf %388, %391 : vector<128x128xf32>
    %cst_127 = arith.constant 4.500000e+00 : f32
    %393 = vector.broadcast %cst_127 : f32 to vector<128x128xf32>
    %394 = arith.subf %32, %393 : vector<128x128xf32>
    %cst_128 = arith.constant 0.666666686 : f32
    %395 = vector.broadcast %cst_128 : f32 to vector<128x128xf32>
    %396 = arith.mulf %394, %395 : vector<128x128xf32>
    %397 = arith.mulf %396, %396 : vector<128x128xf32>
    %398 = arith.mulf %397, %396 : vector<128x128xf32>
    %cst_129 = arith.constant 2.000000e+00 : f32
    %399 = vector.broadcast %cst_129 : f32 to vector<128x128xf32>
    %400 = arith.mulf %399, %398 : vector<128x128xf32>
    %cst_130 = arith.constant 3.000000e+00 : f32
    %401 = vector.broadcast %cst_130 : f32 to vector<128x128xf32>
    %402 = arith.mulf %401, %397 : vector<128x128xf32>
    %403 = arith.subf %400, %402 : vector<128x128xf32>
    %cst_131 = arith.constant 1.000000e+00 : f32
    %404 = vector.broadcast %cst_131 : f32 to vector<128x128xf32>
    %405 = arith.addf %403, %404 : vector<128x128xf32>
    %406 = arith.mulf %405, %377 : vector<128x128xf32>
    %cst_132 = arith.constant 2.000000e+00 : f32
    %407 = vector.broadcast %cst_132 : f32 to vector<128x128xf32>
    %408 = arith.mulf %407, %397 : vector<128x128xf32>
    %409 = arith.subf %398, %408 : vector<128x128xf32>
    %410 = arith.addf %409, %396 : vector<128x128xf32>
    %cst_133 = arith.constant 1.500000e+00 : f32
    %411 = vector.broadcast %cst_133 : f32 to vector<128x128xf32>
    %412 = arith.mulf %410, %411 : vector<128x128xf32>
    %413 = arith.mulf %412, %392 : vector<128x128xf32>
    %414 = arith.addf %406, %413 : vector<128x128xf32>
    %415 = arith.cmpf olt, %32, %232 : vector<128x128xf32>
    %416 = arith.cmpf olt, %32, %236 : vector<128x128xf32>
    %cst_134 = arith.constant 4.500000e+00 : f32
    %417 = vector.broadcast %cst_134 : f32 to vector<128x128xf32>
    %418 = arith.cmpf olt, %32, %417 : vector<128x128xf32>
    %cst_135 = arith.constant 6.000000e+00 : f32
    %419 = vector.broadcast %cst_135 : f32 to vector<128x128xf32>
    %420 = arith.cmpf olt, %32, %419 : vector<128x128xf32>
    %cst_136 = arith.constant 0.000000e+00 : f32
    %421 = vector.broadcast %cst_136 : f32 to vector<128x128xf32>
    %422 = arith.select %420, %414, %421 : vector<128x128xi1>, vector<128x128xf32>
    %423 = arith.select %418, %346, %422 : vector<128x128xi1>, vector<128x128xf32>
    %424 = arith.select %416, %316, %423 : vector<128x128xi1>, vector<128x128xf32>
    %425 = arith.select %415, %227, %424 : vector<128x128xi1>, vector<128x128xf32>
    %c0_137 = arith.constant 0 : index
    %c0_138 = arith.constant 0 : index
    %426 = vector.load %arg8[%c0_137, %c0_138] : memref<128x128xf32, #tpu.memory_space<vmem>>, vector<128x128xf32>
    %427 = arith.mulf %179, %53 : vector<128x128xf32>
    %428 = arith.addf %426, %427 : vector<128x128xf32>
    %c0_139 = arith.constant 0 : index
    %c0_140 = arith.constant 0 : index
    %429 = vector.load %arg8[%c0_139, %c0_140] : memref<128x128xf32, #tpu.memory_space<vmem>>, vector<128x128xf32>
    tpu.vector_store %arg8[%c0_139, %c0_140], %428 {strides = array<i32>} : memref<128x128xf32, #tpu.memory_space<vmem>>, vector<128x128xf32>,
    %c0_141 = arith.constant 0 : index
    %c0_142 = arith.constant 0 : index
    %430 = vector.load %arg9[%c0_141, %c0_142] : memref<128x128xf32, #tpu.memory_space<vmem>>, vector<128x128xf32>
    %431 = arith.mulf %425, %53 : vector<128x128xf32>
    %432 = arith.addf %430, %431 : vector<128x128xf32>
    %c0_143 = arith.constant 0 : index
    %c0_144 = arith.constant 0 : index
    %433 = vector.load %arg9[%c0_143, %c0_144] : memref<128x128xf32, #tpu.memory_space<vmem>>, vector<128x128xf32>
    tpu.vector_store %arg9[%c0_143, %c0_144], %432 {strides = array<i32>} : memref<128x128xf32, #tpu.memory_space<vmem>>, vector<128x128xf32>,
    %c0_i32_145 = arith.constant 0 : i32
    %434 = arith.cmpi eq, %arg1, %c0_i32_145 : i32
    %435 = arith.extui %434 : i1 to i32
    %c0_i32_146 = arith.constant 0 : i32
    %436 = arith.cmpi ne, %435, %c0_i32_146 : i32
    scf.if %436 {
      %c0_147 = arith.constant 0 : index
      %c0_148 = arith.constant 0 : index
      %437 = vector.load %arg8[%c0_147, %c0_148] : memref<128x128xf32, #tpu.memory_space<vmem>>, vector<128x128xf32>
      %438 = vector.shape_cast %437 : vector<128x128xf32> to vector<1x128x128xf32>
      %cst_149 = arith.constant dense<0.000000e+00> : vector<1xf32>
      %439 = vector.multi_reduction <add>, %438, %cst_149 [1, 2] : vector<1x128x128xf32> to vector<1xf32>
      %440 = vector.shape_cast %439 : vector<1xf32> to vector<1x1x1xf32>
      %441 = vector.extract %440[0, 0, 0] : f32 from vector<1x1x1xf32>
      %c0_150 = arith.constant 0 : index
      %c0_151 = arith.constant 0 : index
      %442 = vector.load %arg9[%c0_150, %c0_151] : memref<128x128xf32, #tpu.memory_space<vmem>>, vector<128x128xf32>
      %443 = vector.shape_cast %442 : vector<128x128xf32> to vector<1x128x128xf32>
      %cst_152 = arith.constant dense<0.000000e+00> : vector<1xf32>
      %444 = vector.multi_reduction <add>, %443, %cst_152 [1, 2] : vector<1x128x128xf32> to vector<1xf32>
      %445 = vector.shape_cast %444 : vector<1xf32> to vector<1x1x1xf32>
      %446 = vector.extract %445[0, 0, 0] : f32 from vector<1x1x1xf32>
      %447 = tpu.iota {dimensions = array<i32: 0>} : vector<8x128xi32>
      %448 = tpu.iota {dimensions = array<i32: 1>} : vector<8x128xi32>
      %c0_i32_153 = arith.constant 0 : i32
      %449 = vector.broadcast %c0_i32_153 : i32 to vector<8x128xi32>
      %450 = arith.cmpi eq, %447, %449 : vector<8x128xi32>
      %c0_i32_154 = arith.constant 0 : i32
      %451 = vector.broadcast %c0_i32_154 : i32 to vector<8x128xi32>
      %452 = arith.cmpi eq, %448, %451 : vector<8x128xi32>
      %453 = arith.andi %450, %452 : vector<8x128xi1>
      %c0_i32_155 = arith.constant 0 : i32
      %454 = vector.broadcast %c0_i32_155 : i32 to vector<8x128xi32>
      %455 = arith.cmpi eq, %447, %454 : vector<8x128xi32>
      %c1_i32 = arith.constant 1 : i32
      %456 = vector.broadcast %c1_i32 : i32 to vector<8x128xi32>
      %457 = arith.cmpi eq, %448, %456 : vector<8x128xi32>
      %458 = arith.andi %455, %457 : vector<8x128xi1>
      %cst_156 = arith.constant 0.000000e+00 : f32
      %459 = vector.broadcast %446 : f32 to vector<8x128xf32>
      %460 = vector.broadcast %cst_156 : f32 to vector<8x128xf32>
      %461 = arith.select %458, %459, %460 : vector<8x128xi1>, vector<8x128xf32>
      %462 = vector.broadcast %441 : f32 to vector<8x128xf32>
      %463 = arith.select %453, %462, %461 : vector<8x128xi1>, vector<8x128xf32>
      %c0_157 = arith.constant 0 : index
      %c0_158 = arith.constant 0 : index
      %c0_159 = arith.constant 0 : index
      %464 = vector.load %arg7[%c0_157, %c0_158, %c0_159] : memref<1x8x128xf32, #tpu.memory_space<vmem>>, vector<1x8x128xf32>
      %465 = vector.shape_cast %464 : vector<1x8x128xf32> to vector<8x128xf32>
      %466 = vector.shape_cast %463 : vector<8x128xf32> to vector<1x8x128xf32>
      tpu.vector_store %arg7[%c0_157, %c0_158, %c0_159], %466 {strides = array<i32>} : memref<1x8x128xf32, #tpu.memory_space<vmem>>, vector<1x8x128xf32>,
    } else {
    }
    return
  }
  func.func @transform_0(%arg0: i32, %arg1: i32, %arg2: memref<1xi32, #tpu.memory_space<smem>>, %arg3: memref<1xi32, #tpu.memory_space<smem>>) -> (i32, i32, i32) {
    %0 = arith.index_cast %arg1 : i32 to index
    %1 = memref.load %arg3[%0] : memref<1xi32, #tpu.memory_space<smem>>
    %c0_i32 = arith.constant 0 : i32
    %c0_i32_0 = arith.constant 0 : i32
    return %arg0, %c0_i32, %1 : i32, i32, i32
  }
  func.func @transform_1(%arg0: i32, %arg1: i32, %arg2: memref<1xi32, #tpu.memory_space<smem>>, %arg3: memref<1xi32, #tpu.memory_space<smem>>) -> (i32, i32, i32) {
    %0 = arith.index_cast %arg1 : i32 to index
    %1 = memref.load %arg2[%0] : memref<1xi32, #tpu.memory_space<smem>>
    %c0_i32 = arith.constant 0 : i32
    %c0_i32_0 = arith.constant 0 : i32
    return %arg0, %1, %c0_i32 : i32, i32, i32
  }
  func.func @transform_2(%arg0: i32, %arg1: i32, %arg2: memref<1xi32, #tpu.memory_space<smem>>, %arg3: memref<1xi32, #tpu.memory_space<smem>>) -> (i32, i32, i32) {
    %0 = arith.index_cast %arg1 : i32 to index
    %1 = memref.load %arg2[%0] : memref<1xi32, #tpu.memory_space<smem>>
    %2 = arith.index_cast %arg1 : i32 to index
    %3 = memref.load %arg3[%2] : memref<1xi32, #tpu.memory_space<smem>>
    %c0_i32 = arith.constant 0 : i32
    return %arg0, %1, %3 : i32, i32, i32
  }
  func.func @transform_3(%arg0: i32, %arg1: i32, %arg2: memref<1xi32, #tpu.memory_space<smem>>, %arg3: memref<1xi32, #tpu.memory_space<smem>>) -> (i32, i32, i32) {
    %c0_i32 = arith.constant 0 : i32
    %c0_i32_0 = arith.constant 0 : i32
    %c0_i32_1 = arith.constant 0 : i32
    return %arg0, %c0_i32, %c0_i32_0 : i32, i32, i32
  }
}

</mosaic_0001>

<llo_original>
// kernel: tpu_custom_call.1
$region0: #{tpu_custom_call.1}
  #allocation0 [shape = 'u32[]', space=smem, size = 0x4, offset = 0x4, fixed_abs, tag = 'smem constant byte address 0x4 - core index']
  #allocation1 [shape = 'u32[144,128]{1,0:T(1,128)}', space=vmem, size = 0x12000, scoped, tag = 'internal scratch']
  #allocation2 [shape = 'f32[128,128]{1,0:T(8,128)}', space=vmem, size = 0x10000, scoped, tag = 'scratch operand']
  #allocation3 [shape = 'f32[128,128]{1,0:T(8,128)}', space=vmem, size = 0x10000, scoped, tag = 'scratch operand']
  #allocation4 [shape = 's32[1]{0}', space=sflag, size = 0x4, scoped, tag = 'scoped memory for tpu_custom_call.1']
  #allocation5 [shape = 's32[1]{0:T(128)S(6)}', space=smem, size = 0x200, scoped, tag = 'prefetched SMEM operand 0']
  #allocation6 [shape = 's32[1]{0:T(128)S(6)}', space=smem, size = 0x200, scoped, tag = 'prefetched SMEM operand 1']
  %s0 = inlined_call_operand.<no memory space> [shape: s32[1], index: 0, kind: input, shape index: {}]
  %s1 = inlined_call_operand.<no memory space> [shape: s32[1], index: 1, kind: input, shape index: {}]
  %s2 = inlined_call_operand.vmem [shape: f32[2,12,128], index: 2, kind: input, shape index: {}]
  %s3 = inlined_call_operand.vmem [shape: f32[2,128,12], index: 3, kind: input, shape index: {}]
  %s4 = inlined_call_operand.vmem [shape: s8[2,128,128], index: 4, kind: input, shape index: {}]
  %s5 = inlined_call_operand.hbm [shape: f32[2,8,128], index: 5, kind: output, shape index: {}]
  %s6 = sld [smem:[#allocation0]]
  $region53: #{tpu_custom_call.1} parent=0
    _
  %s8 = ssub.s32 1, %s6
  %s9 = scalar_select 0, %s8, %s6
  %10 = sst [smem:[#allocation5]] %s0
  %11 = sst [smem:[#allocation6]] %s1
  $region1: #{tpu_custom_call.1} parent=0
    #allocation7 [shape = 'u8[8192]{0}', space=vmem, size = 0x2000, scoped, tag = 'output window, operand 0']
    #allocation8 [shape = 's32[2]{0}', space=sflag, size = 0x8, scoped, tag = 'scoped memory for tpu_custom_call.1']
    %12 = vsyncpa [#allocation8], 0
    %s13 = scalar_lea.sflag [#allocation8], 1
    %14 = vsyncpa %s13, 0
    loop: start=0, step=1, limit=4
    $region2: #{tpu_custom_call.1} parent=1 // loop_pre_header
      _
    $region3: #{tpu_custom_call.1} parent=1 // loop_header
      %s16 = sphi 0, %s20
      %p17 = scmp.ge.s32.totalorder %s16, 4
      %s23 = sphi 0, %s35
      %s24 = sphi 0, %s31
      %s25 = sphi 0, %s23
      %s26 = sphi 0, %s24
      %s27 = sphi 0, %s25
      %s28 = sphi 0, %s26
      %s42 = sphi 0, %s44
      %s45 = sphi 0, %s42
      %s46 = sphi 0, %s45
      %s62 = sphi 0, %s46
      %s72 = sphi 0, %s74
      %s75 = sphi 0, %s72
      %s76 = sphi 0, %s75
      %s92 = sphi 0, %s76
      %s106 = sphi 0, %s108
      %s109 = sphi 0, %s106
      %s110 = sphi 0, %s109
      %s126 = sphi 0, %s110
      %s132 = sphi 0, %s134
      %s135 = sphi 0, %s132
      %s136 = sphi 0, %s135
      %s152 = sphi 0, %s136
    $region4: #{tpu_custom_call.1} parent=1 // loop_header_branch
      %19 = sbr.rel (%p17) target = $region8
    $region5: #{tpu_custom_call.1} parent=1 // loop_body
      %s21 = ssub.s32 %s16, 1
      %s22 = ssub.s32 %s16, 2
      %s29 = sadd.s32 1, %s24
      %p30 = scmp.ge.s32.totalorder %s29, 1
      %s31 = scalar_select %p30, 0, %s29
      %s32 = sadd.s32 1, %s23
      %s33 = scalar_select %p30, %s32, %s23
      %p34 = scmp.ge.s32.totalorder %s33, 2
      %s35 = scalar_select %p34, 0, %s33
      %s36 = sld [smem:[#allocation6 + %s24]]
      %s37 = sld [smem:[#allocation6 + %s31]]
      %s38 = ssub.s32 %s23, %s35
      %s39 = ssub.s32 %s36, %s37
      %s40 = sor.u32 %s38, %s39
      %p41 = scmp.eq.s32.totalorder %s40, 0
      %s43 = sadd.s32 %s42, 1
      %s44 = scalar_select %p41, %s42, %s43
      %p47 = pneg %p41
      %p48 = scmp.eq.s32.totalorder %s16, 1
      %p49 = por %p47, %p48
      %p50 = scmp.ne.s32.totalorder %s42, %s45
      %p51 = scmp.eq.s32.totalorder %s16, 0
      %p52 = por %p50, %p51
      %p53 = scmp.ne.s32.totalorder %s42, %s45
      %p54 = scmp.eq.s32.totalorder %s21, 1
      %p55 = por %p53, %p54
      %p56 = scmp.ne.s32.totalorder %s45, %s46
      %p57 = scmp.eq.s32.totalorder %s21, 0
      %p58 = por %p56, %p57
      %p59 = scmp.ne.s32.totalorder %s45, %s46
      %p60 = scmp.eq.s32.totalorder %s22, 1
      %p61 = por %p59, %p60
      %p63 = scmp.ne.s32.totalorder %s46, %s62
      %p64 = scmp.eq.s32.totalorder %s22, 0
      %p65 = por %p63, %p64
      %s66 = sld [smem:[#allocation5 + %s24]]
      %s67 = sld [smem:[#allocation5 + %s31]]
      %s68 = ssub.s32 %s23, %s35
      %s69 = ssub.s32 %s66, %s67
      %s70 = sor.u32 %s68, %s69
      %p71 = scmp.eq.s32.totalorder %s70, 0
      %s73 = sadd.s32 %s72, 1
      %s74 = scalar_select %p71, %s72, %s73
      %p77 = pneg %p71
      %p78 = scmp.eq.s32.totalorder %s16, 1
      %p79 = por %p77, %p78
      %p80 = scmp.ne.s32.totalorder %s72, %s75
      %p81 = scmp.eq.s32.totalorder %s16, 0
      %p82 = por %p80, %p81
      %p83 = scmp.ne.s32.totalorder %s72, %s75
      %p84 = scmp.eq.s32.totalorder %s21, 1
      %p85 = por %p83, %p84
      %p86 = scmp.ne.s32.totalorder %s75, %s76
      %p87 = scmp.eq.s32.totalorder %s21, 0
      %p88 = por %p86, %p87
      %p89 = scmp.ne.s32.totalorder %s75, %s76
      %p90 = scmp.eq.s32.totalorder %s22, 1
      %p91 = por %p89, %p90
      %p93 = scmp.ne.s32.totalorder %s76, %s92
      %p94 = scmp.eq.s32.totalorder %s22, 0
      %p95 = por %p93, %p94
      %s96 = sld [smem:[#allocation5 + %s24]]
      %s97 = sld [smem:[#allocation6 + %s24]]
      %s98 = sld [smem:[#allocation5 + %s31]]
      %s99 = sld [smem:[#allocation6 + %s31]]
      %s100 = ssub.s32 %s23, %s35
      %s101 = ssub.s32 %s96, %s98
      %s102 = sor.u32 %s100, %s101
      %s103 = ssub.s32 %s97, %s99
      %s104 = sor.u32 %s102, %s103
      %p105 = scmp.eq.s32.totalorder %s104, 0
      %s107 = sadd.s32 %s106, 1
      %s108 = scalar_select %p105, %s106, %s107
      %p111 = pneg %p105
      %p112 = scmp.eq.s32.totalorder %s16, 1
      %p113 = por %p111, %p112
      %p114 = scmp.ne.s32.totalorder %s106, %s109
      %p115 = scmp.eq.s32.totalorder %s16, 0
      %p116 = por %p114, %p115
      %p117 = scmp.ne.s32.totalorder %s106, %s109
      %p118 = scmp.eq.s32.totalorder %s21, 1
      %p119 = por %p117, %p118
      %p120 = scmp.ne.s32.totalorder %s109, %s110
      %p121 = scmp.eq.s32.totalorder %s21, 0
      %p122 = por %p120, %p121
      %p123 = scmp.ne.s32.totalorder %s109, %s110
      %p124 = scmp.eq.s32.totalorder %s22, 1
      %p125 = por %p123, %p124
      %p127 = scmp.ne.s32.totalorder %s110, %s126
      %p128 = scmp.eq.s32.totalorder %s22, 0
      %p129 = por %p127, %p128
      %s130 = ssub.s32 %s23, %s35
      %p131 = scmp.eq.s32.totalorder %s130, 0
      %s133 = sadd.s32 %s132, 1
      %s134 = scalar_select %p131, %s132, %s133
      %p137 = pneg %p131
      %p138 = scmp.eq.s32.totalorder %s16, 1
      %p139 = por %p137, %p138
      %p140 = scmp.ne.s32.totalorder %s132, %s135
      %p141 = scmp.eq.s32.totalorder %s16, 0
      %p142 = por %p140, %p141
      %p143 = scmp.ne.s32.totalorder %s132, %s135
      %p144 = scmp.eq.s32.totalorder %s21, 1
      %p145 = por %p143, %p144
      %p146 = scmp.ne.s32.totalorder %s135, %s136
      %p147 = scmp.eq.s32.totalorder %s21, 0
      %p148 = por %p146, %p147
      %p149 = scmp.ne.s32.totalorder %s135, %s136
      %p150 = scmp.eq.s32.totalorder %s22, 1
      %p151 = por %p149, %p150
      %p153 = scmp.ne.s32.totalorder %s136, %s152
      %p154 = scmp.eq.s32.totalorder %s22, 0
      %p155 = por %p153, %p154
      %p156 = scmp.le.s32.totalorder 1, %s16
      %p157 = scmp.lt.s32.totalorder %s16, 3
      %p158 = pnand %p156, %p157
      %p159 = pneg %p158
      // Predicated region
      $region9: #{tpu_custom_call.1} parent=5 // pred_check
        _
      $region10: #{tpu_custom_call.1} parent=5 // pred_check_branch
        %161 = sbr.rel (%p158) target = $region12
      $region11: #{tpu_custom_call.1} parent=5 // pred_region
        %s162 = ssub.s32 %s16, 1
      $region12: #{tpu_custom_call.1} parent=5 // pred_fallthru
        _
      %p163 = scmp.lt.s32.totalorder %s16, 2
      // Predicated region
      $region13: #{tpu_custom_call.1} parent=5 // pred_check
        %p164 = pneg %p163
      $region14: #{tpu_custom_call.1} parent=5 // pred_check_branch
        %166 = sbr.rel (%p164) target = $region16
      $region15: #{tpu_custom_call.1} parent=5 // pred_region
        // Predicated region
        $region17: #{tpu_custom_call.1} parent=15 // pred_check
          %p167 = pneg %p52
        $region18: #{tpu_custom_call.1} parent=15 // pred_check_branch
          %169 = sbr.rel (%p167) target = $region20
        $region19: #{tpu_custom_call.1} parent=15 // pred_region
          %s170 = sld [smem:[#allocation6 + %s24]]
          %p171 = scmp.lt.s32.totalorder %s23, 1
          %s172 = scalar_select %p171, %s23, 1
          %p173 = scmp.lt.s32.totalorder %s170, 0
          %s174 = scalar_select %p173, %s170, 0
          %s175 = smul.addr %s172, 2
          %s176 = sadd.s32 %s174, %s175
          %s177 = smul.addr %s176, 8
          %s178 = scalar_lea.vmem %s2, %s177
          %s179 = sld [smem:[#allocation6 + %s24]]
        $region20: #{tpu_custom_call.1} parent=15 // pred_fallthru
          _
        // Predicated region
        $region21: #{tpu_custom_call.1} parent=15 // pred_check
          %p180 = pneg %p82
        $region22: #{tpu_custom_call.1} parent=15 // pred_check_branch
          %182 = sbr.rel (%p180) target = $region24
        $region23: #{tpu_custom_call.1} parent=15 // pred_region
          %s183 = sld [smem:[#allocation5 + %s24]]
          %s184 = smul.u32 16, %s183
          %p185 = scmp.lt.s32.totalorder %s23, 1
          %s186 = scalar_select %p185, %s23, 1
          %p187 = scmp.lt.s32.totalorder %s184, 15
          %s188 = scalar_select %p187, %s184, 15
          %s189 = smul.addr %s186, 16
          %s190 = sadd.s32 %s188, %s189
          %s191 = smul.addr %s190, 8
          %s192 = scalar_lea.vmem %s3, %s191
          %s193 = sld [smem:[#allocation5 + %s24]]
          %s194 = smul.u32 16, %s193
        $region24: #{tpu_custom_call.1} parent=15 // pred_fallthru
          _
        // Predicated region
        $region25: #{tpu_custom_call.1} parent=15 // pred_check
          %p195 = pneg %p116
        $region26: #{tpu_custom_call.1} parent=15 // pred_check_branch
          %197 = sbr.rel (%p195) target = $region28
        $region27: #{tpu_custom_call.1} parent=15 // pred_region
          %s198 = sld [smem:[#allocation5 + %s24]]
          %s199 = sld [smem:[#allocation6 + %s24]]
          %s200 = smul.u32 4, %s198
          %p201 = scmp.lt.s32.totalorder %s23, 1
          %s202 = scalar_select %p201, %s23, 1
          %p203 = scmp.lt.s32.totalorder %s200, 3
          %s204 = scalar_select %p203, %s200, 3
          %p205 = scmp.lt.s32.totalorder %s199, 0
          %s206 = scalar_select %p205, %s199, 0
          %s207 = sadd.s32 %s206, %s204
          %s208 = smul.addr %s202, 4
          %s209 = sadd.s32 %s207, %s208
          %s210 = smul.addr %s209, 8
          %s211 = scalar_lea.vmem %s4, %s210
          %s212 = sld [smem:[#allocation5 + %s24]]
          %s213 = sld [smem:[#allocation6 + %s24]]
          %s214 = smul.u32 4, %s212
        $region28: #{tpu_custom_call.1} parent=15 // pred_fallthru
          _
      $region16: #{tpu_custom_call.1} parent=5 // pred_fallthru
        _
      %p215 = scmp.le.s32.totalorder 1, %s16
      %p216 = scmp.lt.s32.totalorder %s16, 3
      %p217 = pnand %p215, %p216
      %p218 = pneg %p217
      // Predicated region
      $region29: #{tpu_custom_call.1} parent=5 // pred_check
        _
      $region30: #{tpu_custom_call.1} parent=5 // pred_check_branch
        %220 = sbr.rel (%p217) target = $region32
      $region31: #{tpu_custom_call.1} parent=5 // pred_region
        %s221 = ssub.s32 %s16, 1
        %s222 = sld [smem:[#allocation6 + %s26]]
        %p223 = scmp.lt.s32.totalorder %s25, 1
        %s224 = scalar_select %p223, %s25, 1
        %p225 = scmp.lt.s32.totalorder %s222, 0
        %s226 = scalar_select %p225, %s222, 0
        %s227 = smul.addr %s224, 2
        %s228 = sadd.s32 %s226, %s227
        %s229 = smul.addr %s228, 8
        %s230 = scalar_lea.vmem %s2, %s229
        %p231 = pneg %p58
        %p232 = pneg %p55
        %s233 = sld [smem:[#allocation5 + %s26]]
        %s234 = smul.u32 16, %s233
        %p235 = scmp.lt.s32.totalorder %s25, 1
        %s236 = scalar_select %p235, %s25, 1
        %p237 = scmp.lt.s32.totalorder %s234, 15
        %s238 = scalar_select %p237, %s234, 15
        %s239 = smul.addr %s236, 16
        %s240 = sadd.s32 %s238, %s239
        %s241 = smul.addr %s240, 8
        %s242 = scalar_lea.vmem %s3, %s241
        %p243 = pneg %p88
        %p244 = pneg %p85
        %s245 = sld [smem:[#allocation5 + %s26]]
        %s246 = sld [smem:[#allocation6 + %s26]]
        %s247 = smul.u32 4, %s245
        %p248 = scmp.lt.s32.totalorder %s25, 1
        %s249 = scalar_select %p248, %s25, 1
        %p250 = scmp.lt.s32.totalorder %s247, 3
        %s251 = scalar_select %p250, %s247, 3
        %p252 = scmp.lt.s32.totalorder %s246, 0
        %s253 = scalar_select %p252, %s246, 0
        %s254 = sadd.s32 %s253, %s251
        %s255 = smul.addr %s249, 4
        %s256 = sadd.s32 %s254, %s255
        %s257 = smul.addr %s256, 8
        %s258 = scalar_lea.vmem %s4, %s257
        %p259 = pneg %p122
        %p260 = pneg %p119
        %p261 = pneg %p148
        %p262 = pneg %p145
        %s263 = sand.u32 %s135, 1
        %s264 = scalar_lea.sflag [#allocation8], %s263
        %s265 = sand.u32 %s135, 1
        %s266 = smul.addr %s265, 8
        %s267 = scalar_lea.vmem [#allocation7], %s266
        %s268 = sld [smem:[#allocation6 + %s26]]
        %p269 = scmp.lt.s32.totalorder %s25, 1
        %s270 = scalar_select %p269, %s25, 1
        %p271 = scmp.lt.s32.totalorder %s268, 0
        %s272 = scalar_select %p271, %s268, 0
        %s273 = smul.addr %s270, 2
        %s274 = sadd.s32 %s272, %s273
        %s275 = smul.addr %s274, 8
        %s276 = scalar_lea.vmem %s2, %s275
        %s277 = sld [smem:[#allocation6 + %s26]]
        %s278 = sld [smem:[#allocation5 + %s26]]
        %s279 = smul.u32 16, %s278
        %p280 = scmp.lt.s32.totalorder %s25, 1
        %s281 = scalar_select %p280, %s25, 1
        %p282 = scmp.lt.s32.totalorder %s279, 15
        %s283 = scalar_select %p282, %s279, 15
        %s284 = smul.addr %s281, 16
        %s285 = sadd.s32 %s283, %s284
        %s286 = smul.addr %s285, 8
        %s287 = scalar_lea.vmem %s3, %s286
        %s288 = sld [smem:[#allocation5 + %s26]]
        %s289 = smul.u32 16, %s288
        %s290 = sld [smem:[#allocation5 + %s26]]
        %s291 = sld [smem:[#allocation6 + %s26]]
        %s292 = smul.u32 4, %s290
        %p293 = scmp.lt.s32.totalorder %s25, 1
        %s294 = scalar_select %p293, %s25, 1
        %p295 = scmp.lt.s32.totalorder %s292, 3
        %s296 = scalar_select %p295, %s292, 3
        %p297 = scmp.lt.s32.totalorder %s291, 0
        %s298 = scalar_select %p297, %s291, 0
        %s299 = sadd.s32 %s298, %s296
        %s300 = smul.addr %s294, 4
        %s301 = sadd.s32 %s299, %s300
        %s302 = smul.addr %s301, 8
        %s303 = scalar_lea.vmem %s4, %s302
        %s304 = sld [smem:[#allocation5 + %s26]]
        %s305 = sld [smem:[#allocation6 + %s26]]
        %s306 = smul.u32 4, %s304
        %p307 = scmp.eq.s32.totalorder %s26, 0
        // Predicated region
        $region33: #{tpu_custom_call.1} parent=31 // pred_check
          %p308 = pneg %p307
        $region34: #{tpu_custom_call.1} parent=31 // pred_check_branch
          %310 = sbr.rel (%p308) target = $region36
        $region35: #{tpu_custom_call.1} parent=31 // pred_region
          %311 = vst [vmem:[#allocation2] sm:$0xff] 0.0
          %312 = vst [vmem:[#allocation2 + $0x8] sm:$0xff] 0.0
          %313 = vst [vmem:[#allocation2 + $0x10] sm:$0xff] 0.0
          %314 = vst [vmem:[#allocation2 + $0x18] sm:$0xff] 0.0
          %315 = vst [vmem:[#allocation2 + $0x20] sm:$0xff] 0.0
          %316 = vst [vmem:[#allocation2 + $0x28] sm:$0xff] 0.0
          %317 = vst [vmem:[#allocation2 + $0x30] sm:$0xff] 0.0
          %318 = vst [vmem:[#allocation2 + $0x38] sm:$0xff] 0.0
          %319 = vst [vmem:[#allocation2 + $0x40] sm:$0xff] 0.0
          %320 = vst [vmem:[#allocation2 + $0x48] sm:$0xff] 0.0
          %321 = vst [vmem:[#allocation2 + $0x50] sm:$0xff] 0.0
          %322 = vst [vmem:[#allocation2 + $0x58] sm:$0xff] 0.0
          %323 = vst [vmem:[#allocation2 + $0x60] sm:$0xff] 0.0
          %324 = vst [vmem:[#allocation2 + $0x68] sm:$0xff] 0.0
          %325 = vst [vmem:[#allocation2 + $0x70] sm:$0xff] 0.0
          %326 = vst [vmem:[#allocation2 + $0x78] sm:$0xff] 0.0
          %327 = vst [vmem:[#allocation3] sm:$0xff] 0.0
          %328 = vst [vmem:[#allocation3 + $0x8] sm:$0xff] 0.0
          %329 = vst [vmem:[#allocation3 + $0x10] sm:$0xff] 0.0
          %330 = vst [vmem:[#allocation3 + $0x18] sm:$0xff] 0.0
          %331 = vst [vmem:[#allocation3 + $0x20] sm:$0xff] 0.0
          %332 = vst [vmem:[#allocation3 + $0x28] sm:$0xff] 0.0
          %333 = vst [vmem:[#allocation3 + $0x30] sm:$0xff] 0.0
          %334 = vst [vmem:[#allocation3 + $0x38] sm:$0xff] 0.0
          %335 = vst [vmem:[#allocation3 + $0x40] sm:$0xff] 0.0
          %336 = vst [vmem:[#allocation3 + $0x48] sm:$0xff] 0.0
          %337 = vst [vmem:[#allocation3 + $0x50] sm:$0xff] 0.0
          %338 = vst [vmem:[#allocation3 + $0x58] sm:$0xff] 0.0
          %339 = vst [vmem:[#allocation3 + $0x60] sm:$0xff] 0.0
          %340 = vst [vmem:[#allocation3 + $0x68] sm:$0xff] 0.0
          %341 = vst [vmem:[#allocation3 + $0x70] sm:$0xff] 0.0
          %342 = vst [vmem:[#allocation3 + $0x78] sm:$0xff] 0.0
        $region36: #{tpu_custom_call.1} parent=31 // pred_fallthru
          _
        %v343 = vld [vmem:[%s287] sm:$0xff]
        %v344 = vld [vmem:[%s287 + $0x8] sm:$0xff]
        %v345 = vld [vmem:[%s287 + $0x10] sm:$0xff]
        %v346 = vld [vmem:[%s287 + $0x18] sm:$0xff]
        %v347 = vld [vmem:[%s287 + $0x20] sm:$0xff]
        %v348 = vld [vmem:[%s287 + $0x28] sm:$0xff]
        %v349 = vld [vmem:[%s287 + $0x30] sm:$0xff]
        %v350 = vld [vmem:[%s287 + $0x38] sm:$0xff]
        %v351 = vld [vmem:[%s287 + $0x40] sm:$0xff]
        %v352 = vld [vmem:[%s287 + $0x48] sm:$0xff]
        %v353 = vld [vmem:[%s287 + $0x50] sm:$0xff]
        %v354 = vld [vmem:[%s287 + $0x58] sm:$0xff]
        %v355 = vld [vmem:[%s287 + $0x60] sm:$0xff]
        %v356 = vld [vmem:[%s287 + $0x68] sm:$0xff]
        %v357 = vld [vmem:[%s287 + $0x70] sm:$0xff]
        %v358 = vld [vmem:[%s287 + $0x78] sm:$0xff]
        %v359 = vld [vmem:[%s276] sm:$0x1]
        %361 = vset.pattern.permute.xlu0 0
        %362 = vperm.xlu0 %361, %v343
        %v363 = vpop.permute.xlu0 %362
        %366 = vset.pattern.permute.xlu0 0
        %367 = vperm.xlu0 %366, %v344
        %v368 = vpop.permute.xlu0 %367
        %371 = vset.pattern.permute.xlu0 0
        %372 = vperm.xlu0 %371, %v345
        %v373 = vpop.permute.xlu0 %372
        %376 = vset.pattern.permute.xlu0 0
        %377 = vperm.xlu0 %376, %v346
        %v378 = vpop.permute.xlu0 %377
        %381 = vset.pattern.permute.xlu0 0
        %382 = vperm.xlu0 %381, %v347
        %v383 = vpop.permute.xlu0 %382
        %386 = vset.pattern.permute.xlu0 0
        %387 = vperm.xlu0 %386, %v348
        %v388 = vpop.permute.xlu0 %387
        %391 = vset.pattern.permute.xlu0 0
        %392 = vperm.xlu0 %391, %v349
        %v393 = vpop.permute.xlu0 %392
        %396 = vset.pattern.permute.xlu0 0
        %397 = vperm.xlu0 %396, %v350
        %v398 = vpop.permute.xlu0 %397
        %401 = vset.pattern.permute.xlu0 0
        %402 = vperm.xlu0 %401, %v351
        %v403 = vpop.permute.xlu0 %402
        %406 = vset.pattern.permute.xlu0 0
        %407 = vperm.xlu0 %406, %v352
        %v408 = vpop.permute.xlu0 %407
        %411 = vset.pattern.permute.xlu0 0
        %412 = vperm.xlu0 %411, %v353
        %v413 = vpop.permute.xlu0 %412
        %416 = vset.pattern.permute.xlu0 0
        %417 = vperm.xlu0 %416, %v354
        %v418 = vpop.permute.xlu0 %417
        %421 = vset.pattern.permute.xlu0 0
        %422 = vperm.xlu0 %421, %v355
        %v423 = vpop.permute.xlu0 %422
        %426 = vset.pattern.permute.xlu0 0
        %427 = vperm.xlu0 %426, %v356
        %v428 = vpop.permute.xlu0 %427
        %431 = vset.pattern.permute.xlu0 0
        %432 = vperm.xlu0 %431, %v357
        %v433 = vpop.permute.xlu0 %432
        %436 = vset.pattern.permute.xlu0 0
        %437 = vperm.xlu0 %436, %v358
        %v438 = vpop.permute.xlu0 %437
        %v440 = vlaneseq
        %v441 = vshrl.u32 %v440, 7
        %v442 = vsub.s32 0, %v441
        %v443 = vrot.slane %v359, %v442
        %v444 = vsub.f32 %v363, %v443
        %v445 = vsub.f32 %v368, %v443
        %v446 = vsub.f32 %v373, %v443
        %v447 = vsub.f32 %v378, %v443
        %v448 = vsub.f32 %v383, %v443
        %v449 = vsub.f32 %v388, %v443
        %v450 = vsub.f32 %v393, %v443
        %v451 = vsub.f32 %v398, %v443
        %v452 = vsub.f32 %v403, %v443
        %v453 = vsub.f32 %v408, %v443
        %v454 = vsub.f32 %v413, %v443
        %v455 = vsub.f32 %v418, %v443
        %v456 = vsub.f32 %v423, %v443
        %v457 = vsub.f32 %v428, %v443
        %v458 = vsub.f32 %v433, %v443
        %v459 = vsub.f32 %v438, %v443
        %v460 = vld [vmem:[%s276 + $0x1] sm:$0x1]
        %461 = vset.pattern.permute.xlu0 1
        %462 = vperm.xlu0 %461, %v343
        %v463 = vpop.permute.xlu0 %462
        %465 = vset.pattern.permute.xlu0 1
        %466 = vperm.xlu0 %465, %v344
        %v467 = vpop.permute.xlu0 %466
        %469 = vset.pattern.permute.xlu0 1
        %470 = vperm.xlu0 %469, %v345
        %v471 = vpop.permute.xlu0 %470
        %473 = vset.pattern.permute.xlu0 1
        %474 = vperm.xlu0 %473, %v346
        %v475 = vpop.permute.xlu0 %474
        %477 = vset.pattern.permute.xlu0 1
        %478 = vperm.xlu0 %477, %v347
        %v479 = vpop.permute.xlu0 %478
        %481 = vset.pattern.permute.xlu0 1
        %482 = vperm.xlu0 %481, %v348
        %v483 = vpop.permute.xlu0 %482
        %485 = vset.pattern.permute.xlu0 1
        %486 = vperm.xlu0 %485, %v349
        %v487 = vpop.permute.xlu0 %486
        %489 = vset.pattern.permute.xlu0 1
        %490 = vperm.xlu0 %489, %v350
        %v491 = vpop.permute.xlu0 %490
        %493 = vset.pattern.permute.xlu0 1
        %494 = vperm.xlu0 %493, %v351
        %v495 = vpop.permute.xlu0 %494
        %497 = vset.pattern.permute.xlu0 1
        %498 = vperm.xlu0 %497, %v352
        %v499 = vpop.permute.xlu0 %498
        %501 = vset.pattern.permute.xlu0 1
        %502 = vperm.xlu0 %501, %v353
        %v503 = vpop.permute.xlu0 %502
        %505 = vset.pattern.permute.xlu0 1
        %506 = vperm.xlu0 %505, %v354
        %v507 = vpop.permute.xlu0 %506
        %509 = vset.pattern.permute.xlu0 1
        %510 = vperm.xlu0 %509, %v355
        %v511 = vpop.permute.xlu0 %510
        %513 = vset.pattern.permute.xlu0 1
        %514 = vperm.xlu0 %513, %v356
        %v515 = vpop.permute.xlu0 %514
        %517 = vset.pattern.permute.xlu0 1
        %518 = vperm.xlu0 %517, %v357
        %v519 = vpop.permute.xlu0 %518
        %521 = vset.pattern.permute.xlu0 1
        %522 = vperm.xlu0 %521, %v358
        %v523 = vpop.permute.xlu0 %522
        %v525 = vlaneseq
        %v526 = vshrl.u32 %v525, 7
        %v527 = vsub.s32 0, %v526
        %v528 = vrot.slane %v460, %v527
        %v529 = vsub.f32 %v463, %v528
        %v530 = vsub.f32 %v467, %v528
        %v531 = vsub.f32 %v471, %v528
        %v532 = vsub.f32 %v475, %v528
        %v533 = vsub.f32 %v479, %v528
        %v534 = vsub.f32 %v483, %v528
        %v535 = vsub.f32 %v487, %v528
        %v536 = vsub.f32 %v491, %v528
        %v537 = vsub.f32 %v495, %v528
        %v538 = vsub.f32 %v499, %v528
        %v539 = vsub.f32 %v503, %v528
        %v540 = vsub.f32 %v507, %v528
        %v541 = vsub.f32 %v511, %v528
        %v542 = vsub.f32 %v515, %v528
        %v543 = vsub.f32 %v519, %v528
        %v544 = vsub.f32 %v523, %v528
        %v545 = vld [vmem:[%s276 + $0x2] sm:$0x1]
        %546 = vset.pattern.permute.xlu0 2
        %547 = vperm.xlu0 %546, %v343
        %v548 = vpop.permute.xlu0 %547
        %550 = vset.pattern.permute.xlu0 2
        %551 = vperm.xlu0 %550, %v344
        %v552 = vpop.permute.xlu0 %551
        %554 = vset.pattern.permute.xlu0 2
        %555 = vperm.xlu0 %554, %v345
        %v556 = vpop.permute.xlu0 %555
        %558 = vset.pattern.permute.xlu0 2
        %559 = vperm.xlu0 %558, %v346
        %v560 = vpop.permute.xlu0 %559
        %562 = vset.pattern.permute.xlu0 2
        %563 = vperm.xlu0 %562, %v347
        %v564 = vpop.permute.xlu0 %563
        %566 = vset.pattern.permute.xlu0 2
        %567 = vperm.xlu0 %566, %v348
        %v568 = vpop.permute.xlu0 %567
        %570 = vset.pattern.permute.xlu0 2
        %571 = vperm.xlu0 %570, %v349
        %v572 = vpop.permute.xlu0 %571
        %574 = vset.pattern.permute.xlu0 2
        %575 = vperm.xlu0 %574, %v350
        %v576 = vpop.permute.xlu0 %575
        %578 = vset.pattern.permute.xlu0 2
        %579 = vperm.xlu0 %578, %v351
        %v580 = vpop.permute.xlu0 %579
        %582 = vset.pattern.permute.xlu0 2
        %583 = vperm.xlu0 %582, %v352
        %v584 = vpop.permute.xlu0 %583
        %586 = vset.pattern.permute.xlu0 2
        %587 = vperm.xlu0 %586, %v353
        %v588 = vpop.permute.xlu0 %587
        %590 = vset.pattern.permute.xlu0 2
        %591 = vperm.xlu0 %590, %v354
        %v592 = vpop.permute.xlu0 %591
        %594 = vset.pattern.permute.xlu0 2
        %595 = vperm.xlu0 %594, %v355
        %v596 = vpop.permute.xlu0 %595
        %598 = vset.pattern.permute.xlu0 2
        %599 = vperm.xlu0 %598, %v356
        %v600 = vpop.permute.xlu0 %599
        %602 = vset.pattern.permute.xlu0 2
        %603 = vperm.xlu0 %602, %v357
        %v604 = vpop.permute.xlu0 %603
        %606 = vset.pattern.permute.xlu0 2
        %607 = vperm.xlu0 %606, %v358
        %v608 = vpop.permute.xlu0 %607
        %v610 = vlaneseq
        %v611 = vshrl.u32 %v610, 7
        %v612 = vsub.s32 0, %v611
        %v613 = vrot.slane %v545, %v612
        %v614 = vsub.f32 %v548, %v613
        %v615 = vsub.f32 %v552, %v613
        %v616 = vsub.f32 %v556, %v613
        %v617 = vsub.f32 %v560, %v613
        %v618 = vsub.f32 %v564, %v613
        %v619 = vsub.f32 %v568, %v613
        %v620 = vsub.f32 %v572, %v613
        %v621 = vsub.f32 %v576, %v613
        %v622 = vsub.f32 %v580, %v613
        %v623 = vsub.f32 %v584, %v613
        %v624 = vsub.f32 %v588, %v613
        %v625 = vsub.f32 %v592, %v613
        %v626 = vsub.f32 %v596, %v613
        %v627 = vsub.f32 %v600, %v613
        %v628 = vsub.f32 %v604, %v613
        %v629 = vsub.f32 %v608, %v613
        %v630 = vmul.f32 %v444, %v444
        %v631 = vmul.f32 %v445, %v445
        %v632 = vmul.f32 %v446, %v446
        %v633 = vmul.f32 %v447, %v447
        %v634 = vmul.f32 %v448, %v448
        %v635 = vmul.f32 %v449, %v449
        %v636 = vmul.f32 %v450, %v450
        %v637 = vmul.f32 %v451, %v451
        %v638 = vmul.f32 %v452, %v452
        %v639 = vmul.f32 %v453, %v453
        %v640 = vmul.f32 %v454, %v454
        %v641 = vmul.f32 %v455, %v455
        %v642 = vmul.f32 %v456, %v456
        %v643 = vmul.f32 %v457, %v457
        %v644 = vmul.f32 %v458, %v458
        %v645 = vmul.f32 %v459, %v459
        %v646 = vmul.f32 %v529, %v529
        %v647 = vmul.f32 %v530, %v530
        %v648 = vmul.f32 %v531, %v531
        %v649 = vmul.f32 %v532, %v532
        %v650 = vmul.f32 %v533, %v533
        %v651 = vmul.f32 %v534, %v534
        %v652 = vmul.f32 %v535, %v535
        %v653 = vmul.f32 %v536, %v536
        %v654 = vmul.f32 %v537, %v537
        %v655 = vmul.f32 %v538, %v538
        %v656 = vmul.f32 %v539, %v539
        %v657 = vmul.f32 %v540, %v540
        %v658 = vmul.f32 %v541, %v541
        %v659 = vmul.f32 %v542, %v542
        %v660 = vmul.f32 %v543, %v543
        %v661 = vmul.f32 %v544, %v544
        %v662 = vadd.f32 %v630, %v646
        %v663 = vadd.f32 %v631, %v647
        %v664 = vadd.f32 %v632, %v648
        %v665 = vadd.f32 %v633, %v649
        %v666 = vadd.f32 %v634, %v650
        %v667 = vadd.f32 %v635, %v651
        %v668 = vadd.f32 %v636, %v652
        %v669 = vadd.f32 %v637, %v653
        %v670 = vadd.f32 %v638, %v654
        %v671 = vadd.f32 %v639, %v655
        %v672 = vadd.f32 %v640, %v656
        %v673 = vadd.f32 %v641, %v657
        %v674 = vadd.f32 %v642, %v658
        %v675 = vadd.f32 %v643, %v659
        %v676 = vadd.f32 %v644, %v660
        %v677 = vadd.f32 %v645, %v661
        %v678 = vmul.f32 %v614, %v614
        %v679 = vmul.f32 %v615, %v615
        %v680 = vmul.f32 %v616, %v616
        %v681 = vmul.f32 %v617, %v617
        %v682 = vmul.f32 %v618, %v618
        %v683 = vmul.f32 %v619, %v619
        %v684 = vmul.f32 %v620, %v620
        %v685 = vmul.f32 %v621, %v621
        %v686 = vmul.f32 %v622, %v622
        %v687 = vmul.f32 %v623, %v623
        %v688 = vmul.f32 %v624, %v624
        %v689 = vmul.f32 %v625, %v625
        %v690 = vmul.f32 %v626, %v626
        %v691 = vmul.f32 %v627, %v627
        %v692 = vmul.f32 %v628, %v628
        %v693 = vmul.f32 %v629, %v629
        %v694 = vadd.f32 %v662, %v678
        %v695 = vadd.f32 %v663, %v679
        %v696 = vadd.f32 %v664, %v680
        %v697 = vadd.f32 %v665, %v681
        %v698 = vadd.f32 %v666, %v682
        %v699 = vadd.f32 %v667, %v683
        %v700 = vadd.f32 %v668, %v684
        %v701 = vadd.f32 %v669, %v685
        %v702 = vadd.f32 %v670, %v686
        %v703 = vadd.f32 %v671, %v687
        %v704 = vadd.f32 %v672, %v688
        %v705 = vadd.f32 %v673, %v689
        %v706 = vadd.f32 %v674, %v690
        %v707 = vadd.f32 %v675, %v691
        %v708 = vadd.f32 %v676, %v692
        %v709 = vadd.f32 %v677, %v693
        %v710 = vmax.f32 %v694, 1e-12
        %v711 = vmax.f32 %v695, 1e-12
        %v712 = vmax.f32 %v696, 1e-12
        %v713 = vmax.f32 %v697, 1e-12
        %v714 = vmax.f32 %v698, 1e-12
        %v715 = vmax.f32 %v699, 1e-12
        %v716 = vmax.f32 %v700, 1e-12
        %v717 = vmax.f32 %v701, 1e-12
        %v718 = vmax.f32 %v702, 1e-12
        %v719 = vmax.f32 %v703, 1e-12
        %v720 = vmax.f32 %v704, 1e-12
        %v721 = vmax.f32 %v705, 1e-12
        %v722 = vmax.f32 %v706, 1e-12
        %v723 = vmax.f32 %v707, 1e-12
        %v724 = vmax.f32 %v708, 1e-12
        %v725 = vmax.f32 %v709, 1e-12
        %v726 = vrsqrt.pop %v710
        %v727 = vrsqrt.pop %v711
        %v728 = vrsqrt.pop %v712
        %v729 = vrsqrt.pop %v713
        %v730 = vrsqrt.pop %v714
        %v731 = vrsqrt.pop %v715
        %v732 = vrsqrt.pop %v716
        %v733 = vrsqrt.pop %v717
        %v734 = vrsqrt.pop %v718
        %v735 = vrsqrt.pop %v719
        %v736 = vrsqrt.pop %v720
        %v737 = vrsqrt.pop %v721
        %v738 = vrsqrt.pop %v722
        %v739 = vrsqrt.pop %v723
        %v740 = vrsqrt.pop %v724
        %v741 = vrsqrt.pop %v725
        %v742 = vmul.f32 %v694, %v726
        %v743 = vmul.f32 %v695, %v727
        %v744 = vmul.f32 %v696, %v728
        %v745 = vmul.f32 %v697, %v729
        %v746 = vmul.f32 %v698, %v730
        %v747 = vmul.f32 %v699, %v731
        %v748 = vmul.f32 %v700, %v732
        %v749 = vmul.f32 %v701, %v733
        %v750 = vmul.f32 %v702, %v734
        %v751 = vmul.f32 %v703, %v735
        %v752 = vmul.f32 %v704, %v736
        %v753 = vmul.f32 %v705, %v737
        %v754 = vmul.f32 %v706, %v738
        %v755 = vmul.f32 %v707, %v739
        %v756 = vmul.f32 %v708, %v740
        %v757 = vmul.f32 %v709, %v741
        %v758 = vmul.f32 %v726, %v726
        %v759 = vmul.f32 %v727, %v727
        %v760 = vmul.f32 %v728, %v728
        %v761 = vmul.f32 %v729, %v729
        %v762 = vmul.f32 %v730, %v730
        %v763 = vmul.f32 %v731, %v731
        %v764 = vmul.f32 %v732, %v732
        %v765 = vmul.f32 %v733, %v733
        %v766 = vmul.f32 %v734, %v734
        %v767 = vmul.f32 %v735, %v735
        %v768 = vmul.f32 %v736, %v736
        %v769 = vmul.f32 %v737, %v737
        %v770 = vmul.f32 %v738, %v738
        %v771 = vmul.f32 %v739, %v739
        %v772 = vmul.f32 %v740, %v740
        %v773 = vmul.f32 %v741, %v741
        %v774 = vld [vmem:[%s303] sm:$0xff]
        %v775 = vld [vmem:[%s303 + $0x8] sm:$0xff]
        %v776 = vld [vmem:[%s303 + $0x10] sm:$0xff]
        %v777 = vld [vmem:[%s303 + $0x18] sm:$0xff]
        %v778 = vunpack.c.0.s8 %v774
        %v779 = vunpack.c.1.s8 %v774
        %v780 = vunpack.c.2.s8 %v774
        %v781 = vunpack.c.3.s8 %v774
        %v782 = vunpack.c.0.s8 %v775
        %v783 = vunpack.c.1.s8 %v775
        %v784 = vunpack.c.2.s8 %v775
        %v785 = vunpack.c.3.s8 %v775
        %v786 = vunpack.c.0.s8 %v776
        %v787 = vunpack.c.1.s8 %v776
        %v788 = vunpack.c.2.s8 %v776
        %v789 = vunpack.c.3.s8 %v776
        %v790 = vunpack.c.0.s8 %v777
        %v791 = vunpack.c.1.s8 %v777
        %v792 = vunpack.c.2.s8 %v777
        %v793 = vunpack.c.3.s8 %v777
        %vm794 = vcmp.ge.s32.totalorder %v778, 5
        %vm795 = vcmp.ge.s32.totalorder %v779, 5
        %vm796 = vcmp.ge.s32.totalorder %v780, 5
        %vm797 = vcmp.ge.s32.totalorder %v781, 5
        %vm798 = vcmp.ge.s32.totalorder %v782, 5
        %vm799 = vcmp.ge.s32.totalorder %v783, 5
        %vm800 = vcmp.ge.s32.totalorder %v784, 5
        %vm801 = vcmp.ge.s32.totalorder %v785, 5
        %vm802 = vcmp.ge.s32.totalorder %v786, 5
        %vm803 = vcmp.ge.s32.totalorder %v787, 5
        %vm804 = vcmp.ge.s32.totalorder %v788, 5
        %vm805 = vcmp.ge.s32.totalorder %v789, 5
        %vm806 = vcmp.ge.s32.totalorder %v790, 5
        %vm807 = vcmp.ge.s32.totalorder %v791, 5
        %vm808 = vcmp.ge.s32.totalorder %v792, 5
        %vm809 = vcmp.ge.s32.totalorder %v793, 5
        %vm810 = vcmp.eq.s32.totalorder %v778, 4
        %vm811 = vcmp.eq.s32.totalorder %v779, 4
        %vm812 = vcmp.eq.s32.totalorder %v780, 4
        %vm813 = vcmp.eq.s32.totalorder %v781, 4
        %vm814 = vcmp.eq.s32.totalorder %v782, 4
        %vm815 = vcmp.eq.s32.totalorder %v783, 4
        %vm816 = vcmp.eq.s32.totalorder %v784, 4
        %vm817 = vcmp.eq.s32.totalorder %v785, 4
        %vm818 = vcmp.eq.s32.totalorder %v786, 4
        %vm819 = vcmp.eq.s32.totalorder %v787, 4
        %vm820 = vcmp.eq.s32.totalorder %v788, 4
        %vm821 = vcmp.eq.s32.totalorder %v789, 4
        %vm822 = vcmp.eq.s32.totalorder %v790, 4
        %vm823 = vcmp.eq.s32.totalorder %v791, 4
        %vm824 = vcmp.eq.s32.totalorder %v792, 4
        %vm825 = vcmp.eq.s32.totalorder %v793, 4
        %v826 = vsel %vm810, 0.2, 0.0
        %v827 = vsel %vm811, 0.2, 0.0
        %v828 = vsel %vm812, 0.2, 0.0
        %v829 = vsel %vm813, 0.2, 0.0
        %v830 = vsel %vm814, 0.2, 0.0
        %v831 = vsel %vm815, 0.2, 0.0
        %v832 = vsel %vm816, 0.2, 0.0
        %v833 = vsel %vm817, 0.2, 0.0
        %v834 = vsel %vm818, 0.2, 0.0
        %v835 = vsel %vm819, 0.2, 0.0
        %v836 = vsel %vm820, 0.2, 0.0
        %v837 = vsel %vm821, 0.2, 0.0
        %v838 = vsel %vm822, 0.2, 0.0
        %v839 = vsel %vm823, 0.2, 0.0
        %v840 = vsel %vm824, 0.2, 0.0
        %v841 = vsel %vm825, 0.2, 0.0
        %v842 = vsel %vm794, 1.0, %v826
        %v843 = vsel %vm795, 1.0, %v827
        %v844 = vsel %vm796, 1.0, %v828
        %v845 = vsel %vm797, 1.0, %v829
        %v846 = vsel %vm798, 1.0, %v830
        %v847 = vsel %vm799, 1.0, %v831
        %v848 = vsel %vm800, 1.0, %v832
        %v849 = vsel %vm801, 1.0, %v833
        %v850 = vsel %vm802, 1.0, %v834
        %v851 = vsel %vm803, 1.0, %v835
        %v852 = vsel %vm804, 1.0, %v836
        %v853 = vsel %vm805, 1.0, %v837
        %v854 = vsel %vm806, 1.0, %v838
        %v855 = vsel %vm807, 1.0, %v839
        %v856 = vsel %vm808, 1.0, %v840
        %v857 = vsel %vm809, 1.0, %v841
        %s858 = sld [smem:[#allocation5 + %s26]]
        %s859 = sld [smem:[#allocation6 + %s26]]
        %p860 = scmp.eq.s32.totalorder %s858, %s859
        %s861 = scalar_select %p860, 0.5, 1.0
        %v862 = vstv %s861
        %v863 = vmul.f32 %v842, %v862
        %v864 = vmul.f32 %v843, %v862
        %v865 = vmul.f32 %v844, %v862
        %v866 = vmul.f32 %v845, %v862
        %v867 = vmul.f32 %v846, %v862
        %v868 = vmul.f32 %v847, %v862
        %v869 = vmul.f32 %v848, %v862
        %v870 = vmul.f32 %v849, %v862
        %v871 = vmul.f32 %v850, %v862
        %v872 = vmul.f32 %v851, %v862
        %v873 = vmul.f32 %v852, %v862
        %v874 = vmul.f32 %v853, %v862
        %v875 = vmul.f32 %v854, %v862
        %v876 = vmul.f32 %v855, %v862
        %v877 = vmul.f32 %v856, %v862
        %v878 = vmul.f32 %v857, %v862
        %v879 = vld [vmem:[%s276 + $0x3] sm:$0x1]
        %v880 = vld [vmem:[%s276 + $0x9] sm:$0x1]
        %881 = vset.pattern.permute.xlu0 3
        %882 = vperm.xlu0 %881, %v343
        %v883 = vpop.permute.xlu0 %882
        %885 = vset.pattern.permute.xlu0 3
        %886 = vperm.xlu0 %885, %v344
        %v887 = vpop.permute.xlu0 %886
        %889 = vset.pattern.permute.xlu0 3
        %890 = vperm.xlu0 %889, %v345
        %v891 = vpop.permute.xlu0 %890
        %893 = vset.pattern.permute.xlu0 3
        %894 = vperm.xlu0 %893, %v346
        %v895 = vpop.permute.xlu0 %894
        %897 = vset.pattern.permute.xlu0 3
        %898 = vperm.xlu0 %897, %v347
        %v899 = vpop.permute.xlu0 %898
        %901 = vset.pattern.permute.xlu0 3
        %902 = vperm.xlu0 %901, %v348
        %v903 = vpop.permute.xlu0 %902
        %905 = vset.pattern.permute.xlu0 3
        %906 = vperm.xlu0 %905, %v349
        %v907 = vpop.permute.xlu0 %906
        %909 = vset.pattern.permute.xlu0 3
        %910 = vperm.xlu0 %909, %v350
        %v911 = vpop.permute.xlu0 %910
        %913 = vset.pattern.permute.xlu0 3
        %914 = vperm.xlu0 %913, %v351
        %v915 = vpop.permute.xlu0 %914
        %917 = vset.pattern.permute.xlu0 3
        %918 = vperm.xlu0 %917, %v352
        %v919 = vpop.permute.xlu0 %918
        %921 = vset.pattern.permute.xlu0 3
        %922 = vperm.xlu0 %921, %v353
        %v923 = vpop.permute.xlu0 %922
        %925 = vset.pattern.permute.xlu0 3
        %926 = vperm.xlu0 %925, %v354
        %v927 = vpop.permute.xlu0 %926
        %929 = vset.pattern.permute.xlu0 3
        %930 = vperm.xlu0 %929, %v355
        %v931 = vpop.permute.xlu0 %930
        %933 = vset.pattern.permute.xlu0 3
        %934 = vperm.xlu0 %933, %v356
        %v935 = vpop.permute.xlu0 %934
        %937 = vset.pattern.permute.xlu0 3
        %938 = vperm.xlu0 %937, %v357
        %v939 = vpop.permute.xlu0 %938
        %941 = vset.pattern.permute.xlu0 3
        %942 = vperm.xlu0 %941, %v358
        %v943 = vpop.permute.xlu0 %942
        %v945 = vlaneseq
        %v946 = vshrl.u32 %v945, 7
        %v947 = vsub.s32 0, %v946
        %v948 = vrot.slane %v879, %v947
        %v949 = vadd.f32 %v883, %v948
        %v950 = vadd.f32 %v887, %v948
        %v951 = vadd.f32 %v891, %v948
        %v952 = vadd.f32 %v895, %v948
        %v953 = vadd.f32 %v899, %v948
        %v954 = vadd.f32 %v903, %v948
        %v955 = vadd.f32 %v907, %v948
        %v956 = vadd.f32 %v911, %v948
        %v957 = vadd.f32 %v915, %v948
        %v958 = vadd.f32 %v919, %v948
        %v959 = vadd.f32 %v923, %v948
        %v960 = vadd.f32 %v927, %v948
        %v961 = vadd.f32 %v931, %v948
        %v962 = vadd.f32 %v935, %v948
        %v963 = vadd.f32 %v939, %v948
        %v964 = vadd.f32 %v943, %v948
        %965 = vset.pattern.permute.xlu0 8
        %966 = vperm.xlu0 %965, %v343
        %v967 = vpop.permute.xlu0 %966
        %969 = vset.pattern.permute.xlu0 8
        %970 = vperm.xlu0 %969, %v344
        %v971 = vpop.permute.xlu0 %970
        %973 = vset.pattern.permute.xlu0 8
        %974 = vperm.xlu0 %973, %v345
        %v975 = vpop.permute.xlu0 %974
        %977 = vset.pattern.permute.xlu0 8
        %978 = vperm.xlu0 %977, %v346
        %v979 = vpop.permute.xlu0 %978
        %981 = vset.pattern.permute.xlu0 8
        %982 = vperm.xlu0 %981, %v347
        %v983 = vpop.permute.xlu0 %982
        %985 = vset.pattern.permute.xlu0 8
        %986 = vperm.xlu0 %985, %v348
        %v987 = vpop.permute.xlu0 %986
        %989 = vset.pattern.permute.xlu0 8
        %990 = vperm.xlu0 %989, %v349
        %v991 = vpop.permute.xlu0 %990
        %993 = vset.pattern.permute.xlu0 8
        %994 = vperm.xlu0 %993, %v350
        %v995 = vpop.permute.xlu0 %994
        %997 = vset.pattern.permute.xlu0 8
        %998 = vperm.xlu0 %997, %v351
        %v999 = vpop.permute.xlu0 %998
        %1001 = vset.pattern.permute.xlu0 8
        %1002 = vperm.xlu0 %1001, %v352
        %v1003 = vpop.permute.xlu0 %1002
        %1005 = vset.pattern.permute.xlu0 8
        %1006 = vperm.xlu0 %1005, %v353
        %v1007 = vpop.permute.xlu0 %1006
        %1009 = vset.pattern.permute.xlu0 8
        %1010 = vperm.xlu0 %1009, %v354
        %v1011 = vpop.permute.xlu0 %1010
        %1013 = vset.pattern.permute.xlu0 8
        %1014 = vperm.xlu0 %1013, %v355
        %v1015 = vpop.permute.xlu0 %1014
        %1017 = vset.pattern.permute.xlu0 8
        %1018 = vperm.xlu0 %1017, %v356
        %v1019 = vpop.permute.xlu0 %1018
        %1021 = vset.pattern.permute.xlu0 8
        %1022 = vperm.xlu0 %1021, %v357
        %v1023 = vpop.permute.xlu0 %1022
        %1025 = vset.pattern.permute.xlu0 8
        %1026 = vperm.xlu0 %1025, %v358
        %v1027 = vpop.permute.xlu0 %1026
        %v1029 = vlaneseq
        %v1030 = vshrl.u32 %v1029, 7
        %v1031 = vsub.s32 0, %v1030
        %v1032 = vrot.slane %v880, %v1031
        %v1033 = vmul.f32 %v967, %v1032
        %v1034 = vmul.f32 %v971, %v1032
        %v1035 = vmul.f32 %v975, %v1032
        %v1036 = vmul.f32 %v979, %v1032
        %v1037 = vmul.f32 %v983, %v1032
        %v1038 = vmul.f32 %v987, %v1032
        %v1039 = vmul.f32 %v991, %v1032
        %v1040 = vmul.f32 %v995, %v1032
        %v1041 = vmul.f32 %v999, %v1032
        %v1042 = vmul.f32 %v1003, %v1032
        %v1043 = vmul.f32 %v1007, %v1032
        %v1044 = vmul.f32 %v1011, %v1032
        %v1045 = vmul.f32 %v1015, %v1032
        %v1046 = vmul.f32 %v1019, %v1032
        %v1047 = vmul.f32 %v1023, %v1032
        %v1048 = vmul.f32 %v1027, %v1032
        %v1049 = vld [vmem:[%s276 + $0x8] sm:$0x1]
        %v1050 = vlaneseq
        %v1051 = vshrl.u32 %v1050, 7
        %v1052 = vsub.s32 0, %v1051
        %v1053 = vrot.slane %v1049, %v1052
        %1054 = vset.pattern.permute.xlu0 9
        %1055 = vperm.xlu0 %1054, %v343
        %v1056 = vpop.permute.xlu0 %1055
        %1058 = vset.pattern.permute.xlu0 9
        %1059 = vperm.xlu0 %1058, %v344
        %v1060 = vpop.permute.xlu0 %1059
        %1062 = vset.pattern.permute.xlu0 9
        %1063 = vperm.xlu0 %1062, %v345
        %v1064 = vpop.permute.xlu0 %1063
        %1066 = vset.pattern.permute.xlu0 9
        %1067 = vperm.xlu0 %1066, %v346
        %v1068 = vpop.permute.xlu0 %1067
        %1070 = vset.pattern.permute.xlu0 9
        %1071 = vperm.xlu0 %1070, %v347
        %v1072 = vpop.permute.xlu0 %1071
        %1074 = vset.pattern.permute.xlu0 9
        %1075 = vperm.xlu0 %1074, %v348
        %v1076 = vpop.permute.xlu0 %1075
        %1078 = vset.pattern.permute.xlu0 9
        %1079 = vperm.xlu0 %1078, %v349
        %v1080 = vpop.permute.xlu0 %1079
        %1082 = vset.pattern.permute.xlu0 9
        %1083 = vperm.xlu0 %1082, %v350
        %v1084 = vpop.permute.xlu0 %1083
        %1086 = vset.pattern.permute.xlu0 9
        %1087 = vperm.xlu0 %1086, %v351
        %v1088 = vpop.permute.xlu0 %1087
        %1090 = vset.pattern.permute.xlu0 9
        %1091 = vperm.xlu0 %1090, %v352
        %v1092 = vpop.permute.xlu0 %1091
        %1094 = vset.pattern.permute.xlu0 9
        %1095 = vperm.xlu0 %1094, %v353
        %v1096 = vpop.permute.xlu0 %1095
        %1098 = vset.pattern.permute.xlu0 9
        %1099 = vperm.xlu0 %1098, %v354
        %v1100 = vpop.permute.xlu0 %1099
        %1102 = vset.pattern.permute.xlu0 9
        %1103 = vperm.xlu0 %1102, %v355
        %v1104 = vpop.permute.xlu0 %1103
        %1106 = vset.pattern.permute.xlu0 9
        %1107 = vperm.xlu0 %1106, %v356
        %v1108 = vpop.permute.xlu0 %1107
        %1110 = vset.pattern.permute.xlu0 9
        %1111 = vperm.xlu0 %1110, %v357
        %v1112 = vpop.permute.xlu0 %1111
        %1114 = vset.pattern.permute.xlu0 9
        %1115 = vperm.xlu0 %1114, %v358
        %v1116 = vpop.permute.xlu0 %1115
        %v1118 = vmul.f32 %v1053, %v1056
        %v1119 = vmul.f32 %v1053, %v1060
        %v1120 = vmul.f32 %v1053, %v1064
        %v1121 = vmul.f32 %v1053, %v1068
        %v1122 = vmul.f32 %v1053, %v1072
        %v1123 = vmul.f32 %v1053, %v1076
        %v1124 = vmul.f32 %v1053, %v1080
        %v1125 = vmul.f32 %v1053, %v1084
        %v1126 = vmul.f32 %v1053, %v1088
        %v1127 = vmul.f32 %v1053, %v1092
        %v1128 = vmul.f32 %v1053, %v1096
        %v1129 = vmul.f32 %v1053, %v1100
        %v1130 = vmul.f32 %v1053, %v1104
        %v1131 = vmul.f32 %v1053, %v1108
        %v1132 = vmul.f32 %v1053, %v1112
        %v1133 = vmul.f32 %v1053, %v1116
        %v1134 = vadd.f32 %v1033, %v1118
        %v1135 = vadd.f32 %v1034, %v1119
        %v1136 = vadd.f32 %v1035, %v1120
        %v1137 = vadd.f32 %v1036, %v1121
        %v1138 = vadd.f32 %v1037, %v1122
        %v1139 = vadd.f32 %v1038, %v1123
        %v1140 = vadd.f32 %v1039, %v1124
        %v1141 = vadd.f32 %v1040, %v1125
        %v1142 = vadd.f32 %v1041, %v1126
        %v1143 = vadd.f32 %v1042, %v1127
        %v1144 = vadd.f32 %v1043, %v1128
        %v1145 = vadd.f32 %v1044, %v1129
        %v1146 = vadd.f32 %v1045, %v1130
        %v1147 = vadd.f32 %v1046, %v1131
        %v1148 = vadd.f32 %v1047, %v1132
        %v1149 = vadd.f32 %v1048, %v1133
        %vm1150 = vcmp.gt.f32.partialorder %v1134, 0.0
        %vm1151 = vcmp.gt.f32.partialorder %v1135, 0.0
        %vm1152 = vcmp.gt.f32.partialorder %v1136, 0.0
        %vm1153 = vcmp.gt.f32.partialorder %v1137, 0.0
        %vm1154 = vcmp.gt.f32.partialorder %v1138, 0.0
        %vm1155 = vcmp.gt.f32.partialorder %v1139, 0.0
        %vm1156 = vcmp.gt.f32.partialorder %v1140, 0.0
        %vm1157 = vcmp.gt.f32.partialorder %v1141, 0.0
        %vm1158 = vcmp.gt.f32.partialorder %v1142, 0.0
        %vm1159 = vcmp.gt.f32.partialorder %v1143, 0.0
        %vm1160 = vcmp.gt.f32.partialorder %v1144, 0.0
        %vm1161 = vcmp.gt.f32.partialorder %v1145, 0.0
        %vm1162 = vcmp.gt.f32.partialorder %v1146, 0.0
        %vm1163 = vcmp.gt.f32.partialorder %v1147, 0.0
        %vm1164 = vcmp.gt.f32.partialorder %v1148, 0.0
        %vm1165 = vcmp.gt.f32.partialorder %v1149, 0.0
        %1166 = vset.pattern.permute.xlu0 10
        %1167 = vperm.xlu0 %1166, %v343
        %v1168 = vpop.permute.xlu0 %1167
        %1170 = vset.pattern.permute.xlu0 10
        %1171 = vperm.xlu0 %1170, %v344
        %v1172 = vpop.permute.xlu0 %1171
        %1174 = vset.pattern.permute.xlu0 10
        %1175 = vperm.xlu0 %1174, %v345
        %v1176 = vpop.permute.xlu0 %1175
        %1178 = vset.pattern.permute.xlu0 10
        %1179 = vperm.xlu0 %1178, %v346
        %v1180 = vpop.permute.xlu0 %1179
        %1182 = vset.pattern.permute.xlu0 10
        %1183 = vperm.xlu0 %1182, %v347
        %v1184 = vpop.permute.xlu0 %1183
        %1186 = vset.pattern.permute.xlu0 10
        %1187 = vperm.xlu0 %1186, %v348
        %v1188 = vpop.permute.xlu0 %1187
        %1190 = vset.pattern.permute.xlu0 10
        %1191 = vperm.xlu0 %1190, %v349
        %v1192 = vpop.permute.xlu0 %1191
        %1194 = vset.pattern.permute.xlu0 10
        %1195 = vperm.xlu0 %1194, %v350
        %v1196 = vpop.permute.xlu0 %1195
        %1198 = vset.pattern.permute.xlu0 10
        %1199 = vperm.xlu0 %1198, %v351
        %v1200 = vpop.permute.xlu0 %1199
        %1202 = vset.pattern.permute.xlu0 10
        %1203 = vperm.xlu0 %1202, %v352
        %v1204 = vpop.permute.xlu0 %1203
        %1206 = vset.pattern.permute.xlu0 10
        %1207 = vperm.xlu0 %1206, %v353
        %v1208 = vpop.permute.xlu0 %1207
        %1210 = vset.pattern.permute.xlu0 10
        %1211 = vperm.xlu0 %1210, %v354
        %v1212 = vpop.permute.xlu0 %1211
        %1214 = vset.pattern.permute.xlu0 10
        %1215 = vperm.xlu0 %1214, %v355
        %v1216 = vpop.permute.xlu0 %1215
        %1218 = vset.pattern.permute.xlu0 10
        %1219 = vperm.xlu0 %1218, %v356
        %v1220 = vpop.permute.xlu0 %1219
        %1222 = vset.pattern.permute.xlu0 10
        %1223 = vperm.xlu0 %1222, %v357
        %v1224 = vpop.permute.xlu0 %1223
        %1226 = vset.pattern.permute.xlu0 10
        %1227 = vperm.xlu0 %1226, %v358
        %v1228 = vpop.permute.xlu0 %1227
        %v1230 = vmul.f32 %v1168, %v1032
        %v1231 = vmul.f32 %v1172, %v1032
        %v1232 = vmul.f32 %v1176, %v1032
        %v1233 = vmul.f32 %v1180, %v1032
        %v1234 = vmul.f32 %v1184, %v1032
        %v1235 = vmul.f32 %v1188, %v1032
        %v1236 = vmul.f32 %v1192, %v1032
        %v1237 = vmul.f32 %v1196, %v1032
        %v1238 = vmul.f32 %v1200, %v1032
        %v1239 = vmul.f32 %v1204, %v1032
        %v1240 = vmul.f32 %v1208, %v1032
        %v1241 = vmul.f32 %v1212, %v1032
        %v1242 = vmul.f32 %v1216, %v1032
        %v1243 = vmul.f32 %v1220, %v1032
        %v1244 = vmul.f32 %v1224, %v1032
        %v1245 = vmul.f32 %v1228, %v1032
        %v1246 = vld [vmem:[%s276 + $0xa] sm:$0x1]
        %v1247 = vlaneseq
        %v1248 = vshrl.u32 %v1247, 7
        %v1249 = vsub.s32 0, %v1248
        %v1250 = vrot.slane %v1246, %v1249
        %v1251 = vmul.f32 %v1250, %v1056
        %v1252 = vmul.f32 %v1250, %v1060
        %v1253 = vmul.f32 %v1250, %v1064
        %v1254 = vmul.f32 %v1250, %v1068
        %v1255 = vmul.f32 %v1250, %v1072
        %v1256 = vmul.f32 %v1250, %v1076
        %v1257 = vmul.f32 %v1250, %v1080
        %v1258 = vmul.f32 %v1250, %v1084
        %v1259 = vmul.f32 %v1250, %v1088
        %v1260 = vmul.f32 %v1250, %v1092
        %v1261 = vmul.f32 %v1250, %v1096
        %v1262 = vmul.f32 %v1250, %v1100
        %v1263 = vmul.f32 %v1250, %v1104
        %v1264 = vmul.f32 %v1250, %v1108
        %v1265 = vmul.f32 %v1250, %v1112
        %v1266 = vmul.f32 %v1250, %v1116
        %v1267 = vadd.f32 %v1230, %v1251
        %v1268 = vadd.f32 %v1231, %v1252
        %v1269 = vadd.f32 %v1232, %v1253
        %v1270 = vadd.f32 %v1233, %v1254
        %v1271 = vadd.f32 %v1234, %v1255
        %v1272 = vadd.f32 %v1235, %v1256
        %v1273 = vadd.f32 %v1236, %v1257
        %v1274 = vadd.f32 %v1237, %v1258
        %v1275 = vadd.f32 %v1238, %v1259
        %v1276 = vadd.f32 %v1239, %v1260
        %v1277 = vadd.f32 %v1240, %v1261
        %v1278 = vadd.f32 %v1241, %v1262
        %v1279 = vadd.f32 %v1242, %v1263
        %v1280 = vadd.f32 %v1243, %v1264
        %v1281 = vadd.f32 %v1244, %v1265
        %v1282 = vadd.f32 %v1245, %v1266
        %vm1283 = vcmp.gt.f32.partialorder %v1267, 0.0
        %vm1284 = vcmp.gt.f32.partialorder %v1268, 0.0
        %vm1285 = vcmp.gt.f32.partialorder %v1269, 0.0
        %vm1286 = vcmp.gt.f32.partialorder %v1270, 0.0
        %vm1287 = vcmp.gt.f32.partialorder %v1271, 0.0
        %vm1288 = vcmp.gt.f32.partialorder %v1272, 0.0
        %vm1289 = vcmp.gt.f32.partialorder %v1273, 0.0
        %vm1290 = vcmp.gt.f32.partialorder %v1274, 0.0
        %vm1291 = vcmp.gt.f32.partialorder %v1275, 0.0
        %vm1292 = vcmp.gt.f32.partialorder %v1276, 0.0
        %vm1293 = vcmp.gt.f32.partialorder %v1277, 0.0
        %vm1294 = vcmp.gt.f32.partialorder %v1278, 0.0
        %vm1295 = vcmp.gt.f32.partialorder %v1279, 0.0
        %vm1296 = vcmp.gt.f32.partialorder %v1280, 0.0
        %vm1297 = vcmp.gt.f32.partialorder %v1281, 0.0
        %vm1298 = vcmp.gt.f32.partialorder %v1282, 0.0
        %1299 = vset.pattern.permute.xlu0 11
        %1300 = vperm.xlu0 %1299, %v343
        %v1301 = vpop.permute.xlu0 %1300
        %1303 = vset.pattern.permute.xlu0 11
        %1304 = vperm.xlu0 %1303, %v344
        %v1305 = vpop.permute.xlu0 %1304
        %1307 = vset.pattern.permute.xlu0 11
        %1308 = vperm.xlu0 %1307, %v345
        %v1309 = vpop.permute.xlu0 %1308
        %1311 = vset.pattern.permute.xlu0 11
        %1312 = vperm.xlu0 %1311, %v346
        %v1313 = vpop.permute.xlu0 %1312
        %1315 = vset.pattern.permute.xlu0 11
        %1316 = vperm.xlu0 %1315, %v347
        %v1317 = vpop.permute.xlu0 %1316
        %1319 = vset.pattern.permute.xlu0 11
        %1320 = vperm.xlu0 %1319, %v348
        %v1321 = vpop.permute.xlu0 %1320
        %1323 = vset.pattern.permute.xlu0 11
        %1324 = vperm.xlu0 %1323, %v349
        %v1325 = vpop.permute.xlu0 %1324
        %1327 = vset.pattern.permute.xlu0 11
        %1328 = vperm.xlu0 %1327, %v350
        %v1329 = vpop.permute.xlu0 %1328
        %1331 = vset.pattern.permute.xlu0 11
        %1332 = vperm.xlu0 %1331, %v351
        %v1333 = vpop.permute.xlu0 %1332
        %1335 = vset.pattern.permute.xlu0 11
        %1336 = vperm.xlu0 %1335, %v352
        %v1337 = vpop.permute.xlu0 %1336
        %1339 = vset.pattern.permute.xlu0 11
        %1340 = vperm.xlu0 %1339, %v353
        %v1341 = vpop.permute.xlu0 %1340
        %1343 = vset.pattern.permute.xlu0 11
        %1344 = vperm.xlu0 %1343, %v354
        %v1345 = vpop.permute.xlu0 %1344
        %1347 = vset.pattern.permute.xlu0 11
        %1348 = vperm.xlu0 %1347, %v355
        %v1349 = vpop.permute.xlu0 %1348
        %1351 = vset.pattern.permute.xlu0 11
        %1352 = vperm.xlu0 %1351, %v356
        %v1353 = vpop.permute.xlu0 %1352
        %1355 = vset.pattern.permute.xlu0 11
        %1356 = vperm.xlu0 %1355, %v357
        %v1357 = vpop.permute.xlu0 %1356
        %1359 = vset.pattern.permute.xlu0 11
        %1360 = vperm.xlu0 %1359, %v358
        %v1361 = vpop.permute.xlu0 %1360
        %v1363 = vmul.f32 %v1301, %v1032
        %v1364 = vmul.f32 %v1305, %v1032
        %v1365 = vmul.f32 %v1309, %v1032
        %v1366 = vmul.f32 %v1313, %v1032
        %v1367 = vmul.f32 %v1317, %v1032
        %v1368 = vmul.f32 %v1321, %v1032
        %v1369 = vmul.f32 %v1325, %v1032
        %v1370 = vmul.f32 %v1329, %v1032
        %v1371 = vmul.f32 %v1333, %v1032
        %v1372 = vmul.f32 %v1337, %v1032
        %v1373 = vmul.f32 %v1341, %v1032
        %v1374 = vmul.f32 %v1345, %v1032
        %v1375 = vmul.f32 %v1349, %v1032
        %v1376 = vmul.f32 %v1353, %v1032
        %v1377 = vmul.f32 %v1357, %v1032
        %v1378 = vmul.f32 %v1361, %v1032
        %v1379 = vld [vmem:[%s276 + $0xb] sm:$0x1]
        %v1380 = vlaneseq
        %v1381 = vshrl.u32 %v1380, 7
        %v1382 = vsub.s32 0, %v1381
        %v1383 = vrot.slane %v1379, %v1382
        %v1384 = vmul.f32 %v1383, %v1056
        %v1385 = vmul.f32 %v1383, %v1060
        %v1386 = vmul.f32 %v1383, %v1064
        %v1387 = vmul.f32 %v1383, %v1068
        %v1388 = vmul.f32 %v1383, %v1072
        %v1389 = vmul.f32 %v1383, %v1076
        %v1390 = vmul.f32 %v1383, %v1080
        %v1391 = vmul.f32 %v1383, %v1084
        %v1392 = vmul.f32 %v1383, %v1088
        %v1393 = vmul.f32 %v1383, %v1092
        %v1394 = vmul.f32 %v1383, %v1096
        %v1395 = vmul.f32 %v1383, %v1100
        %v1396 = vmul.f32 %v1383, %v1104
        %v1397 = vmul.f32 %v1383, %v1108
        %v1398 = vmul.f32 %v1383, %v1112
        %v1399 = vmul.f32 %v1383, %v1116
        %v1400 = vadd.f32 %v1363, %v1384
        %v1401 = vadd.f32 %v1364, %v1385
        %v1402 = vadd.f32 %v1365, %v1386
        %v1403 = vadd.f32 %v1366, %v1387
        %v1404 = vadd.f32 %v1367, %v1388
        %v1405 = vadd.f32 %v1368, %v1389
        %v1406 = vadd.f32 %v1369, %v1390
        %v1407 = vadd.f32 %v1370, %v1391
        %v1408 = vadd.f32 %v1371, %v1392
        %v1409 = vadd.f32 %v1372, %v1393
        %v1410 = vadd.f32 %v1373, %v1394
        %v1411 = vadd.f32 %v1374, %v1395
        %v1412 = vadd.f32 %v1375, %v1396
        %v1413 = vadd.f32 %v1376, %v1397
        %v1414 = vadd.f32 %v1377, %v1398
        %v1415 = vadd.f32 %v1378, %v1399
        %vm1416 = vcmp.gt.f32.partialorder %v1400, 0.0
        %vm1417 = vcmp.gt.f32.partialorder %v1401, 0.0
        %vm1418 = vcmp.gt.f32.partialorder %v1402, 0.0
        %vm1419 = vcmp.gt.f32.partialorder %v1403, 0.0
        %vm1420 = vcmp.gt.f32.partialorder %v1404, 0.0
        %vm1421 = vcmp.gt.f32.partialorder %v1405, 0.0
        %vm1422 = vcmp.gt.f32.partialorder %v1406, 0.0
        %vm1423 = vcmp.gt.f32.partialorder %v1407, 0.0
        %vm1424 = vcmp.gt.f32.partialorder %v1408, 0.0
        %vm1425 = vcmp.gt.f32.partialorder %v1409, 0.0
        %vm1426 = vcmp.gt.f32.partialorder %v1410, 0.0
        %vm1427 = vcmp.gt.f32.partialorder %v1411, 0.0
        %vm1428 = vcmp.gt.f32.partialorder %v1412, 0.0
        %vm1429 = vcmp.gt.f32.partialorder %v1413, 0.0
        %vm1430 = vcmp.gt.f32.partialorder %v1414, 0.0
        %vm1431 = vcmp.gt.f32.partialorder %v1415, 0.0
        %v1432 = vsel %vm1150, 1.75, %v949
        %v1433 = vsel %vm1151, 1.75, %v950
        %v1434 = vsel %vm1152, 1.75, %v951
        %v1435 = vsel %vm1153, 1.75, %v952
        %v1436 = vsel %vm1154, 1.75, %v953
        %v1437 = vsel %vm1155, 1.75, %v954
        %v1438 = vsel %vm1156, 1.75, %v955
        %v1439 = vsel %vm1157, 1.75, %v956
        %v1440 = vsel %vm1158, 1.75, %v957
        %v1441 = vsel %vm1159, 1.75, %v958
        %v1442 = vsel %vm1160, 1.75, %v959
        %v1443 = vsel %vm1161, 1.75, %v960
        %v1444 = vsel %vm1162, 1.75, %v961
        %v1445 = vsel %vm1163, 1.75, %v962
        %v1446 = vsel %vm1164, 1.75, %v963
        %v1447 = vsel %vm1165, 1.75, %v964
        %v1448 = vsel %vm1283, 2.6, %v1432
        %v1449 = vsel %vm1284, 2.6, %v1433
        %v1450 = vsel %vm1285, 2.6, %v1434
        %v1451 = vsel %vm1286, 2.6, %v1435
        %v1452 = vsel %vm1287, 2.6, %v1436
        %v1453 = vsel %vm1288, 2.6, %v1437
        %v1454 = vsel %vm1289, 2.6, %v1438
        %v1455 = vsel %vm1290, 2.6, %v1439
        %v1456 = vsel %vm1291, 2.6, %v1440
        %v1457 = vsel %vm1292, 2.6, %v1441
        %v1458 = vsel %vm1293, 2.6, %v1442
        %v1459 = vsel %vm1294, 2.6, %v1443
        %v1460 = vsel %vm1295, 2.6, %v1444
        %v1461 = vsel %vm1296, 2.6, %v1445
        %v1462 = vsel %vm1297, 2.6, %v1446
        %v1463 = vsel %vm1298, 2.6, %v1447
        %v1464 = vsel %vm1416, 3.0, %v1448
        %v1465 = vsel %vm1417, 3.0, %v1449
        %v1466 = vsel %vm1418, 3.0, %v1450
        %v1467 = vsel %vm1419, 3.0, %v1451
        %v1468 = vsel %vm1420, 3.0, %v1452
        %v1469 = vsel %vm1421, 3.0, %v1453
        %v1470 = vsel %vm1422, 3.0, %v1454
        %v1471 = vsel %vm1423, 3.0, %v1455
        %v1472 = vsel %vm1424, 3.0, %v1456
        %v1473 = vsel %vm1425, 3.0, %v1457
        %v1474 = vsel %vm1426, 3.0, %v1458
        %v1475 = vsel %vm1427, 3.0, %v1459
        %v1476 = vsel %vm1428, 3.0, %v1460
        %v1477 = vsel %vm1429, 3.0, %v1461
        %v1478 = vsel %vm1430, 3.0, %v1462
        %v1479 = vsel %vm1431, 3.0, %v1463
        %v1480 = vmul.f32 %v1464, %v1464
        %v1481 = vmul.f32 %v1465, %v1465
        %v1482 = vmul.f32 %v1466, %v1466
        %v1483 = vmul.f32 %v1467, %v1467
        %v1484 = vmul.f32 %v1468, %v1468
        %v1485 = vmul.f32 %v1469, %v1469
        %v1486 = vmul.f32 %v1470, %v1470
        %v1487 = vmul.f32 %v1471, %v1471
        %v1488 = vmul.f32 %v1472, %v1472
        %v1489 = vmul.f32 %v1473, %v1473
        %v1490 = vmul.f32 %v1474, %v1474
        %v1491 = vmul.f32 %v1475, %v1475
        %v1492 = vmul.f32 %v1476, %v1476
        %v1493 = vmul.f32 %v1477, %v1477
        %v1494 = vmul.f32 %v1478, %v1478
        %v1495 = vmul.f32 %v1479, %v1479
        %v1496 = vrcp.pop %v1464
        %v1497 = vrcp.pop %v1465
        %v1498 = vrcp.pop %v1466
        %v1499 = vrcp.pop %v1467
        %v1500 = vrcp.pop %v1468
        %v1501 = vrcp.pop %v1469
        %v1502 = vrcp.pop %v1470
        %v1503 = vrcp.pop %v1471
        %v1504 = vrcp.pop %v1472
        %v1505 = vrcp.pop %v1473
        %v1506 = vrcp.pop %v1474
        %v1507 = vrcp.pop %v1475
        %v1508 = vrcp.pop %v1476
        %v1509 = vrcp.pop %v1477
        %v1510 = vrcp.pop %v1478
        %v1511 = vrcp.pop %v1479
        %v1512 = vld [vmem:[%s276 + $0x4] sm:$0x1]
        %1513 = vset.pattern.permute.xlu0 4
        %1514 = vperm.xlu0 %1513, %v343
        %v1515 = vpop.permute.xlu0 %1514
        %1517 = vset.pattern.permute.xlu0 4
        %1518 = vperm.xlu0 %1517, %v344
        %v1519 = vpop.permute.xlu0 %1518
        %1521 = vset.pattern.permute.xlu0 4
        %1522 = vperm.xlu0 %1521, %v345
        %v1523 = vpop.permute.xlu0 %1522
        %1525 = vset.pattern.permute.xlu0 4
        %1526 = vperm.xlu0 %1525, %v346
        %v1527 = vpop.permute.xlu0 %1526
        %1529 = vset.pattern.permute.xlu0 4
        %1530 = vperm.xlu0 %1529, %v347
        %v1531 = vpop.permute.xlu0 %1530
        %1533 = vset.pattern.permute.xlu0 4
        %1534 = vperm.xlu0 %1533, %v348
        %v1535 = vpop.permute.xlu0 %1534
        %1537 = vset.pattern.permute.xlu0 4
        %1538 = vperm.xlu0 %1537, %v349
        %v1539 = vpop.permute.xlu0 %1538
        %1541 = vset.pattern.permute.xlu0 4
        %1542 = vperm.xlu0 %1541, %v350
        %v1543 = vpop.permute.xlu0 %1542
        %1545 = vset.pattern.permute.xlu0 4
        %1546 = vperm.xlu0 %1545, %v351
        %v1547 = vpop.permute.xlu0 %1546
        %1549 = vset.pattern.permute.xlu0 4
        %1550 = vperm.xlu0 %1549, %v352
        %v1551 = vpop.permute.xlu0 %1550
        %1553 = vset.pattern.permute.xlu0 4
        %1554 = vperm.xlu0 %1553, %v353
        %v1555 = vpop.permute.xlu0 %1554
        %1557 = vset.pattern.permute.xlu0 4
        %1558 = vperm.xlu0 %1557, %v354
        %v1559 = vpop.permute.xlu0 %1558
        %1561 = vset.pattern.permute.xlu0 4
        %1562 = vperm.xlu0 %1561, %v355
        %v1563 = vpop.permute.xlu0 %1562
        %1565 = vset.pattern.permute.xlu0 4
        %1566 = vperm.xlu0 %1565, %v356
        %v1567 = vpop.permute.xlu0 %1566
        %1569 = vset.pattern.permute.xlu0 4
        %1570 = vperm.xlu0 %1569, %v357
        %v1571 = vpop.permute.xlu0 %1570
        %1573 = vset.pattern.permute.xlu0 4
        %1574 = vperm.xlu0 %1573, %v358
        %v1575 = vpop.permute.xlu0 %1574
        %v1577 = vlaneseq
        %v1578 = vshrl.u32 %v1577, 7
        %v1579 = vsub.s32 0, %v1578
        %v1580 = vrot.slane %v1512, %v1579
        %v1581 = vmul.f32 %v1515, %v1580
        %v1582 = vmul.f32 %v1519, %v1580
        %v1583 = vmul.f32 %v1523, %v1580
        %v1584 = vmul.f32 %v1527, %v1580
        %v1585 = vmul.f32 %v1531, %v1580
        %v1586 = vmul.f32 %v1535, %v1580
        %v1587 = vmul.f32 %v1539, %v1580
        %v1588 = vmul.f32 %v1543, %v1580
        %v1589 = vmul.f32 %v1547, %v1580
        %v1590 = vmul.f32 %v1551, %v1580
        %v1591 = vmul.f32 %v1555, %v1580
        %v1592 = vmul.f32 %v1559, %v1580
        %v1593 = vmul.f32 %v1563, %v1580
        %v1594 = vmul.f32 %v1567, %v1580
        %v1595 = vmul.f32 %v1571, %v1580
        %v1596 = vmul.f32 %v1575, %v1580
        %v1597 = vmul.f32 %v1464, 0.6
        %v1598 = vmul.f32 %v1465, 0.6
        %v1599 = vmul.f32 %v1466, 0.6
        %v1600 = vmul.f32 %v1467, 0.6
        %v1601 = vmul.f32 %v1468, 0.6
        %v1602 = vmul.f32 %v1469, 0.6
        %v1603 = vmul.f32 %v1470, 0.6
        %v1604 = vmul.f32 %v1471, 0.6
        %v1605 = vmul.f32 %v1472, 0.6
        %v1606 = vmul.f32 %v1473, 0.6
        %v1607 = vmul.f32 %v1474, 0.6
        %v1608 = vmul.f32 %v1475, 0.6
        %v1609 = vmul.f32 %v1476, 0.6
        %v1610 = vmul.f32 %v1477, 0.6
        %v1611 = vmul.f32 %v1478, 0.6
        %v1612 = vmul.f32 %v1479, 0.6
        %v1613 = vmul.f32 %v1496, -8759.204
        %v1614 = vmul.f32 %v1497, -8759.204
        %v1615 = vmul.f32 %v1498, -8759.204
        %v1616 = vmul.f32 %v1499, -8759.204
        %v1617 = vmul.f32 %v1500, -8759.204
        %v1618 = vmul.f32 %v1501, -8759.204
        %v1619 = vmul.f32 %v1502, -8759.204
        %v1620 = vmul.f32 %v1503, -8759.204
        %v1621 = vmul.f32 %v1504, -8759.204
        %v1622 = vmul.f32 %v1505, -8759.204
        %v1623 = vmul.f32 %v1506, -8759.204
        %v1624 = vmul.f32 %v1507, -8759.204
        %v1625 = vmul.f32 %v1508, -8759.204
        %v1626 = vmul.f32 %v1509, -8759.204
        %v1627 = vmul.f32 %v1510, -8759.204
        %v1628 = vmul.f32 %v1511, -8759.204
        %v1629 = vsub.f32 %v742, %v1597
        %v1630 = vsub.f32 %v743, %v1598
        %v1631 = vsub.f32 %v744, %v1599
        %v1632 = vsub.f32 %v745, %v1600
        %v1633 = vsub.f32 %v746, %v1601
        %v1634 = vsub.f32 %v747, %v1602
        %v1635 = vsub.f32 %v748, %v1603
        %v1636 = vsub.f32 %v749, %v1604
        %v1637 = vsub.f32 %v750, %v1605
        %v1638 = vsub.f32 %v751, %v1606
        %v1639 = vsub.f32 %v752, %v1607
        %v1640 = vsub.f32 %v753, %v1608
        %v1641 = vsub.f32 %v754, %v1609
        %v1642 = vsub.f32 %v755, %v1610
        %v1643 = vsub.f32 %v756, %v1611
        %v1644 = vsub.f32 %v757, %v1612
        %v1645 = vmul.f32 %v1613, %v1629
        %v1646 = vmul.f32 %v1614, %v1630
        %v1647 = vmul.f32 %v1615, %v1631
        %v1648 = vmul.f32 %v1616, %v1632
        %v1649 = vmul.f32 %v1617, %v1633
        %v1650 = vmul.f32 %v1618, %v1634
        %v1651 = vmul.f32 %v1619, %v1635
        %v1652 = vmul.f32 %v1620, %v1636
        %v1653 = vmul.f32 %v1621, %v1637
        %v1654 = vmul.f32 %v1622, %v1638
        %v1655 = vmul.f32 %v1623, %v1639
        %v1656 = vmul.f32 %v1624, %v1640
        %v1657 = vmul.f32 %v1625, %v1641
        %v1658 = vmul.f32 %v1626, %v1642
        %v1659 = vmul.f32 %v1627, %v1643
        %v1660 = vmul.f32 %v1628, %v1644
        %v1661 = vadd.f32 %v1645, 416.5267
        %v1662 = vadd.f32 %v1646, 416.5267
        %v1663 = vadd.f32 %v1647, 416.5267
        %v1664 = vadd.f32 %v1648, 416.5267
        %v1665 = vadd.f32 %v1649, 416.5267
        %v1666 = vadd.f32 %v1650, 416.5267
        %v1667 = vadd.f32 %v1651, 416.5267
        %v1668 = vadd.f32 %v1652, 416.5267
        %v1669 = vadd.f32 %v1653, 416.5267
        %v1670 = vadd.f32 %v1654, 416.5267
        %v1671 = vadd.f32 %v1655, 416.5267
        %v1672 = vadd.f32 %v1656, 416.5267
        %v1673 = vadd.f32 %v1657, 416.5267
        %v1674 = vadd.f32 %v1658, 416.5267
        %v1675 = vadd.f32 %v1659, 416.5267
        %v1676 = vadd.f32 %v1660, 416.5267
        %v1677 = vmul.f32 %v1581, %v1661
        %v1678 = vmul.f32 %v1582, %v1662
        %v1679 = vmul.f32 %v1583, %v1663
        %v1680 = vmul.f32 %v1584, %v1664
        %v1681 = vmul.f32 %v1585, %v1665
        %v1682 = vmul.f32 %v1586, %v1666
        %v1683 = vmul.f32 %v1587, %v1667
        %v1684 = vmul.f32 %v1588, %v1668
        %v1685 = vmul.f32 %v1589, %v1669
        %v1686 = vmul.f32 %v1590, %v1670
        %v1687 = vmul.f32 %v1591, %v1671
        %v1688 = vmul.f32 %v1592, %v1672
        %v1689 = vmul.f32 %v1593, %v1673
        %v1690 = vmul.f32 %v1594, %v1674
        %v1691 = vmul.f32 %v1595, %v1675
        %v1692 = vmul.f32 %v1596, %v1676
        %v1693 = vmul.f32 %v1480, %v758
        %v1694 = vmul.f32 %v1481, %v759
        %v1695 = vmul.f32 %v1482, %v760
        %v1696 = vmul.f32 %v1483, %v761
        %v1697 = vmul.f32 %v1484, %v762
        %v1698 = vmul.f32 %v1485, %v763
        %v1699 = vmul.f32 %v1486, %v764
        %v1700 = vmul.f32 %v1487, %v765
        %v1701 = vmul.f32 %v1488, %v766
        %v1702 = vmul.f32 %v1489, %v767
        %v1703 = vmul.f32 %v1490, %v768
        %v1704 = vmul.f32 %v1491, %v769
        %v1705 = vmul.f32 %v1492, %v770
        %v1706 = vmul.f32 %v1493, %v771
        %v1707 = vmul.f32 %v1494, %v772
        %v1708 = vmul.f32 %v1495, %v773
        %v1709 = vmul.f32 %v1693, %v1693
        %v1710 = vmul.f32 %v1694, %v1694
        %v1711 = vmul.f32 %v1695, %v1695
        %v1712 = vmul.f32 %v1696, %v1696
        %v1713 = vmul.f32 %v1697, %v1697
        %v1714 = vmul.f32 %v1698, %v1698
        %v1715 = vmul.f32 %v1699, %v1699
        %v1716 = vmul.f32 %v1700, %v1700
        %v1717 = vmul.f32 %v1701, %v1701
        %v1718 = vmul.f32 %v1702, %v1702
        %v1719 = vmul.f32 %v1703, %v1703
        %v1720 = vmul.f32 %v1704, %v1704
        %v1721 = vmul.f32 %v1705, %v1705
        %v1722 = vmul.f32 %v1706, %v1706
        %v1723 = vmul.f32 %v1707, %v1707
        %v1724 = vmul.f32 %v1708, %v1708
        %v1725 = vmul.f32 %v1709, %v1693
        %v1726 = vmul.f32 %v1710, %v1694
        %v1727 = vmul.f32 %v1711, %v1695
        %v1728 = vmul.f32 %v1712, %v1696
        %v1729 = vmul.f32 %v1713, %v1697
        %v1730 = vmul.f32 %v1714, %v1698
        %v1731 = vmul.f32 %v1715, %v1699
        %v1732 = vmul.f32 %v1716, %v1700
        %v1733 = vmul.f32 %v1717, %v1701
        %v1734 = vmul.f32 %v1718, %v1702
        %v1735 = vmul.f32 %v1719, %v1703
        %v1736 = vmul.f32 %v1720, %v1704
        %v1737 = vmul.f32 %v1721, %v1705
        %v1738 = vmul.f32 %v1722, %v1706
        %v1739 = vmul.f32 %v1723, %v1707
        %v1740 = vmul.f32 %v1724, %v1708
        %v1741 = vmul.f32 %v1725, %v1725
        %v1742 = vmul.f32 %v1726, %v1726
        %v1743 = vmul.f32 %v1727, %v1727
        %v1744 = vmul.f32 %v1728, %v1728
        %v1745 = vmul.f32 %v1729, %v1729
        %v1746 = vmul.f32 %v1730, %v1730
        %v1747 = vmul.f32 %v1731, %v1731
        %v1748 = vmul.f32 %v1732, %v1732
        %v1749 = vmul.f32 %v1733, %v1733
        %v1750 = vmul.f32 %v1734, %v1734
        %v1751 = vmul.f32 %v1735, %v1735
        %v1752 = vmul.f32 %v1736, %v1736
        %v1753 = vmul.f32 %v1737, %v1737
        %v1754 = vmul.f32 %v1738, %v1738
        %v1755 = vmul.f32 %v1739, %v1739
        %v1756 = vmul.f32 %v1740, %v1740
        %v1757 = vmul.f32 %v1725, 2.0
        %v1758 = vmul.f32 %v1726, 2.0
        %v1759 = vmul.f32 %v1727, 2.0
        %v1760 = vmul.f32 %v1728, 2.0
        %v1761 = vmul.f32 %v1729, 2.0
        %v1762 = vmul.f32 %v1730, 2.0
        %v1763 = vmul.f32 %v1731, 2.0
        %v1764 = vmul.f32 %v1732, 2.0
        %v1765 = vmul.f32 %v1733, 2.0
        %v1766 = vmul.f32 %v1734, 2.0
        %v1767 = vmul.f32 %v1735, 2.0
        %v1768 = vmul.f32 %v1736, 2.0
        %v1769 = vmul.f32 %v1737, 2.0
        %v1770 = vmul.f32 %v1738, 2.0
        %v1771 = vmul.f32 %v1739, 2.0
        %v1772 = vmul.f32 %v1740, 2.0
        %v1773 = vsub.f32 %v1741, %v1757
        %v1774 = vsub.f32 %v1742, %v1758
        %v1775 = vsub.f32 %v1743, %v1759
        %v1776 = vsub.f32 %v1744, %v1760
        %v1777 = vsub.f32 %v1745, %v1761
        %v1778 = vsub.f32 %v1746, %v1762
        %v1779 = vsub.f32 %v1747, %v1763
        %v1780 = vsub.f32 %v1748, %v1764
        %v1781 = vsub.f32 %v1749, %v1765
        %v1782 = vsub.f32 %v1750, %v1766
        %v1783 = vsub.f32 %v1751, %v1767
        %v1784 = vsub.f32 %v1752, %v1768
        %v1785 = vsub.f32 %v1753, %v1769
        %v1786 = vsub.f32 %v1754, %v1770
        %v1787 = vsub.f32 %v1755, %v1771
        %v1788 = vsub.f32 %v1756, %v1772
        %v1789 = vmul.f32 %v1581, %v1773
        %v1790 = vmul.f32 %v1582, %v1774
        %v1791 = vmul.f32 %v1583, %v1775
        %v1792 = vmul.f32 %v1584, %v1776
        %v1793 = vmul.f32 %v1585, %v1777
        %v1794 = vmul.f32 %v1586, %v1778
        %v1795 = vmul.f32 %v1587, %v1779
        %v1796 = vmul.f32 %v1588, %v1780
        %v1797 = vmul.f32 %v1589, %v1781
        %v1798 = vmul.f32 %v1590, %v1782
        %v1799 = vmul.f32 %v1591, %v1783
        %v1800 = vmul.f32 %v1592, %v1784
        %v1801 = vmul.f32 %v1593, %v1785
        %v1802 = vmul.f32 %v1594, %v1786
        %v1803 = vmul.f32 %v1595, %v1787
        %v1804 = vmul.f32 %v1596, %v1788
        %v1805 = vmul.f32 %v1480, 0.049382716
        %v1806 = vmul.f32 %v1481, 0.049382716
        %v1807 = vmul.f32 %v1482, 0.049382716
        %v1808 = vmul.f32 %v1483, 0.049382716
        %v1809 = vmul.f32 %v1484, 0.049382716
        %v1810 = vmul.f32 %v1485, 0.049382716
        %v1811 = vmul.f32 %v1486, 0.049382716
        %v1812 = vmul.f32 %v1487, 0.049382716
        %v1813 = vmul.f32 %v1488, 0.049382716
        %v1814 = vmul.f32 %v1489, 0.049382716
        %v1815 = vmul.f32 %v1490, 0.049382716
        %v1816 = vmul.f32 %v1491, 0.049382716
        %v1817 = vmul.f32 %v1492, 0.049382716
        %v1818 = vmul.f32 %v1493, 0.049382716
        %v1819 = vmul.f32 %v1494, 0.049382716
        %v1820 = vmul.f32 %v1495, 0.049382716
        %v1821 = vmul.f32 %v1805, %v1805
        %v1822 = vmul.f32 %v1806, %v1806
        %v1823 = vmul.f32 %v1807, %v1807
        %v1824 = vmul.f32 %v1808, %v1808
        %v1825 = vmul.f32 %v1809, %v1809
        %v1826 = vmul.f32 %v1810, %v1810
        %v1827 = vmul.f32 %v1811, %v1811
        %v1828 = vmul.f32 %v1812, %v1812
        %v1829 = vmul.f32 %v1813, %v1813
        %v1830 = vmul.f32 %v1814, %v1814
        %v1831 = vmul.f32 %v1815, %v1815
        %v1832 = vmul.f32 %v1816, %v1816
        %v1833 = vmul.f32 %v1817, %v1817
        %v1834 = vmul.f32 %v1818, %v1818
        %v1835 = vmul.f32 %v1819, %v1819
        %v1836 = vmul.f32 %v1820, %v1820
        %v1837 = vmul.f32 %v1821, %v1805
        %v1838 = vmul.f32 %v1822, %v1806
        %v1839 = vmul.f32 %v1823, %v1807
        %v1840 = vmul.f32 %v1824, %v1808
        %v1841 = vmul.f32 %v1825, %v1809
        %v1842 = vmul.f32 %v1826, %v1810
        %v1843 = vmul.f32 %v1827, %v1811
        %v1844 = vmul.f32 %v1828, %v1812
        %v1845 = vmul.f32 %v1829, %v1813
        %v1846 = vmul.f32 %v1830, %v1814
        %v1847 = vmul.f32 %v1831, %v1815
        %v1848 = vmul.f32 %v1832, %v1816
        %v1849 = vmul.f32 %v1833, %v1817
        %v1850 = vmul.f32 %v1834, %v1818
        %v1851 = vmul.f32 %v1835, %v1819
        %v1852 = vmul.f32 %v1836, %v1820
        %v1853 = vmul.f32 %v1837, %v1837
        %v1854 = vmul.f32 %v1838, %v1838
        %v1855 = vmul.f32 %v1839, %v1839
        %v1856 = vmul.f32 %v1840, %v1840
        %v1857 = vmul.f32 %v1841, %v1841
        %v1858 = vmul.f32 %v1842, %v1842
        %v1859 = vmul.f32 %v1843, %v1843
        %v1860 = vmul.f32 %v1844, %v1844
        %v1861 = vmul.f32 %v1845, %v1845
        %v1862 = vmul.f32 %v1846, %v1846
        %v1863 = vmul.f32 %v1847, %v1847
        %v1864 = vmul.f32 %v1848, %v1848
        %v1865 = vmul.f32 %v1849, %v1849
        %v1866 = vmul.f32 %v1850, %v1850
        %v1867 = vmul.f32 %v1851, %v1851
        %v1868 = vmul.f32 %v1852, %v1852
        %v1869 = vmul.f32 %v1837, 2.0
        %v1870 = vmul.f32 %v1838, 2.0
        %v1871 = vmul.f32 %v1839, 2.0
        %v1872 = vmul.f32 %v1840, 2.0
        %v1873 = vmul.f32 %v1841, 2.0
        %v1874 = vmul.f32 %v1842, 2.0
        %v1875 = vmul.f32 %v1843, 2.0
        %v1876 = vmul.f32 %v1844, 2.0
        %v1877 = vmul.f32 %v1845, 2.0
        %v1878 = vmul.f32 %v1846, 2.0
        %v1879 = vmul.f32 %v1847, 2.0
        %v1880 = vmul.f32 %v1848, 2.0
        %v1881 = vmul.f32 %v1849, 2.0
        %v1882 = vmul.f32 %v1850, 2.0
        %v1883 = vmul.f32 %v1851, 2.0
        %v1884 = vmul.f32 %v1852, 2.0
        %v1885 = vsub.f32 %v1853, %v1869
        %v1886 = vsub.f32 %v1854, %v1870
        %v1887 = vsub.f32 %v1855, %v1871
        %v1888 = vsub.f32 %v1856, %v1872
        %v1889 = vsub.f32 %v1857, %v1873
        %v1890 = vsub.f32 %v1858, %v1874
        %v1891 = vsub.f32 %v1859, %v1875
        %v1892 = vsub.f32 %v1860, %v1876
        %v1893 = vsub.f32 %v1861, %v1877
        %v1894 = vsub.f32 %v1862, %v1878
        %v1895 = vsub.f32 %v1863, %v1879
        %v1896 = vsub.f32 %v1864, %v1880
        %v1897 = vsub.f32 %v1865, %v1881
        %v1898 = vsub.f32 %v1866, %v1882
        %v1899 = vsub.f32 %v1867, %v1883
        %v1900 = vsub.f32 %v1868, %v1884
        %v1901 = vmul.f32 %v1581, %v1885
        %v1902 = vmul.f32 %v1582, %v1886
        %v1903 = vmul.f32 %v1583, %v1887
        %v1904 = vmul.f32 %v1584, %v1888
        %v1905 = vmul.f32 %v1585, %v1889
        %v1906 = vmul.f32 %v1586, %v1890
        %v1907 = vmul.f32 %v1587, %v1891
        %v1908 = vmul.f32 %v1588, %v1892
        %v1909 = vmul.f32 %v1589, %v1893
        %v1910 = vmul.f32 %v1590, %v1894
        %v1911 = vmul.f32 %v1591, %v1895
        %v1912 = vmul.f32 %v1592, %v1896
        %v1913 = vmul.f32 %v1593, %v1897
        %v1914 = vmul.f32 %v1594, %v1898
        %v1915 = vmul.f32 %v1595, %v1899
        %v1916 = vmul.f32 %v1596, %v1900
        %v1917 = vmul.f32 %v1581, -2.6666667
        %v1918 = vmul.f32 %v1582, -2.6666667
        %v1919 = vmul.f32 %v1583, -2.6666667
        %v1920 = vmul.f32 %v1584, -2.6666667
        %v1921 = vmul.f32 %v1585, -2.6666667
        %v1922 = vmul.f32 %v1586, -2.6666667
        %v1923 = vmul.f32 %v1587, -2.6666667
        %v1924 = vmul.f32 %v1588, -2.6666667
        %v1925 = vmul.f32 %v1589, -2.6666667
        %v1926 = vmul.f32 %v1590, -2.6666667
        %v1927 = vmul.f32 %v1591, -2.6666667
        %v1928 = vmul.f32 %v1592, -2.6666667
        %v1929 = vmul.f32 %v1593, -2.6666667
        %v1930 = vmul.f32 %v1594, -2.6666667
        %v1931 = vmul.f32 %v1595, -2.6666667
        %v1932 = vmul.f32 %v1596, -2.6666667
        %v1933 = vsub.f32 %v1853, %v1837
        %v1934 = vsub.f32 %v1854, %v1838
        %v1935 = vsub.f32 %v1855, %v1839
        %v1936 = vsub.f32 %v1856, %v1840
        %v1937 = vsub.f32 %v1857, %v1841
        %v1938 = vsub.f32 %v1858, %v1842
        %v1939 = vsub.f32 %v1859, %v1843
        %v1940 = vsub.f32 %v1860, %v1844
        %v1941 = vsub.f32 %v1861, %v1845
        %v1942 = vsub.f32 %v1862, %v1846
        %v1943 = vsub.f32 %v1863, %v1847
        %v1944 = vsub.f32 %v1864, %v1848
        %v1945 = vsub.f32 %v1865, %v1849
        %v1946 = vsub.f32 %v1866, %v1850
        %v1947 = vsub.f32 %v1867, %v1851
        %v1948 = vsub.f32 %v1868, %v1852
        %v1949 = vmul.f32 %v1917, %v1933
        %v1950 = vmul.f32 %v1918, %v1934
        %v1951 = vmul.f32 %v1919, %v1935
        %v1952 = vmul.f32 %v1920, %v1936
        %v1953 = vmul.f32 %v1921, %v1937
        %v1954 = vmul.f32 %v1922, %v1938
        %v1955 = vmul.f32 %v1923, %v1939
        %v1956 = vmul.f32 %v1924, %v1940
        %v1957 = vmul.f32 %v1925, %v1941
        %v1958 = vmul.f32 %v1926, %v1942
        %v1959 = vmul.f32 %v1927, %v1943
        %v1960 = vmul.f32 %v1928, %v1944
        %v1961 = vmul.f32 %v1929, %v1945
        %v1962 = vmul.f32 %v1930, %v1946
        %v1963 = vmul.f32 %v1931, %v1947
        %v1964 = vmul.f32 %v1932, %v1948
        %v1965 = vsub.f32 %v742, 4.5
        %v1966 = vsub.f32 %v743, 4.5
        %v1967 = vsub.f32 %v744, 4.5
        %v1968 = vsub.f32 %v745, 4.5
        %v1969 = vsub.f32 %v746, 4.5
        %v1970 = vsub.f32 %v747, 4.5
        %v1971 = vsub.f32 %v748, 4.5
        %v1972 = vsub.f32 %v749, 4.5
        %v1973 = vsub.f32 %v750, 4.5
        %v1974 = vsub.f32 %v751, 4.5
        %v1975 = vsub.f32 %v752, 4.5
        %v1976 = vsub.f32 %v753, 4.5
        %v1977 = vsub.f32 %v754, 4.5
        %v1978 = vsub.f32 %v755, 4.5
        %v1979 = vsub.f32 %v756, 4.5
        %v1980 = vsub.f32 %v757, 4.5
        %v1981 = vmul.f32 %v1965, 0.6666667
        %v1982 = vmul.f32 %v1966, 0.6666667
        %v1983 = vmul.f32 %v1967, 0.6666667
        %v1984 = vmul.f32 %v1968, 0.6666667
        %v1985 = vmul.f32 %v1969, 0.6666667
        %v1986 = vmul.f32 %v1970, 0.6666667
        %v1987 = vmul.f32 %v1971, 0.6666667
        %v1988 = vmul.f32 %v1972, 0.6666667
        %v1989 = vmul.f32 %v1973, 0.6666667
        %v1990 = vmul.f32 %v1974, 0.6666667
        %v1991 = vmul.f32 %v1975, 0.6666667
        %v1992 = vmul.f32 %v1976, 0.6666667
        %v1993 = vmul.f32 %v1977, 0.6666667
        %v1994 = vmul.f32 %v1978, 0.6666667
        %v1995 = vmul.f32 %v1979, 0.6666667
        %v1996 = vmul.f32 %v1980, 0.6666667
        %v1997 = vmul.f32 %v1981, %v1981
        %v1998 = vmul.f32 %v1982, %v1982
        %v1999 = vmul.f32 %v1983, %v1983
        %v2000 = vmul.f32 %v1984, %v1984
        %v2001 = vmul.f32 %v1985, %v1985
        %v2002 = vmul.f32 %v1986, %v1986
        %v2003 = vmul.f32 %v1987, %v1987
        %v2004 = vmul.f32 %v1988, %v1988
        %v2005 = vmul.f32 %v1989, %v1989
        %v2006 = vmul.f32 %v1990, %v1990
        %v2007 = vmul.f32 %v1991, %v1991
        %v2008 = vmul.f32 %v1992, %v1992
        %v2009 = vmul.f32 %v1993, %v1993
        %v2010 = vmul.f32 %v1994, %v1994
        %v2011 = vmul.f32 %v1995, %v1995
        %v2012 = vmul.f32 %v1996, %v1996
        %v2013 = vmul.f32 %v1997, %v1981
        %v2014 = vmul.f32 %v1998, %v1982
        %v2015 = vmul.f32 %v1999, %v1983
        %v2016 = vmul.f32 %v2000, %v1984
        %v2017 = vmul.f32 %v2001, %v1985
        %v2018 = vmul.f32 %v2002, %v1986
        %v2019 = vmul.f32 %v2003, %v1987
        %v2020 = vmul.f32 %v2004, %v1988
        %v2021 = vmul.f32 %v2005, %v1989
        %v2022 = vmul.f32 %v2006, %v1990
        %v2023 = vmul.f32 %v2007, %v1991
        %v2024 = vmul.f32 %v2008, %v1992
        %v2025 = vmul.f32 %v2009, %v1993
        %v2026 = vmul.f32 %v2010, %v1994
        %v2027 = vmul.f32 %v2011, %v1995
        %v2028 = vmul.f32 %v2012, %v1996
        %v2029 = vmul.f32 %v2013, 2.0
        %v2030 = vmul.f32 %v2014, 2.0
        %v2031 = vmul.f32 %v2015, 2.0
        %v2032 = vmul.f32 %v2016, 2.0
        %v2033 = vmul.f32 %v2017, 2.0
        %v2034 = vmul.f32 %v2018, 2.0
        %v2035 = vmul.f32 %v2019, 2.0
        %v2036 = vmul.f32 %v2020, 2.0
        %v2037 = vmul.f32 %v2021, 2.0
        %v2038 = vmul.f32 %v2022, 2.0
        %v2039 = vmul.f32 %v2023, 2.0
        %v2040 = vmul.f32 %v2024, 2.0
        %v2041 = vmul.f32 %v2025, 2.0
        %v2042 = vmul.f32 %v2026, 2.0
        %v2043 = vmul.f32 %v2027, 2.0
        %v2044 = vmul.f32 %v2028, 2.0
        %v2045 = vmul.f32 %v1997, 3.0
        %v2046 = vmul.f32 %v1998, 3.0
        %v2047 = vmul.f32 %v1999, 3.0
        %v2048 = vmul.f32 %v2000, 3.0
        %v2049 = vmul.f32 %v2001, 3.0
        %v2050 = vmul.f32 %v2002, 3.0
        %v2051 = vmul.f32 %v2003, 3.0
        %v2052 = vmul.f32 %v2004, 3.0
        %v2053 = vmul.f32 %v2005, 3.0
        %v2054 = vmul.f32 %v2006, 3.0
        %v2055 = vmul.f32 %v2007, 3.0
        %v2056 = vmul.f32 %v2008, 3.0
        %v2057 = vmul.f32 %v2009, 3.0
        %v2058 = vmul.f32 %v2010, 3.0
        %v2059 = vmul.f32 %v2011, 3.0
        %v2060 = vmul.f32 %v2012, 3.0
        %v2061 = vsub.f32 %v2029, %v2045
        %v2062 = vsub.f32 %v2030, %v2046
        %v2063 = vsub.f32 %v2031, %v2047
        %v2064 = vsub.f32 %v2032, %v2048
        %v2065 = vsub.f32 %v2033, %v2049
        %v2066 = vsub.f32 %v2034, %v2050
        %v2067 = vsub.f32 %v2035, %v2051
        %v2068 = vsub.f32 %v2036, %v2052
        %v2069 = vsub.f32 %v2037, %v2053
        %v2070 = vsub.f32 %v2038, %v2054
        %v2071 = vsub.f32 %v2039, %v2055
        %v2072 = vsub.f32 %v2040, %v2056
        %v2073 = vsub.f32 %v2041, %v2057
        %v2074 = vsub.f32 %v2042, %v2058
        %v2075 = vsub.f32 %v2043, %v2059
        %v2076 = vsub.f32 %v2044, %v2060
        %v2077 = vadd.f32 %v2061, 1.0
        %v2078 = vadd.f32 %v2062, 1.0
        %v2079 = vadd.f32 %v2063, 1.0
        %v2080 = vadd.f32 %v2064, 1.0
        %v2081 = vadd.f32 %v2065, 1.0
        %v2082 = vadd.f32 %v2066, 1.0
        %v2083 = vadd.f32 %v2067, 1.0
        %v2084 = vadd.f32 %v2068, 1.0
        %v2085 = vadd.f32 %v2069, 1.0
        %v2086 = vadd.f32 %v2070, 1.0
        %v2087 = vadd.f32 %v2071, 1.0
        %v2088 = vadd.f32 %v2072, 1.0
        %v2089 = vadd.f32 %v2073, 1.0
        %v2090 = vadd.f32 %v2074, 1.0
        %v2091 = vadd.f32 %v2075, 1.0
        %v2092 = vadd.f32 %v2076, 1.0
        %v2093 = vmul.f32 %v2077, %v1901
        %v2094 = vmul.f32 %v2078, %v1902
        %v2095 = vmul.f32 %v2079, %v1903
        %v2096 = vmul.f32 %v2080, %v1904
        %v2097 = vmul.f32 %v2081, %v1905
        %v2098 = vmul.f32 %v2082, %v1906
        %v2099 = vmul.f32 %v2083, %v1907
        %v2100 = vmul.f32 %v2084, %v1908
        %v2101 = vmul.f32 %v2085, %v1909
        %v2102 = vmul.f32 %v2086, %v1910
        %v2103 = vmul.f32 %v2087, %v1911
        %v2104 = vmul.f32 %v2088, %v1912
        %v2105 = vmul.f32 %v2089, %v1913
        %v2106 = vmul.f32 %v2090, %v1914
        %v2107 = vmul.f32 %v2091, %v1915
        %v2108 = vmul.f32 %v2092, %v1916
        %v2109 = vmul.f32 %v1997, 2.0
        %v2110 = vmul.f32 %v1998, 2.0
        %v2111 = vmul.f32 %v1999, 2.0
        %v2112 = vmul.f32 %v2000, 2.0
        %v2113 = vmul.f32 %v2001, 2.0
        %v2114 = vmul.f32 %v2002, 2.0
        %v2115 = vmul.f32 %v2003, 2.0
        %v2116 = vmul.f32 %v2004, 2.0
        %v2117 = vmul.f32 %v2005, 2.0
        %v2118 = vmul.f32 %v2006, 2.0
        %v2119 = vmul.f32 %v2007, 2.0
        %v2120 = vmul.f32 %v2008, 2.0
        %v2121 = vmul.f32 %v2009, 2.0
        %v2122 = vmul.f32 %v2010, 2.0
        %v2123 = vmul.f32 %v2011, 2.0
        %v2124 = vmul.f32 %v2012, 2.0
        %v2125 = vsub.f32 %v2013, %v2109
        %v2126 = vsub.f32 %v2014, %v2110
        %v2127 = vsub.f32 %v2015, %v2111
        %v2128 = vsub.f32 %v2016, %v2112
        %v2129 = vsub.f32 %v2017, %v2113
        %v2130 = vsub.f32 %v2018, %v2114
        %v2131 = vsub.f32 %v2019, %v2115
        %v2132 = vsub.f32 %v2020, %v2116
        %v2133 = vsub.f32 %v2021, %v2117
        %v2134 = vsub.f32 %v2022, %v2118
        %v2135 = vsub.f32 %v2023, %v2119
        %v2136 = vsub.f32 %v2024, %v2120
        %v2137 = vsub.f32 %v2025, %v2121
        %v2138 = vsub.f32 %v2026, %v2122
        %v2139 = vsub.f32 %v2027, %v2123
        %v2140 = vsub.f32 %v2028, %v2124
        %v2141 = vadd.f32 %v2125, %v1981
        %v2142 = vadd.f32 %v2126, %v1982
        %v2143 = vadd.f32 %v2127, %v1983
        %v2144 = vadd.f32 %v2128, %v1984
        %v2145 = vadd.f32 %v2129, %v1985
        %v2146 = vadd.f32 %v2130, %v1986
        %v2147 = vadd.f32 %v2131, %v1987
        %v2148 = vadd.f32 %v2132, %v1988
        %v2149 = vadd.f32 %v2133, %v1989
        %v2150 = vadd.f32 %v2134, %v1990
        %v2151 = vadd.f32 %v2135, %v1991
        %v2152 = vadd.f32 %v2136, %v1992
        %v2153 = vadd.f32 %v2137, %v1993
        %v2154 = vadd.f32 %v2138, %v1994
        %v2155 = vadd.f32 %v2139, %v1995
        %v2156 = vadd.f32 %v2140, %v1996
        %v2157 = vmul.f32 %v2141, 1.5
        %v2158 = vmul.f32 %v2142, 1.5
        %v2159 = vmul.f32 %v2143, 1.5
        %v2160 = vmul.f32 %v2144, 1.5
        %v2161 = vmul.f32 %v2145, 1.5
        %v2162 = vmul.f32 %v2146, 1.5
        %v2163 = vmul.f32 %v2147, 1.5
        %v2164 = vmul.f32 %v2148, 1.5
        %v2165 = vmul.f32 %v2149, 1.5
        %v2166 = vmul.f32 %v2150, 1.5
        %v2167 = vmul.f32 %v2151, 1.5
        %v2168 = vmul.f32 %v2152, 1.5
        %v2169 = vmul.f32 %v2153, 1.5
        %v2170 = vmul.f32 %v2154, 1.5
        %v2171 = vmul.f32 %v2155, 1.5
        %v2172 = vmul.f32 %v2156, 1.5
        %v2173 = vmul.f32 %v2157, %v1949
        %v2174 = vmul.f32 %v2158, %v1950
        %v2175 = vmul.f32 %v2159, %v1951
        %v2176 = vmul.f32 %v2160, %v1952
        %v2177 = vmul.f32 %v2161, %v1953
        %v2178 = vmul.f32 %v2162, %v1954
        %v2179 = vmul.f32 %v2163, %v1955
        %v2180 = vmul.f32 %v2164, %v1956
        %v2181 = vmul.f32 %v2165, %v1957
        %v2182 = vmul.f32 %v2166, %v1958
        %v2183 = vmul.f32 %v2167, %v1959
        %v2184 = vmul.f32 %v2168, %v1960
        %v2185 = vmul.f32 %v2169, %v1961
        %v2186 = vmul.f32 %v2170, %v1962
        %v2187 = vmul.f32 %v2171, %v1963
        %v2188 = vmul.f32 %v2172, %v1964
        %v2189 = vadd.f32 %v2093, %v2173
        %v2190 = vadd.f32 %v2094, %v2174
        %v2191 = vadd.f32 %v2095, %v2175
        %v2192 = vadd.f32 %v2096, %v2176
        %v2193 = vadd.f32 %v2097, %v2177
        %v2194 = vadd.f32 %v2098, %v2178
        %v2195 = vadd.f32 %v2099, %v2179
        %v2196 = vadd.f32 %v2100, %v2180
        %v2197 = vadd.f32 %v2101, %v2181
        %v2198 = vadd.f32 %v2102, %v2182
        %v2199 = vadd.f32 %v2103, %v2183
        %v2200 = vadd.f32 %v2104, %v2184
        %v2201 = vadd.f32 %v2105, %v2185
        %v2202 = vadd.f32 %v2106, %v2186
        %v2203 = vadd.f32 %v2107, %v2187
        %v2204 = vadd.f32 %v2108, %v2188
        %vm2205 = vcmp.lt.f32.partialorder %v742, %v1597
        %vm2206 = vcmp.lt.f32.partialorder %v743, %v1598
        %vm2207 = vcmp.lt.f32.partialorder %v744, %v1599
        %vm2208 = vcmp.lt.f32.partialorder %v745, %v1600
        %vm2209 = vcmp.lt.f32.partialorder %v746, %v1601
        %vm2210 = vcmp.lt.f32.partialorder %v747, %v1602
        %vm2211 = vcmp.lt.f32.partialorder %v748, %v1603
        %vm2212 = vcmp.lt.f32.partialorder %v749, %v1604
        %vm2213 = vcmp.lt.f32.partialorder %v750, %v1605
        %vm2214 = vcmp.lt.f32.partialorder %v751, %v1606
        %vm2215 = vcmp.lt.f32.partialorder %v752, %v1607
        %vm2216 = vcmp.lt.f32.partialorder %v753, %v1608
        %vm2217 = vcmp.lt.f32.partialorder %v754, %v1609
        %vm2218 = vcmp.lt.f32.partialorder %v755, %v1610
        %vm2219 = vcmp.lt.f32.partialorder %v756, %v1611
        %vm2220 = vcmp.lt.f32.partialorder %v757, %v1612
        %vm2221 = vcmp.lt.f32.partialorder %v742, 4.5
        %vm2222 = vcmp.lt.f32.partialorder %v743, 4.5
        %vm2223 = vcmp.lt.f32.partialorder %v744, 4.5
        %vm2224 = vcmp.lt.f32.partialorder %v745, 4.5
        %vm2225 = vcmp.lt.f32.partialorder %v746, 4.5
        %vm2226 = vcmp.lt.f32.partialorder %v747, 4.5
        %vm2227 = vcmp.lt.f32.partialorder %v748, 4.5
        %vm2228 = vcmp.lt.f32.partialorder %v749, 4.5
        %vm2229 = vcmp.lt.f32.partialorder %v750, 4.5
        %vm2230 = vcmp.lt.f32.partialorder %v751, 4.5
        %vm2231 = vcmp.lt.f32.partialorder %v752, 4.5
        %vm2232 = vcmp.lt.f32.partialorder %v753, 4.5
        %vm2233 = vcmp.lt.f32.partialorder %v754, 4.5
        %vm2234 = vcmp.lt.f32.partialorder %v755, 4.5
        %vm2235 = vcmp.lt.f32.partialorder %v756, 4.5
        %vm2236 = vcmp.lt.f32.partialorder %v757, 4.5
        %vm2237 = vcmp.lt.f32.partialorder %v742, 6.0
        %vm2238 = vcmp.lt.f32.partialorder %v743, 6.0
        %vm2239 = vcmp.lt.f32.partialorder %v744, 6.0
        %vm2240 = vcmp.lt.f32.partialorder %v745, 6.0
        %vm2241 = vcmp.lt.f32.partialorder %v746, 6.0
        %vm2242 = vcmp.lt.f32.partialorder %v747, 6.0
        %vm2243 = vcmp.lt.f32.partialorder %v748, 6.0
        %vm2244 = vcmp.lt.f32.partialorder %v749, 6.0
        %vm2245 = vcmp.lt.f32.partialorder %v750, 6.0
        %vm2246 = vcmp.lt.f32.partialorder %v751, 6.0
        %vm2247 = vcmp.lt.f32.partialorder %v752, 6.0
        %vm2248 = vcmp.lt.f32.partialorder %v753, 6.0
        %vm2249 = vcmp.lt.f32.partialorder %v754, 6.0
        %vm2250 = vcmp.lt.f32.partialorder %v755, 6.0
        %vm2251 = vcmp.lt.f32.partialorder %v756, 6.0
        %vm2252 = vcmp.lt.f32.partialorder %v757, 6.0
        %v2253 = vsel %vm2237, %v2189, 0.0
        %v2254 = vsel %vm2238, %v2190, 0.0
        %v2255 = vsel %vm2239, %v2191, 0.0
        %v2256 = vsel %vm2240, %v2192, 0.0
        %v2257 = vsel %vm2241, %v2193, 0.0
        %v2258 = vsel %vm2242, %v2194, 0.0
        %v2259 = vsel %vm2243, %v2195, 0.0
        %v2260 = vsel %vm2244, %v2196, 0.0
        %v2261 = vsel %vm2245, %v2197, 0.0
        %v2262 = vsel %vm2246, %v2198, 0.0
        %v2263 = vsel %vm2247, %v2199, 0.0
        %v2264 = vsel %vm2248, %v2200, 0.0
        %v2265 = vsel %vm2249, %v2201, 0.0
        %v2266 = vsel %vm2250, %v2202, 0.0
        %v2267 = vsel %vm2251, %v2203, 0.0
        %v2268 = vsel %vm2252, %v2204, 0.0
        %v2269 = vsel %vm2221, %v1789, %v2253
        %v2270 = vsel %vm2222, %v1790, %v2254
        %v2271 = vsel %vm2223, %v1791, %v2255
        %v2272 = vsel %vm2224, %v1792, %v2256
        %v2273 = vsel %vm2225, %v1793, %v2257
        %v2274 = vsel %vm2226, %v1794, %v2258
        %v2275 = vsel %vm2227, %v1795, %v2259
        %v2276 = vsel %vm2228, %v1796, %v2260
        %v2277 = vsel %vm2229, %v1797, %v2261
        %v2278 = vsel %vm2230, %v1798, %v2262
        %v2279 = vsel %vm2231, %v1799, %v2263
        %v2280 = vsel %vm2232, %v1800, %v2264
        %v2281 = vsel %vm2233, %v1801, %v2265
        %v2282 = vsel %vm2234, %v1802, %v2266
        %v2283 = vsel %vm2235, %v1803, %v2267
        %v2284 = vsel %vm2236, %v1804, %v2268
        %v2285 = vsel %vm2205, %v1677, %v2269
        %v2286 = vsel %vm2206, %v1678, %v2270
        %v2287 = vsel %vm2207, %v1679, %v2271
        %v2288 = vsel %vm2208, %v1680, %v2272
        %v2289 = vsel %vm2209, %v1681, %v2273
        %v2290 = vsel %vm2210, %v1682, %v2274
        %v2291 = vsel %vm2211, %v1683, %v2275
        %v2292 = vsel %vm2212, %v1684, %v2276
        %v2293 = vsel %vm2213, %v1685, %v2277
        %v2294 = vsel %vm2214, %v1686, %v2278
        %v2295 = vsel %vm2215, %v1687, %v2279
        %v2296 = vsel %vm2216, %v1688, %v2280
        %v2297 = vsel %vm2217, %v1689, %v2281
        %v2298 = vsel %vm2218, %v1690, %v2282
        %v2299 = vsel %vm2219, %v1691, %v2283
        %v2300 = vsel %vm2220, %v1692, %v2284
        %v2301 = vld [vmem:[%s276 + $0x7] sm:$0x1]
        %v2302 = vld [vmem:[%s276 + $0x5] sm:$0x1]
        %v2303 = vld [vmem:[%s276 + $0x6] sm:$0x1]
        %v2304 = vmul.f32 %v1464, 0.89
        %v2305 = vmul.f32 %v1465, 0.89
        %v2306 = vmul.f32 %v1466, 0.89
        %v2307 = vmul.f32 %v1467, 0.89
        %v2308 = vmul.f32 %v1468, 0.89
        %v2309 = vmul.f32 %v1469, 0.89
        %v2310 = vmul.f32 %v1470, 0.89
        %v2311 = vmul.f32 %v1471, 0.89
        %v2312 = vmul.f32 %v1472, 0.89
        %v2313 = vmul.f32 %v1473, 0.89
        %v2314 = vmul.f32 %v1474, 0.89
        %v2315 = vmul.f32 %v1475, 0.89
        %v2316 = vmul.f32 %v1476, 0.89
        %v2317 = vmul.f32 %v1477, 0.89
        %v2318 = vmul.f32 %v1478, 0.89
        %v2319 = vmul.f32 %v1479, 0.89
        %v2320 = vmul.f32 %v2304, %v2304
        %v2321 = vmul.f32 %v2305, %v2305
        %v2322 = vmul.f32 %v2306, %v2306
        %v2323 = vmul.f32 %v2307, %v2307
        %v2324 = vmul.f32 %v2308, %v2308
        %v2325 = vmul.f32 %v2309, %v2309
        %v2326 = vmul.f32 %v2310, %v2310
        %v2327 = vmul.f32 %v2311, %v2311
        %v2328 = vmul.f32 %v2312, %v2312
        %v2329 = vmul.f32 %v2313, %v2313
        %v2330 = vmul.f32 %v2314, %v2314
        %v2331 = vmul.f32 %v2315, %v2315
        %v2332 = vmul.f32 %v2316, %v2316
        %v2333 = vmul.f32 %v2317, %v2317
        %v2334 = vmul.f32 %v2318, %v2318
        %v2335 = vmul.f32 %v2319, %v2319
        %v2336 = vmul.f32 %v1496, %v1496
        %v2337 = vmul.f32 %v1497, %v1497
        %v2338 = vmul.f32 %v1498, %v1498
        %v2339 = vmul.f32 %v1499, %v1499
        %v2340 = vmul.f32 %v1500, %v1500
        %v2341 = vmul.f32 %v1501, %v1501
        %v2342 = vmul.f32 %v1502, %v1502
        %v2343 = vmul.f32 %v1503, %v1503
        %v2344 = vmul.f32 %v1504, %v1504
        %v2345 = vmul.f32 %v1505, %v1505
        %v2346 = vmul.f32 %v1506, %v1506
        %v2347 = vmul.f32 %v1507, %v1507
        %v2348 = vmul.f32 %v1508, %v1508
        %v2349 = vmul.f32 %v1509, %v1509
        %v2350 = vmul.f32 %v1510, %v1510
        %v2351 = vmul.f32 %v1511, %v1511
        %v2352 = vmul.f32 %v2336, 1.2624669
        %v2353 = vmul.f32 %v2337, 1.2624669
        %v2354 = vmul.f32 %v2338, 1.2624669
        %v2355 = vmul.f32 %v2339, 1.2624669
        %v2356 = vmul.f32 %v2340, 1.2624669
        %v2357 = vmul.f32 %v2341, 1.2624669
        %v2358 = vmul.f32 %v2342, 1.2624669
        %v2359 = vmul.f32 %v2343, 1.2624669
        %v2360 = vmul.f32 %v2344, 1.2624669
        %v2361 = vmul.f32 %v2345, 1.2624669
        %v2362 = vmul.f32 %v2346, 1.2624669
        %v2363 = vmul.f32 %v2347, 1.2624669
        %v2364 = vmul.f32 %v2348, 1.2624669
        %v2365 = vmul.f32 %v2349, 1.2624669
        %v2366 = vmul.f32 %v2350, 1.2624669
        %v2367 = vmul.f32 %v2351, 1.2624669
        %v2368 = vsub.f32 %v2304, %v883
        %v2369 = vsub.f32 %v2305, %v887
        %v2370 = vsub.f32 %v2306, %v891
        %v2371 = vsub.f32 %v2307, %v895
        %v2372 = vsub.f32 %v2308, %v899
        %v2373 = vsub.f32 %v2309, %v903
        %v2374 = vsub.f32 %v2310, %v907
        %v2375 = vsub.f32 %v2311, %v911
        %v2376 = vsub.f32 %v2312, %v915
        %v2377 = vsub.f32 %v2313, %v919
        %v2378 = vsub.f32 %v2314, %v923
        %v2379 = vsub.f32 %v2315, %v927
        %v2380 = vsub.f32 %v2316, %v931
        %v2381 = vsub.f32 %v2317, %v935
        %v2382 = vsub.f32 %v2318, %v939
        %v2383 = vsub.f32 %v2319, %v943
        %2384 = vset.pattern.permute.xlu0 6
        %2385 = vperm.xlu0 %2384, %v343
        %v2386 = vpop.permute.xlu0 %2385
        %2388 = vset.pattern.permute.xlu0 6
        %2389 = vperm.xlu0 %2388, %v344
        %v2390 = vpop.permute.xlu0 %2389
        %2392 = vset.pattern.permute.xlu0 6
        %2393 = vperm.xlu0 %2392, %v345
        %v2394 = vpop.permute.xlu0 %2393
        %2396 = vset.pattern.permute.xlu0 6
        %2397 = vperm.xlu0 %2396, %v346
        %v2398 = vpop.permute.xlu0 %2397
        %2400 = vset.pattern.permute.xlu0 6
        %2401 = vperm.xlu0 %2400, %v347
        %v2402 = vpop.permute.xlu0 %2401
        %2404 = vset.pattern.permute.xlu0 6
        %2405 = vperm.xlu0 %2404, %v348
        %v2406 = vpop.permute.xlu0 %2405
        %2408 = vset.pattern.permute.xlu0 6
        %2409 = vperm.xlu0 %2408, %v349
        %v2410 = vpop.permute.xlu0 %2409
        %2412 = vset.pattern.permute.xlu0 6
        %2413 = vperm.xlu0 %2412, %v350
        %v2414 = vpop.permute.xlu0 %2413
        %2416 = vset.pattern.permute.xlu0 6
        %2417 = vperm.xlu0 %2416, %v351
        %v2418 = vpop.permute.xlu0 %2417
        %2420 = vset.pattern.permute.xlu0 6
        %2421 = vperm.xlu0 %2420, %v352
        %v2422 = vpop.permute.xlu0 %2421
        %2424 = vset.pattern.permute.xlu0 6
        %2425 = vperm.xlu0 %2424, %v353
        %v2426 = vpop.permute.xlu0 %2425
        %2428 = vset.pattern.permute.xlu0 6
        %2429 = vperm.xlu0 %2428, %v354
        %v2430 = vpop.permute.xlu0 %2429
        %2432 = vset.pattern.permute.xlu0 6
        %2433 = vperm.xlu0 %2432, %v355
        %v2434 = vpop.permute.xlu0 %2433
        %2436 = vset.pattern.permute.xlu0 6
        %2437 = vperm.xlu0 %2436, %v356
        %v2438 = vpop.permute.xlu0 %2437
        %2440 = vset.pattern.permute.xlu0 6
        %2441 = vperm.xlu0 %2440, %v357
        %v2442 = vpop.permute.xlu0 %2441
        %2444 = vset.pattern.permute.xlu0 6
        %2445 = vperm.xlu0 %2444, %v358
        %v2446 = vpop.permute.xlu0 %2445
        %v2448 = vmul.f32 %v2368, %v2386
        %v2449 = vmul.f32 %v2369, %v2390
        %v2450 = vmul.f32 %v2370, %v2394
        %v2451 = vmul.f32 %v2371, %v2398
        %v2452 = vmul.f32 %v2372, %v2402
        %v2453 = vmul.f32 %v2373, %v2406
        %v2454 = vmul.f32 %v2374, %v2410
        %v2455 = vmul.f32 %v2375, %v2414
        %v2456 = vmul.f32 %v2376, %v2418
        %v2457 = vmul.f32 %v2377, %v2422
        %v2458 = vmul.f32 %v2378, %v2426
        %v2459 = vmul.f32 %v2379, %v2430
        %v2460 = vmul.f32 %v2380, %v2434
        %v2461 = vmul.f32 %v2381, %v2438
        %v2462 = vmul.f32 %v2382, %v2442
        %v2463 = vmul.f32 %v2383, %v2446
        %v2464 = vsub.f32 %v2304, %v948
        %v2465 = vsub.f32 %v2305, %v948
        %v2466 = vsub.f32 %v2306, %v948
        %v2467 = vsub.f32 %v2307, %v948
        %v2468 = vsub.f32 %v2308, %v948
        %v2469 = vsub.f32 %v2309, %v948
        %v2470 = vsub.f32 %v2310, %v948
        %v2471 = vsub.f32 %v2311, %v948
        %v2472 = vsub.f32 %v2312, %v948
        %v2473 = vsub.f32 %v2313, %v948
        %v2474 = vsub.f32 %v2314, %v948
        %v2475 = vsub.f32 %v2315, %v948
        %v2476 = vsub.f32 %v2316, %v948
        %v2477 = vsub.f32 %v2317, %v948
        %v2478 = vsub.f32 %v2318, %v948
        %v2479 = vsub.f32 %v2319, %v948
        %v2480 = vlaneseq
        %v2481 = vshrl.u32 %v2480, 7
        %v2482 = vsub.s32 0, %v2481
        %v2483 = vrot.slane %v2303, %v2482
        %v2484 = vmul.f32 %v2464, %v2483
        %v2485 = vmul.f32 %v2465, %v2483
        %v2486 = vmul.f32 %v2466, %v2483
        %v2487 = vmul.f32 %v2467, %v2483
        %v2488 = vmul.f32 %v2468, %v2483
        %v2489 = vmul.f32 %v2469, %v2483
        %v2490 = vmul.f32 %v2470, %v2483
        %v2491 = vmul.f32 %v2471, %v2483
        %v2492 = vmul.f32 %v2472, %v2483
        %v2493 = vmul.f32 %v2473, %v2483
        %v2494 = vmul.f32 %v2474, %v2483
        %v2495 = vmul.f32 %v2475, %v2483
        %v2496 = vmul.f32 %v2476, %v2483
        %v2497 = vmul.f32 %v2477, %v2483
        %v2498 = vmul.f32 %v2478, %v2483
        %v2499 = vmul.f32 %v2479, %v2483
        %v2500 = vsub.f32 0.0, %v2301
        %v2501 = vlaneseq
        %v2502 = vshrl.u32 %v2501, 7
        %v2503 = vsub.s32 0, %v2502
        %v2504 = vrot.slane %v2500, %v2503
        %2505 = vset.pattern.permute.xlu0 5
        %2506 = vperm.xlu0 %2505, %v343
        %v2507 = vpop.permute.xlu0 %2506
        %2509 = vset.pattern.permute.xlu0 5
        %2510 = vperm.xlu0 %2509, %v344
        %v2511 = vpop.permute.xlu0 %2510
        %2513 = vset.pattern.permute.xlu0 5
        %2514 = vperm.xlu0 %2513, %v345
        %v2515 = vpop.permute.xlu0 %2514
        %2517 = vset.pattern.permute.xlu0 5
        %2518 = vperm.xlu0 %2517, %v346
        %v2519 = vpop.permute.xlu0 %2518
        %2521 = vset.pattern.permute.xlu0 5
        %2522 = vperm.xlu0 %2521, %v347
        %v2523 = vpop.permute.xlu0 %2522
        %2525 = vset.pattern.permute.xlu0 5
        %2526 = vperm.xlu0 %2525, %v348
        %v2527 = vpop.permute.xlu0 %2526
        %2529 = vset.pattern.permute.xlu0 5
        %2530 = vperm.xlu0 %2529, %v349
        %v2531 = vpop.permute.xlu0 %2530
        %2533 = vset.pattern.permute.xlu0 5
        %2534 = vperm.xlu0 %2533, %v350
        %v2535 = vpop.permute.xlu0 %2534
        %2537 = vset.pattern.permute.xlu0 5
        %2538 = vperm.xlu0 %2537, %v351
        %v2539 = vpop.permute.xlu0 %2538
        %2541 = vset.pattern.permute.xlu0 5
        %2542 = vperm.xlu0 %2541, %v352
        %v2543 = vpop.permute.xlu0 %2542
        %2545 = vset.pattern.permute.xlu0 5
        %2546 = vperm.xlu0 %2545, %v353
        %v2547 = vpop.permute.xlu0 %2546
        %2549 = vset.pattern.permute.xlu0 5
        %2550 = vperm.xlu0 %2549, %v354
        %v2551 = vpop.permute.xlu0 %2550
        %2553 = vset.pattern.permute.xlu0 5
        %2554 = vperm.xlu0 %2553, %v355
        %v2555 = vpop.permute.xlu0 %2554
        %2557 = vset.pattern.permute.xlu0 5
        %2558 = vperm.xlu0 %2557, %v356
        %v2559 = vpop.permute.xlu0 %2558
        %2561 = vset.pattern.permute.xlu0 5
        %2562 = vperm.xlu0 %2561, %v357
        %v2563 = vpop.permute.xlu0 %2562
        %2565 = vset.pattern.permute.xlu0 5
        %2566 = vperm.xlu0 %2565, %v358
        %v2567 = vpop.permute.xlu0 %2566
        %v2569 = vmul.f32 %v2504, %v2507
        %v2570 = vmul.f32 %v2504, %v2511
        %v2571 = vmul.f32 %v2504, %v2515
        %v2572 = vmul.f32 %v2504, %v2519
        %v2573 = vmul.f32 %v2504, %v2523
        %v2574 = vmul.f32 %v2504, %v2527
        %v2575 = vmul.f32 %v2504, %v2531
        %v2576 = vmul.f32 %v2504, %v2535
        %v2577 = vmul.f32 %v2504, %v2539
        %v2578 = vmul.f32 %v2504, %v2543
        %v2579 = vmul.f32 %v2504, %v2547
        %v2580 = vmul.f32 %v2504, %v2551
        %v2581 = vmul.f32 %v2504, %v2555
        %v2582 = vmul.f32 %v2504, %v2559
        %v2583 = vmul.f32 %v2504, %v2563
        %v2584 = vmul.f32 %v2504, %v2567
        %v2585 = vsub.f32 0.0, %v2448
        %v2586 = vsub.f32 0.0, %v2449
        %v2587 = vsub.f32 0.0, %v2450
        %v2588 = vsub.f32 0.0, %v2451
        %v2589 = vsub.f32 0.0, %v2452
        %v2590 = vsub.f32 0.0, %v2453
        %v2591 = vsub.f32 0.0, %v2454
        %v2592 = vsub.f32 0.0, %v2455
        %v2593 = vsub.f32 0.0, %v2456
        %v2594 = vsub.f32 0.0, %v2457
        %v2595 = vsub.f32 0.0, %v2458
        %v2596 = vsub.f32 0.0, %v2459
        %v2597 = vsub.f32 0.0, %v2460
        %v2598 = vsub.f32 0.0, %v2461
        %v2599 = vsub.f32 0.0, %v2462
        %v2600 = vsub.f32 0.0, %v2463
        %v2601 = vmul.f32 %v2585, %v2448
        %v2602 = vmul.f32 %v2586, %v2449
        %v2603 = vmul.f32 %v2587, %v2450
        %v2604 = vmul.f32 %v2588, %v2451
        %v2605 = vmul.f32 %v2589, %v2452
        %v2606 = vmul.f32 %v2590, %v2453
        %v2607 = vmul.f32 %v2591, %v2454
        %v2608 = vmul.f32 %v2592, %v2455
        %v2609 = vmul.f32 %v2593, %v2456
        %v2610 = vmul.f32 %v2594, %v2457
        %v2611 = vmul.f32 %v2595, %v2458
        %v2612 = vmul.f32 %v2596, %v2459
        %v2613 = vmul.f32 %v2597, %v2460
        %v2614 = vmul.f32 %v2598, %v2461
        %v2615 = vmul.f32 %v2599, %v2462
        %v2616 = vmul.f32 %v2600, %v2463
        %v2617 = vmul.f32 %v2601, 1.442695
        %v2618 = vpow.pop %v2617
        %v2619 = vmul.f32 %v2602, 1.442695
        %v2620 = vpow.pop %v2619
        %v2621 = vmul.f32 %v2603, 1.442695
        %v2622 = vpow.pop %v2621
        %v2623 = vmul.f32 %v2604, 1.442695
        %v2624 = vpow.pop %v2623
        %v2625 = vmul.f32 %v2605, 1.442695
        %v2626 = vpow.pop %v2625
        %v2627 = vmul.f32 %v2606, 1.442695
        %v2628 = vpow.pop %v2627
        %v2629 = vmul.f32 %v2607, 1.442695
        %v2630 = vpow.pop %v2629
        %v2631 = vmul.f32 %v2608, 1.442695
        %v2632 = vpow.pop %v2631
        %v2633 = vmul.f32 %v2609, 1.442695
        %v2634 = vpow.pop %v2633
        %v2635 = vmul.f32 %v2610, 1.442695
        %v2636 = vpow.pop %v2635
        %v2637 = vmul.f32 %v2611, 1.442695
        %v2638 = vpow.pop %v2637
        %v2639 = vmul.f32 %v2612, 1.442695
        %v2640 = vpow.pop %v2639
        %v2641 = vmul.f32 %v2613, 1.442695
        %v2642 = vpow.pop %v2641
        %v2643 = vmul.f32 %v2614, 1.442695
        %v2644 = vpow.pop %v2643
        %v2645 = vmul.f32 %v2615, 1.442695
        %v2646 = vpow.pop %v2645
        %v2647 = vmul.f32 %v2616, 1.442695
        %v2648 = vpow.pop %v2647
        %v2649 = vmul.f32 %v2569, %v2618
        %v2650 = vmul.f32 %v2570, %v2620
        %v2651 = vmul.f32 %v2571, %v2622
        %v2652 = vmul.f32 %v2572, %v2624
        %v2653 = vmul.f32 %v2573, %v2626
        %v2654 = vmul.f32 %v2574, %v2628
        %v2655 = vmul.f32 %v2575, %v2630
        %v2656 = vmul.f32 %v2576, %v2632
        %v2657 = vmul.f32 %v2577, %v2634
        %v2658 = vmul.f32 %v2578, %v2636
        %v2659 = vmul.f32 %v2579, %v2638
        %v2660 = vmul.f32 %v2580, %v2640
        %v2661 = vmul.f32 %v2581, %v2642
        %v2662 = vmul.f32 %v2582, %v2644
        %v2663 = vmul.f32 %v2583, %v2646
        %v2664 = vmul.f32 %v2584, %v2648
        %v2665 = vsub.f32 0.0, %v343
        %v2666 = vsub.f32 0.0, %v344
        %v2667 = vsub.f32 0.0, %v345
        %v2668 = vsub.f32 0.0, %v346
        %v2669 = vsub.f32 0.0, %v347
        %v2670 = vsub.f32 0.0, %v348
        %v2671 = vsub.f32 0.0, %v349
        %v2672 = vsub.f32 0.0, %v350
        %v2673 = vsub.f32 0.0, %v351
        %v2674 = vsub.f32 0.0, %v352
        %v2675 = vsub.f32 0.0, %v353
        %v2676 = vsub.f32 0.0, %v354
        %v2677 = vsub.f32 0.0, %v355
        %v2678 = vsub.f32 0.0, %v356
        %v2679 = vsub.f32 0.0, %v357
        %v2680 = vsub.f32 0.0, %v358
        %2682 = vset.pattern.permute.xlu0 7
        %2683 = vperm.xlu0 %2682, %v2665
        %v2684 = vpop.permute.xlu0 %2683
        %2687 = vset.pattern.permute.xlu0 7
        %2688 = vperm.xlu0 %2687, %v2666
        %v2689 = vpop.permute.xlu0 %2688
        %2692 = vset.pattern.permute.xlu0 7
        %2693 = vperm.xlu0 %2692, %v2667
        %v2694 = vpop.permute.xlu0 %2693
        %2697 = vset.pattern.permute.xlu0 7
        %2698 = vperm.xlu0 %2697, %v2668
        %v2699 = vpop.permute.xlu0 %2698
        %2702 = vset.pattern.permute.xlu0 7
        %2703 = vperm.xlu0 %2702, %v2669
        %v2704 = vpop.permute.xlu0 %2703
        %2707 = vset.pattern.permute.xlu0 7
        %2708 = vperm.xlu0 %2707, %v2670
        %v2709 = vpop.permute.xlu0 %2708
        %2712 = vset.pattern.permute.xlu0 7
        %2713 = vperm.xlu0 %2712, %v2671
        %v2714 = vpop.permute.xlu0 %2713
        %2717 = vset.pattern.permute.xlu0 7
        %2718 = vperm.xlu0 %2717, %v2672
        %v2719 = vpop.permute.xlu0 %2718
        %2722 = vset.pattern.permute.xlu0 7
        %2723 = vperm.xlu0 %2722, %v2673
        %v2724 = vpop.permute.xlu0 %2723
        %2727 = vset.pattern.permute.xlu0 7
        %2728 = vperm.xlu0 %2727, %v2674
        %v2729 = vpop.permute.xlu0 %2728
        %2732 = vset.pattern.permute.xlu0 7
        %2733 = vperm.xlu0 %2732, %v2675
        %v2734 = vpop.permute.xlu0 %2733
        %2737 = vset.pattern.permute.xlu0 7
        %2738 = vperm.xlu0 %2737, %v2676
        %v2739 = vpop.permute.xlu0 %2738
        %2742 = vset.pattern.permute.xlu0 7
        %2743 = vperm.xlu0 %2742, %v2677
        %v2744 = vpop.permute.xlu0 %2743
        %2747 = vset.pattern.permute.xlu0 7
        %2748 = vperm.xlu0 %2747, %v2678
        %v2749 = vpop.permute.xlu0 %2748
        %2752 = vset.pattern.permute.xlu0 7
        %2753 = vperm.xlu0 %2752, %v2679
        %v2754 = vpop.permute.xlu0 %2753
        %2757 = vset.pattern.permute.xlu0 7
        %2758 = vperm.xlu0 %2757, %v2680
        %v2759 = vpop.permute.xlu0 %2758
        %v2761 = vlaneseq
        %v2762 = vshrl.u32 %v2761, 7
        %v2763 = vsub.s32 0, %v2762
        %v2764 = vrot.slane %v2302, %v2763
        %v2765 = vmul.f32 %v2684, %v2764
        %v2766 = vmul.f32 %v2689, %v2764
        %v2767 = vmul.f32 %v2694, %v2764
        %v2768 = vmul.f32 %v2699, %v2764
        %v2769 = vmul.f32 %v2704, %v2764
        %v2770 = vmul.f32 %v2709, %v2764
        %v2771 = vmul.f32 %v2714, %v2764
        %v2772 = vmul.f32 %v2719, %v2764
        %v2773 = vmul.f32 %v2724, %v2764
        %v2774 = vmul.f32 %v2729, %v2764
        %v2775 = vmul.f32 %v2734, %v2764
        %v2776 = vmul.f32 %v2739, %v2764
        %v2777 = vmul.f32 %v2744, %v2764
        %v2778 = vmul.f32 %v2749, %v2764
        %v2779 = vmul.f32 %v2754, %v2764
        %v2780 = vmul.f32 %v2759, %v2764
        %v2781 = vsub.f32 0.0, %v2484
        %v2782 = vsub.f32 0.0, %v2485
        %v2783 = vsub.f32 0.0, %v2486
        %v2784 = vsub.f32 0.0, %v2487
        %v2785 = vsub.f32 0.0, %v2488
        %v2786 = vsub.f32 0.0, %v2489
        %v2787 = vsub.f32 0.0, %v2490
        %v2788 = vsub.f32 0.0, %v2491
        %v2789 = vsub.f32 0.0, %v2492
        %v2790 = vsub.f32 0.0, %v2493
        %v2791 = vsub.f32 0.0, %v2494
        %v2792 = vsub.f32 0.0, %v2495
        %v2793 = vsub.f32 0.0, %v2496
        %v2794 = vsub.f32 0.0, %v2497
        %v2795 = vsub.f32 0.0, %v2498
        %v2796 = vsub.f32 0.0, %v2499
        %v2797 = vmul.f32 %v2781, %v2484
        %v2798 = vmul.f32 %v2782, %v2485
        %v2799 = vmul.f32 %v2783, %v2486
        %v2800 = vmul.f32 %v2784, %v2487
        %v2801 = vmul.f32 %v2785, %v2488
        %v2802 = vmul.f32 %v2786, %v2489
        %v2803 = vmul.f32 %v2787, %v2490
        %v2804 = vmul.f32 %v2788, %v2491
        %v2805 = vmul.f32 %v2789, %v2492
        %v2806 = vmul.f32 %v2790, %v2493
        %v2807 = vmul.f32 %v2791, %v2494
        %v2808 = vmul.f32 %v2792, %v2495
        %v2809 = vmul.f32 %v2793, %v2496
        %v2810 = vmul.f32 %v2794, %v2497
        %v2811 = vmul.f32 %v2795, %v2498
        %v2812 = vmul.f32 %v2796, %v2499
        %v2813 = vmul.f32 %v2797, 1.442695
        %v2814 = vpow.pop %v2813
        %v2815 = vmul.f32 %v2798, 1.442695
        %v2816 = vpow.pop %v2815
        %v2817 = vmul.f32 %v2799, 1.442695
        %v2818 = vpow.pop %v2817
        %v2819 = vmul.f32 %v2800, 1.442695
        %v2820 = vpow.pop %v2819
        %v2821 = vmul.f32 %v2801, 1.442695
        %v2822 = vpow.pop %v2821
        %v2823 = vmul.f32 %v2802, 1.442695
        %v2824 = vpow.pop %v2823
        %v2825 = vmul.f32 %v2803, 1.442695
        %v2826 = vpow.pop %v2825
        %v2827 = vmul.f32 %v2804, 1.442695
        %v2828 = vpow.pop %v2827
        %v2829 = vmul.f32 %v2805, 1.442695
        %v2830 = vpow.pop %v2829
        %v2831 = vmul.f32 %v2806, 1.442695
        %v2832 = vpow.pop %v2831
        %v2833 = vmul.f32 %v2807, 1.442695
        %v2834 = vpow.pop %v2833
        %v2835 = vmul.f32 %v2808, 1.442695
        %v2836 = vpow.pop %v2835
        %v2837 = vmul.f32 %v2809, 1.442695
        %v2838 = vpow.pop %v2837
        %v2839 = vmul.f32 %v2810, 1.442695
        %v2840 = vpow.pop %v2839
        %v2841 = vmul.f32 %v2811, 1.442695
        %v2842 = vpow.pop %v2841
        %v2843 = vmul.f32 %v2812, 1.442695
        %v2844 = vpow.pop %v2843
        %v2845 = vmul.f32 %v2765, %v2814
        %v2846 = vmul.f32 %v2766, %v2816
        %v2847 = vmul.f32 %v2767, %v2818
        %v2848 = vmul.f32 %v2768, %v2820
        %v2849 = vmul.f32 %v2769, %v2822
        %v2850 = vmul.f32 %v2770, %v2824
        %v2851 = vmul.f32 %v2771, %v2826
        %v2852 = vmul.f32 %v2772, %v2828
        %v2853 = vmul.f32 %v2773, %v2830
        %v2854 = vmul.f32 %v2774, %v2832
        %v2855 = vmul.f32 %v2775, %v2834
        %v2856 = vmul.f32 %v2776, %v2836
        %v2857 = vmul.f32 %v2777, %v2838
        %v2858 = vmul.f32 %v2778, %v2840
        %v2859 = vmul.f32 %v2779, %v2842
        %v2860 = vmul.f32 %v2780, %v2844
        %v2861 = vadd.f32 %v2649, %v2845
        %v2862 = vadd.f32 %v2650, %v2846
        %v2863 = vadd.f32 %v2651, %v2847
        %v2864 = vadd.f32 %v2652, %v2848
        %v2865 = vadd.f32 %v2653, %v2849
        %v2866 = vadd.f32 %v2654, %v2850
        %v2867 = vadd.f32 %v2655, %v2851
        %v2868 = vadd.f32 %v2656, %v2852
        %v2869 = vadd.f32 %v2657, %v2853
        %v2870 = vadd.f32 %v2658, %v2854
        %v2871 = vadd.f32 %v2659, %v2855
        %v2872 = vadd.f32 %v2660, %v2856
        %v2873 = vadd.f32 %v2661, %v2857
        %v2874 = vadd.f32 %v2662, %v2858
        %v2875 = vadd.f32 %v2663, %v2859
        %v2876 = vadd.f32 %v2664, %v2860
        %v2877 = vmul.f32 %v2861, %v2352
        %v2878 = vmul.f32 %v2862, %v2353
        %v2879 = vmul.f32 %v2863, %v2354
        %v2880 = vmul.f32 %v2864, %v2355
        %v2881 = vmul.f32 %v2865, %v2356
        %v2882 = vmul.f32 %v2866, %v2357
        %v2883 = vmul.f32 %v2867, %v2358
        %v2884 = vmul.f32 %v2868, %v2359
        %v2885 = vmul.f32 %v2869, %v2360
        %v2886 = vmul.f32 %v2870, %v2361
        %v2887 = vmul.f32 %v2871, %v2362
        %v2888 = vmul.f32 %v2872, %v2363
        %v2889 = vmul.f32 %v2873, %v2364
        %v2890 = vmul.f32 %v2874, %v2365
        %v2891 = vmul.f32 %v2875, %v2366
        %v2892 = vmul.f32 %v2876, %v2367
        %v2893 = vsub.f32 %v2320, 1.45
        %v2894 = vsub.f32 %v2321, 1.45
        %v2895 = vsub.f32 %v2322, 1.45
        %v2896 = vsub.f32 %v2323, 1.45
        %v2897 = vsub.f32 %v2324, 1.45
        %v2898 = vsub.f32 %v2325, 1.45
        %v2899 = vsub.f32 %v2326, 1.45
        %v2900 = vsub.f32 %v2327, 1.45
        %v2901 = vsub.f32 %v2328, 1.45
        %v2902 = vsub.f32 %v2329, 1.45
        %v2903 = vsub.f32 %v2330, 1.45
        %v2904 = vsub.f32 %v2331, 1.45
        %v2905 = vsub.f32 %v2332, 1.45
        %v2906 = vsub.f32 %v2333, 1.45
        %v2907 = vsub.f32 %v2334, 1.45
        %v2908 = vsub.f32 %v2335, 1.45
        %v2909 = vmax.f32 %v2893, 0.0001
        %v2910 = vmax.f32 %v2894, 0.0001
        %v2911 = vmax.f32 %v2895, 0.0001
        %v2912 = vmax.f32 %v2896, 0.0001
        %v2913 = vmax.f32 %v2897, 0.0001
        %v2914 = vmax.f32 %v2898, 0.0001
        %v2915 = vmax.f32 %v2899, 0.0001
        %v2916 = vmax.f32 %v2900, 0.0001
        %v2917 = vmax.f32 %v2901, 0.0001
        %v2918 = vmax.f32 %v2902, 0.0001
        %v2919 = vmax.f32 %v2903, 0.0001
        %v2920 = vmax.f32 %v2904, 0.0001
        %v2921 = vmax.f32 %v2905, 0.0001
        %v2922 = vmax.f32 %v2906, 0.0001
        %v2923 = vmax.f32 %v2907, 0.0001
        %v2924 = vmax.f32 %v2908, 0.0001
        %v2925 = vrsqrt.pop %v2909
        %v2926 = vmul.f32 %v2909, %v2925
        %vm2927 = vcmp.eq.f32.partialorder %v2909, inf
        %v2928 = vsel %vm2927, %v2909, %v2926
        %vm2929 = vcmp.eq.f32.partialorder %v2909, 0.0
        %v2930 = vand.u32 %v2909, 2147483648
        %v2931 = vsel %vm2929, %v2930, %v2928
        %v2932 = vrsqrt.pop %v2910
        %v2933 = vmul.f32 %v2910, %v2932
        %vm2934 = vcmp.eq.f32.partialorder %v2910, inf
        %v2935 = vsel %vm2934, %v2910, %v2933
        %vm2936 = vcmp.eq.f32.partialorder %v2910, 0.0
        %v2937 = vand.u32 %v2910, 2147483648
        %v2938 = vsel %vm2936, %v2937, %v2935
        %v2939 = vrsqrt.pop %v2911
        %v2940 = vmul.f32 %v2911, %v2939
        %vm2941 = vcmp.eq.f32.partialorder %v2911, inf
        %v2942 = vsel %vm2941, %v2911, %v2940
        %vm2943 = vcmp.eq.f32.partialorder %v2911, 0.0
        %v2944 = vand.u32 %v2911, 2147483648
        %v2945 = vsel %vm2943, %v2944, %v2942
        %v2946 = vrsqrt.pop %v2912
        %v2947 = vmul.f32 %v2912, %v2946
        %vm2948 = vcmp.eq.f32.partialorder %v2912, inf
        %v2949 = vsel %vm2948, %v2912, %v2947
        %vm2950 = vcmp.eq.f32.partialorder %v2912, 0.0
        %v2951 = vand.u32 %v2912, 2147483648
        %v2952 = vsel %vm2950, %v2951, %v2949
        %v2953 = vrsqrt.pop %v2913
        %v2954 = vmul.f32 %v2913, %v2953
        %vm2955 = vcmp.eq.f32.partialorder %v2913, inf
        %v2956 = vsel %vm2955, %v2913, %v2954
        %vm2957 = vcmp.eq.f32.partialorder %v2913, 0.0
        %v2958 = vand.u32 %v2913, 2147483648
        %v2959 = vsel %vm2957, %v2958, %v2956
        %v2960 = vrsqrt.pop %v2914
        %v2961 = vmul.f32 %v2914, %v2960
        %vm2962 = vcmp.eq.f32.partialorder %v2914, inf
        %v2963 = vsel %vm2962, %v2914, %v2961
        %vm2964 = vcmp.eq.f32.partialorder %v2914, 0.0
        %v2965 = vand.u32 %v2914, 2147483648
        %v2966 = vsel %vm2964, %v2965, %v2963
        %v2967 = vrsqrt.pop %v2915
        %v2968 = vmul.f32 %v2915, %v2967
        %vm2969 = vcmp.eq.f32.partialorder %v2915, inf
        %v2970 = vsel %vm2969, %v2915, %v2968
        %vm2971 = vcmp.eq.f32.partialorder %v2915, 0.0
        %v2972 = vand.u32 %v2915, 2147483648
        %v2973 = vsel %vm2971, %v2972, %v2970
        %v2974 = vrsqrt.pop %v2916
        %v2975 = vmul.f32 %v2916, %v2974
        %vm2976 = vcmp.eq.f32.partialorder %v2916, inf
        %v2977 = vsel %vm2976, %v2916, %v2975
        %vm2978 = vcmp.eq.f32.partialorder %v2916, 0.0
        %v2979 = vand.u32 %v2916, 2147483648
        %v2980 = vsel %vm2978, %v2979, %v2977
        %v2981 = vrsqrt.pop %v2917
        %v2982 = vmul.f32 %v2917, %v2981
        %vm2983 = vcmp.eq.f32.partialorder %v2917, inf
        %v2984 = vsel %vm2983, %v2917, %v2982
        %vm2985 = vcmp.eq.f32.partialorder %v2917, 0.0
        %v2986 = vand.u32 %v2917, 2147483648
        %v2987 = vsel %vm2985, %v2986, %v2984
        %v2988 = vrsqrt.pop %v2918
        %v2989 = vmul.f32 %v2918, %v2988
        %vm2990 = vcmp.eq.f32.partialorder %v2918, inf
        %v2991 = vsel %vm2990, %v2918, %v2989
        %vm2992 = vcmp.eq.f32.partialorder %v2918, 0.0
        %v2993 = vand.u32 %v2918, 2147483648
        %v2994 = vsel %vm2992, %v2993, %v2991
        %v2995 = vrsqrt.pop %v2919
        %v2996 = vmul.f32 %v2919, %v2995
        %vm2997 = vcmp.eq.f32.partialorder %v2919, inf
        %v2998 = vsel %vm2997, %v2919, %v2996
        %vm2999 = vcmp.eq.f32.partialorder %v2919, 0.0
        %v3000 = vand.u32 %v2919, 2147483648
        %v3001 = vsel %vm2999, %v3000, %v2998
        %v3002 = vrsqrt.pop %v2920
        %v3003 = vmul.f32 %v2920, %v3002
        %vm3004 = vcmp.eq.f32.partialorder %v2920, inf
        %v3005 = vsel %vm3004, %v2920, %v3003
        %vm3006 = vcmp.eq.f32.partialorder %v2920, 0.0
        %v3007 = vand.u32 %v2920, 2147483648
        %v3008 = vsel %vm3006, %v3007, %v3005
        %v3009 = vrsqrt.pop %v2921
        %v3010 = vmul.f32 %v2921, %v3009
        %vm3011 = vcmp.eq.f32.partialorder %v2921, inf
        %v3012 = vsel %vm3011, %v2921, %v3010
        %vm3013 = vcmp.eq.f32.partialorder %v2921, 0.0
        %v3014 = vand.u32 %v2921, 2147483648
        %v3015 = vsel %vm3013, %v3014, %v3012
        %v3016 = vrsqrt.pop %v2922
        %v3017 = vmul.f32 %v2922, %v3016
        %vm3018 = vcmp.eq.f32.partialorder %v2922, inf
        %v3019 = vsel %vm3018, %v2922, %v3017
        %vm3020 = vcmp.eq.f32.partialorder %v2922, 0.0
        %v3021 = vand.u32 %v2922, 2147483648
        %v3022 = vsel %vm3020, %v3021, %v3019
        %v3023 = vrsqrt.pop %v2923
        %v3024 = vmul.f32 %v2923, %v3023
        %vm3025 = vcmp.eq.f32.partialorder %v2923, inf
        %v3026 = vsel %vm3025, %v2923, %v3024
        %vm3027 = vcmp.eq.f32.partialorder %v2923, 0.0
        %v3028 = vand.u32 %v2923, 2147483648
        %v3029 = vsel %vm3027, %v3028, %v3026
        %v3030 = vrsqrt.pop %v2924
        %v3031 = vmul.f32 %v2924, %v3030
        %vm3032 = vcmp.eq.f32.partialorder %v2924, inf
        %v3033 = vsel %vm3032, %v2924, %v3031
        %vm3034 = vcmp.eq.f32.partialorder %v2924, 0.0
        %v3035 = vand.u32 %v2924, 2147483648
        %v3036 = vsel %vm3034, %v3035, %v3033
        %v3037 = vadd.f32 %v2320, 1.05
        %v3038 = vadd.f32 %v2321, 1.05
        %v3039 = vadd.f32 %v2322, 1.05
        %v3040 = vadd.f32 %v2323, 1.05
        %v3041 = vadd.f32 %v2324, 1.05
        %v3042 = vadd.f32 %v2325, 1.05
        %v3043 = vadd.f32 %v2326, 1.05
        %v3044 = vadd.f32 %v2327, 1.05
        %v3045 = vadd.f32 %v2328, 1.05
        %v3046 = vadd.f32 %v2329, 1.05
        %v3047 = vadd.f32 %v2330, 1.05
        %v3048 = vadd.f32 %v2331, 1.05
        %v3049 = vadd.f32 %v2332, 1.05
        %v3050 = vadd.f32 %v2333, 1.05
        %v3051 = vadd.f32 %v2334, 1.05
        %v3052 = vadd.f32 %v2335, 1.05
        %v3053 = vrsqrt.pop %v3037
        %v3054 = vrsqrt.pop %v3038
        %v3055 = vrsqrt.pop %v3039
        %v3056 = vrsqrt.pop %v3040
        %v3057 = vrsqrt.pop %v3041
        %v3058 = vrsqrt.pop %v3042
        %v3059 = vrsqrt.pop %v3043
        %v3060 = vrsqrt.pop %v3044
        %v3061 = vrsqrt.pop %v3045
        %v3062 = vrsqrt.pop %v3046
        %v3063 = vrsqrt.pop %v3047
        %v3064 = vrsqrt.pop %v3048
        %v3065 = vrsqrt.pop %v3049
        %v3066 = vrsqrt.pop %v3050
        %v3067 = vrsqrt.pop %v3051
        %v3068 = vrsqrt.pop %v3052
        %v3069 = vmul.f32 %v3037, %v3053
        %v3070 = vmul.f32 %v3038, %v3054
        %v3071 = vmul.f32 %v3039, %v3055
        %v3072 = vmul.f32 %v3040, %v3056
        %v3073 = vmul.f32 %v3041, %v3057
        %v3074 = vmul.f32 %v3042, %v3058
        %v3075 = vmul.f32 %v3043, %v3059
        %v3076 = vmul.f32 %v3044, %v3060
        %v3077 = vmul.f32 %v3045, %v3061
        %v3078 = vmul.f32 %v3046, %v3062
        %v3079 = vmul.f32 %v3047, %v3063
        %v3080 = vmul.f32 %v3048, %v3064
        %v3081 = vmul.f32 %v3049, %v3065
        %v3082 = vmul.f32 %v3050, %v3066
        %v3083 = vmul.f32 %v3051, %v3067
        %v3084 = vmul.f32 %v3052, %v3068
        %v3085 = vmul.f32 %v3053, %v3053
        %v3086 = vmul.f32 %v3054, %v3054
        %v3087 = vmul.f32 %v3055, %v3055
        %v3088 = vmul.f32 %v3056, %v3056
        %v3089 = vmul.f32 %v3057, %v3057
        %v3090 = vmul.f32 %v3058, %v3058
        %v3091 = vmul.f32 %v3059, %v3059
        %v3092 = vmul.f32 %v3060, %v3060
        %v3093 = vmul.f32 %v3061, %v3061
        %v3094 = vmul.f32 %v3062, %v3062
        %v3095 = vmul.f32 %v3063, %v3063
        %v3096 = vmul.f32 %v3064, %v3064
        %v3097 = vmul.f32 %v3065, %v3065
        %v3098 = vmul.f32 %v3066, %v3066
        %v3099 = vmul.f32 %v3067, %v3067
        %v3100 = vmul.f32 %v3068, %v3068
        %v3101 = vmul.f32 %v3085, %v3053
        %v3102 = vmul.f32 %v3086, %v3054
        %v3103 = vmul.f32 %v3087, %v3055
        %v3104 = vmul.f32 %v3088, %v3056
        %v3105 = vmul.f32 %v3089, %v3057
        %v3106 = vmul.f32 %v3090, %v3058
        %v3107 = vmul.f32 %v3091, %v3059
        %v3108 = vmul.f32 %v3092, %v3060
        %v3109 = vmul.f32 %v3093, %v3061
        %v3110 = vmul.f32 %v3094, %v3062
        %v3111 = vmul.f32 %v3095, %v3063
        %v3112 = vmul.f32 %v3096, %v3064
        %v3113 = vmul.f32 %v3097, %v3065
        %v3114 = vmul.f32 %v3098, %v3066
        %v3115 = vmul.f32 %v3099, %v3067
        %v3116 = vmul.f32 %v3100, %v3068
        %v3117 = vsub.f32 %v3069, %v883
        %v3118 = vsub.f32 %v3070, %v887
        %v3119 = vsub.f32 %v3071, %v891
        %v3120 = vsub.f32 %v3072, %v895
        %v3121 = vsub.f32 %v3073, %v899
        %v3122 = vsub.f32 %v3074, %v903
        %v3123 = vsub.f32 %v3075, %v907
        %v3124 = vsub.f32 %v3076, %v911
        %v3125 = vsub.f32 %v3077, %v915
        %v3126 = vsub.f32 %v3078, %v919
        %v3127 = vsub.f32 %v3079, %v923
        %v3128 = vsub.f32 %v3080, %v927
        %v3129 = vsub.f32 %v3081, %v931
        %v3130 = vsub.f32 %v3082, %v935
        %v3131 = vsub.f32 %v3083, %v939
        %v3132 = vsub.f32 %v3084, %v943
        %v3133 = vmul.f32 %v3117, %v2386
        %v3134 = vmul.f32 %v3118, %v2390
        %v3135 = vmul.f32 %v3119, %v2394
        %v3136 = vmul.f32 %v3120, %v2398
        %v3137 = vmul.f32 %v3121, %v2402
        %v3138 = vmul.f32 %v3122, %v2406
        %v3139 = vmul.f32 %v3123, %v2410
        %v3140 = vmul.f32 %v3124, %v2414
        %v3141 = vmul.f32 %v3125, %v2418
        %v3142 = vmul.f32 %v3126, %v2422
        %v3143 = vmul.f32 %v3127, %v2426
        %v3144 = vmul.f32 %v3128, %v2430
        %v3145 = vmul.f32 %v3129, %v2434
        %v3146 = vmul.f32 %v3130, %v2438
        %v3147 = vmul.f32 %v3131, %v2442
        %v3148 = vmul.f32 %v3132, %v2446
        %v3149 = vsub.f32 %v3069, %v948
        %v3150 = vsub.f32 %v3070, %v948
        %v3151 = vsub.f32 %v3071, %v948
        %v3152 = vsub.f32 %v3072, %v948
        %v3153 = vsub.f32 %v3073, %v948
        %v3154 = vsub.f32 %v3074, %v948
        %v3155 = vsub.f32 %v3075, %v948
        %v3156 = vsub.f32 %v3076, %v948
        %v3157 = vsub.f32 %v3077, %v948
        %v3158 = vsub.f32 %v3078, %v948
        %v3159 = vsub.f32 %v3079, %v948
        %v3160 = vsub.f32 %v3080, %v948
        %v3161 = vsub.f32 %v3081, %v948
        %v3162 = vsub.f32 %v3082, %v948
        %v3163 = vsub.f32 %v3083, %v948
        %v3164 = vsub.f32 %v3084, %v948
        %v3165 = vmul.f32 %v3149, %v2483
        %v3166 = vmul.f32 %v3150, %v2483
        %v3167 = vmul.f32 %v3151, %v2483
        %v3168 = vmul.f32 %v3152, %v2483
        %v3169 = vmul.f32 %v3153, %v2483
        %v3170 = vmul.f32 %v3154, %v2483
        %v3171 = vmul.f32 %v3155, %v2483
        %v3172 = vmul.f32 %v3156, %v2483
        %v3173 = vmul.f32 %v3157, %v2483
        %v3174 = vmul.f32 %v3158, %v2483
        %v3175 = vmul.f32 %v3159, %v2483
        %v3176 = vmul.f32 %v3160, %v2483
        %v3177 = vmul.f32 %v3161, %v2483
        %v3178 = vmul.f32 %v3162, %v2483
        %v3179 = vmul.f32 %v3163, %v2483
        %v3180 = vmul.f32 %v3164, %v2483
        %v3181 = vsub.f32 0.0, %v3133
        %v3182 = vsub.f32 0.0, %v3134
        %v3183 = vsub.f32 0.0, %v3135
        %v3184 = vsub.f32 0.0, %v3136
        %v3185 = vsub.f32 0.0, %v3137
        %v3186 = vsub.f32 0.0, %v3138
        %v3187 = vsub.f32 0.0, %v3139
        %v3188 = vsub.f32 0.0, %v3140
        %v3189 = vsub.f32 0.0, %v3141
        %v3190 = vsub.f32 0.0, %v3142
        %v3191 = vsub.f32 0.0, %v3143
        %v3192 = vsub.f32 0.0, %v3144
        %v3193 = vsub.f32 0.0, %v3145
        %v3194 = vsub.f32 0.0, %v3146
        %v3195 = vsub.f32 0.0, %v3147
        %v3196 = vsub.f32 0.0, %v3148
        %v3197 = vmul.f32 %v3181, %v3133
        %v3198 = vmul.f32 %v3182, %v3134
        %v3199 = vmul.f32 %v3183, %v3135
        %v3200 = vmul.f32 %v3184, %v3136
        %v3201 = vmul.f32 %v3185, %v3137
        %v3202 = vmul.f32 %v3186, %v3138
        %v3203 = vmul.f32 %v3187, %v3139
        %v3204 = vmul.f32 %v3188, %v3140
        %v3205 = vmul.f32 %v3189, %v3141
        %v3206 = vmul.f32 %v3190, %v3142
        %v3207 = vmul.f32 %v3191, %v3143
        %v3208 = vmul.f32 %v3192, %v3144
        %v3209 = vmul.f32 %v3193, %v3145
        %v3210 = vmul.f32 %v3194, %v3146
        %v3211 = vmul.f32 %v3195, %v3147
        %v3212 = vmul.f32 %v3196, %v3148
        %v3213 = vmul.f32 %v3197, 1.442695
        %v3214 = vpow.pop %v3213
        %v3215 = vmul.f32 %v3198, 1.442695
        %v3216 = vpow.pop %v3215
        %v3217 = vmul.f32 %v3199, 1.442695
        %v3218 = vpow.pop %v3217
        %v3219 = vmul.f32 %v3200, 1.442695
        %v3220 = vpow.pop %v3219
        %v3221 = vmul.f32 %v3201, 1.442695
        %v3222 = vpow.pop %v3221
        %v3223 = vmul.f32 %v3202, 1.442695
        %v3224 = vpow.pop %v3223
        %v3225 = vmul.f32 %v3203, 1.442695
        %v3226 = vpow.pop %v3225
        %v3227 = vmul.f32 %v3204, 1.442695
        %v3228 = vpow.pop %v3227
        %v3229 = vmul.f32 %v3205, 1.442695
        %v3230 = vpow.pop %v3229
        %v3231 = vmul.f32 %v3206, 1.442695
        %v3232 = vpow.pop %v3231
        %v3233 = vmul.f32 %v3207, 1.442695
        %v3234 = vpow.pop %v3233
        %v3235 = vmul.f32 %v3208, 1.442695
        %v3236 = vpow.pop %v3235
        %v3237 = vmul.f32 %v3209, 1.442695
        %v3238 = vpow.pop %v3237
        %v3239 = vmul.f32 %v3210, 1.442695
        %v3240 = vpow.pop %v3239
        %v3241 = vmul.f32 %v3211, 1.442695
        %v3242 = vpow.pop %v3241
        %v3243 = vmul.f32 %v3212, 1.442695
        %v3244 = vpow.pop %v3243
        %v3245 = vmul.f32 %v2569, %v3214
        %v3246 = vmul.f32 %v2570, %v3216
        %v3247 = vmul.f32 %v2571, %v3218
        %v3248 = vmul.f32 %v2572, %v3220
        %v3249 = vmul.f32 %v2573, %v3222
        %v3250 = vmul.f32 %v2574, %v3224
        %v3251 = vmul.f32 %v2575, %v3226
        %v3252 = vmul.f32 %v2576, %v3228
        %v3253 = vmul.f32 %v2577, %v3230
        %v3254 = vmul.f32 %v2578, %v3232
        %v3255 = vmul.f32 %v2579, %v3234
        %v3256 = vmul.f32 %v2580, %v3236
        %v3257 = vmul.f32 %v2581, %v3238
        %v3258 = vmul.f32 %v2582, %v3240
        %v3259 = vmul.f32 %v2583, %v3242
        %v3260 = vmul.f32 %v2584, %v3244
        %v3261 = vsub.f32 0.0, %v3165
        %v3262 = vsub.f32 0.0, %v3166
        %v3263 = vsub.f32 0.0, %v3167
        %v3264 = vsub.f32 0.0, %v3168
        %v3265 = vsub.f32 0.0, %v3169
        %v3266 = vsub.f32 0.0, %v3170
        %v3267 = vsub.f32 0.0, %v3171
        %v3268 = vsub.f32 0.0, %v3172
        %v3269 = vsub.f32 0.0, %v3173
        %v3270 = vsub.f32 0.0, %v3174
        %v3271 = vsub.f32 0.0, %v3175
        %v3272 = vsub.f32 0.0, %v3176
        %v3273 = vsub.f32 0.0, %v3177
        %v3274 = vsub.f32 0.0, %v3178
        %v3275 = vsub.f32 0.0, %v3179
        %v3276 = vsub.f32 0.0, %v3180
        %v3277 = vmul.f32 %v3261, %v3165
        %v3278 = vmul.f32 %v3262, %v3166
        %v3279 = vmul.f32 %v3263, %v3167
        %v3280 = vmul.f32 %v3264, %v3168
        %v3281 = vmul.f32 %v3265, %v3169
        %v3282 = vmul.f32 %v3266, %v3170
        %v3283 = vmul.f32 %v3267, %v3171
        %v3284 = vmul.f32 %v3268, %v3172
        %v3285 = vmul.f32 %v3269, %v3173
        %v3286 = vmul.f32 %v3270, %v3174
        %v3287 = vmul.f32 %v3271, %v3175
        %v3288 = vmul.f32 %v3272, %v3176
        %v3289 = vmul.f32 %v3273, %v3177
        %v3290 = vmul.f32 %v3274, %v3178
        %v3291 = vmul.f32 %v3275, %v3179
        %v3292 = vmul.f32 %v3276, %v3180
        %v3293 = vmul.f32 %v3277, 1.442695
        %v3294 = vpow.pop %v3293
        %v3295 = vmul.f32 %v3278, 1.442695
        %v3296 = vpow.pop %v3295
        %v3297 = vmul.f32 %v3279, 1.442695
        %v3298 = vpow.pop %v3297
        %v3299 = vmul.f32 %v3280, 1.442695
        %v3300 = vpow.pop %v3299
        %v3301 = vmul.f32 %v3281, 1.442695
        %v3302 = vpow.pop %v3301
        %v3303 = vmul.f32 %v3282, 1.442695
        %v3304 = vpow.pop %v3303
        %v3305 = vmul.f32 %v3283, 1.442695
        %v3306 = vpow.pop %v3305
        %v3307 = vmul.f32 %v3284, 1.442695
        %v3308 = vpow.pop %v3307
        %v3309 = vmul.f32 %v3285, 1.442695
        %v3310 = vpow.pop %v3309
        %v3311 = vmul.f32 %v3286, 1.442695
        %v3312 = vpow.pop %v3311
        %v3313 = vmul.f32 %v3287, 1.442695
        %v3314 = vpow.pop %v3313
        %v3315 = vmul.f32 %v3288, 1.442695
        %v3316 = vpow.pop %v3315
        %v3317 = vmul.f32 %v3289, 1.442695
        %v3318 = vpow.pop %v3317
        %v3319 = vmul.f32 %v3290, 1.442695
        %v3320 = vpow.pop %v3319
        %v3321 = vmul.f32 %v3291, 1.442695
        %v3322 = vpow.pop %v3321
        %v3323 = vmul.f32 %v3292, 1.442695
        %v3324 = vpow.pop %v3323
        %v3325 = vmul.f32 %v2765, %v3294
        %v3326 = vmul.f32 %v2766, %v3296
        %v3327 = vmul.f32 %v2767, %v3298
        %v3328 = vmul.f32 %v2768, %v3300
        %v3329 = vmul.f32 %v2769, %v3302
        %v3330 = vmul.f32 %v2770, %v3304
        %v3331 = vmul.f32 %v2771, %v3306
        %v3332 = vmul.f32 %v2772, %v3308
        %v3333 = vmul.f32 %v2773, %v3310
        %v3334 = vmul.f32 %v2774, %v3312
        %v3335 = vmul.f32 %v2775, %v3314
        %v3336 = vmul.f32 %v2776, %v3316
        %v3337 = vmul.f32 %v2777, %v3318
        %v3338 = vmul.f32 %v2778, %v3320
        %v3339 = vmul.f32 %v2779, %v3322
        %v3340 = vmul.f32 %v2780, %v3324
        %v3341 = vadd.f32 %v3245, %v3325
        %v3342 = vadd.f32 %v3246, %v3326
        %v3343 = vadd.f32 %v3247, %v3327
        %v3344 = vadd.f32 %v3248, %v3328
        %v3345 = vadd.f32 %v3249, %v3329
        %v3346 = vadd.f32 %v3250, %v3330
        %v3347 = vadd.f32 %v3251, %v3331
        %v3348 = vadd.f32 %v3252, %v3332
        %v3349 = vadd.f32 %v3253, %v3333
        %v3350 = vadd.f32 %v3254, %v3334
        %v3351 = vadd.f32 %v3255, %v3335
        %v3352 = vadd.f32 %v3256, %v3336
        %v3353 = vadd.f32 %v3257, %v3337
        %v3354 = vadd.f32 %v3258, %v3338
        %v3355 = vadd.f32 %v3259, %v3339
        %v3356 = vadd.f32 %v3260, %v3340
        %v3357 = vmul.f32 %v3341, %v3085
        %v3358 = vmul.f32 %v3342, %v3086
        %v3359 = vmul.f32 %v3343, %v3087
        %v3360 = vmul.f32 %v3344, %v3088
        %v3361 = vmul.f32 %v3345, %v3089
        %v3362 = vmul.f32 %v3346, %v3090
        %v3363 = vmul.f32 %v3347, %v3091
        %v3364 = vmul.f32 %v3348, %v3092
        %v3365 = vmul.f32 %v3349, %v3093
        %v3366 = vmul.f32 %v3350, %v3094
        %v3367 = vmul.f32 %v3351, %v3095
        %v3368 = vmul.f32 %v3352, %v3096
        %v3369 = vmul.f32 %v3353, %v3097
        %v3370 = vmul.f32 %v3354, %v3098
        %v3371 = vmul.f32 %v3355, %v3099
        %v3372 = vmul.f32 %v3356, %v3100
        %v3373 = vmul.f32 %v3085, -2.0
        %v3374 = vmul.f32 %v3086, -2.0
        %v3375 = vmul.f32 %v3087, -2.0
        %v3376 = vmul.f32 %v3088, -2.0
        %v3377 = vmul.f32 %v3089, -2.0
        %v3378 = vmul.f32 %v3090, -2.0
        %v3379 = vmul.f32 %v3091, -2.0
        %v3380 = vmul.f32 %v3092, -2.0
        %v3381 = vmul.f32 %v3093, -2.0
        %v3382 = vmul.f32 %v3094, -2.0
        %v3383 = vmul.f32 %v3095, -2.0
        %v3384 = vmul.f32 %v3096, -2.0
        %v3385 = vmul.f32 %v3097, -2.0
        %v3386 = vmul.f32 %v3098, -2.0
        %v3387 = vmul.f32 %v3099, -2.0
        %v3388 = vmul.f32 %v3100, -2.0
        %v3389 = vmul.f32 %v3245, %v3133
        %v3390 = vmul.f32 %v3246, %v3134
        %v3391 = vmul.f32 %v3247, %v3135
        %v3392 = vmul.f32 %v3248, %v3136
        %v3393 = vmul.f32 %v3249, %v3137
        %v3394 = vmul.f32 %v3250, %v3138
        %v3395 = vmul.f32 %v3251, %v3139
        %v3396 = vmul.f32 %v3252, %v3140
        %v3397 = vmul.f32 %v3253, %v3141
        %v3398 = vmul.f32 %v3254, %v3142
        %v3399 = vmul.f32 %v3255, %v3143
        %v3400 = vmul.f32 %v3256, %v3144
        %v3401 = vmul.f32 %v3257, %v3145
        %v3402 = vmul.f32 %v3258, %v3146
        %v3403 = vmul.f32 %v3259, %v3147
        %v3404 = vmul.f32 %v3260, %v3148
        %v3405 = vmul.f32 %v3389, %v2386
        %v3406 = vmul.f32 %v3390, %v2390
        %v3407 = vmul.f32 %v3391, %v2394
        %v3408 = vmul.f32 %v3392, %v2398
        %v3409 = vmul.f32 %v3393, %v2402
        %v3410 = vmul.f32 %v3394, %v2406
        %v3411 = vmul.f32 %v3395, %v2410
        %v3412 = vmul.f32 %v3396, %v2414
        %v3413 = vmul.f32 %v3397, %v2418
        %v3414 = vmul.f32 %v3398, %v2422
        %v3415 = vmul.f32 %v3399, %v2426
        %v3416 = vmul.f32 %v3400, %v2430
        %v3417 = vmul.f32 %v3401, %v2434
        %v3418 = vmul.f32 %v3402, %v2438
        %v3419 = vmul.f32 %v3403, %v2442
        %v3420 = vmul.f32 %v3404, %v2446
        %v3421 = vmul.f32 %v3325, %v3165
        %v3422 = vmul.f32 %v3326, %v3166
        %v3423 = vmul.f32 %v3327, %v3167
        %v3424 = vmul.f32 %v3328, %v3168
        %v3425 = vmul.f32 %v3329, %v3169
        %v3426 = vmul.f32 %v3330, %v3170
        %v3427 = vmul.f32 %v3331, %v3171
        %v3428 = vmul.f32 %v3332, %v3172
        %v3429 = vmul.f32 %v3333, %v3173
        %v3430 = vmul.f32 %v3334, %v3174
        %v3431 = vmul.f32 %v3335, %v3175
        %v3432 = vmul.f32 %v3336, %v3176
        %v3433 = vmul.f32 %v3337, %v3177
        %v3434 = vmul.f32 %v3338, %v3178
        %v3435 = vmul.f32 %v3339, %v3179
        %v3436 = vmul.f32 %v3340, %v3180
        %v3437 = vmul.f32 %v3421, %v2483
        %v3438 = vmul.f32 %v3422, %v2483
        %v3439 = vmul.f32 %v3423, %v2483
        %v3440 = vmul.f32 %v3424, %v2483
        %v3441 = vmul.f32 %v3425, %v2483
        %v3442 = vmul.f32 %v3426, %v2483
        %v3443 = vmul.f32 %v3427, %v2483
        %v3444 = vmul.f32 %v3428, %v2483
        %v3445 = vmul.f32 %v3429, %v2483
        %v3446 = vmul.f32 %v3430, %v2483
        %v3447 = vmul.f32 %v3431, %v2483
        %v3448 = vmul.f32 %v3432, %v2483
        %v3449 = vmul.f32 %v3433, %v2483
        %v3450 = vmul.f32 %v3434, %v2483
        %v3451 = vmul.f32 %v3435, %v2483
        %v3452 = vmul.f32 %v3436, %v2483
        %v3453 = vadd.f32 %v3405, %v3437
        %v3454 = vadd.f32 %v3406, %v3438
        %v3455 = vadd.f32 %v3407, %v3439
        %v3456 = vadd.f32 %v3408, %v3440
        %v3457 = vadd.f32 %v3409, %v3441
        %v3458 = vadd.f32 %v3410, %v3442
        %v3459 = vadd.f32 %v3411, %v3443
        %v3460 = vadd.f32 %v3412, %v3444
        %v3461 = vadd.f32 %v3413, %v3445
        %v3462 = vadd.f32 %v3414, %v3446
        %v3463 = vadd.f32 %v3415, %v3447
        %v3464 = vadd.f32 %v3416, %v3448
        %v3465 = vadd.f32 %v3417, %v3449
        %v3466 = vadd.f32 %v3418, %v3450
        %v3467 = vadd.f32 %v3419, %v3451
        %v3468 = vadd.f32 %v3420, %v3452
        %v3469 = vmul.f32 %v3373, %v3453
        %v3470 = vmul.f32 %v3374, %v3454
        %v3471 = vmul.f32 %v3375, %v3455
        %v3472 = vmul.f32 %v3376, %v3456
        %v3473 = vmul.f32 %v3377, %v3457
        %v3474 = vmul.f32 %v3378, %v3458
        %v3475 = vmul.f32 %v3379, %v3459
        %v3476 = vmul.f32 %v3380, %v3460
        %v3477 = vmul.f32 %v3381, %v3461
        %v3478 = vmul.f32 %v3382, %v3462
        %v3479 = vmul.f32 %v3383, %v3463
        %v3480 = vmul.f32 %v3384, %v3464
        %v3481 = vmul.f32 %v3385, %v3465
        %v3482 = vmul.f32 %v3386, %v3466
        %v3483 = vmul.f32 %v3387, %v3467
        %v3484 = vmul.f32 %v3388, %v3468
        %v3485 = vmul.f32 %v3101, -2.0
        %v3486 = vmul.f32 %v3102, -2.0
        %v3487 = vmul.f32 %v3103, -2.0
        %v3488 = vmul.f32 %v3104, -2.0
        %v3489 = vmul.f32 %v3105, -2.0
        %v3490 = vmul.f32 %v3106, -2.0
        %v3491 = vmul.f32 %v3107, -2.0
        %v3492 = vmul.f32 %v3108, -2.0
        %v3493 = vmul.f32 %v3109, -2.0
        %v3494 = vmul.f32 %v3110, -2.0
        %v3495 = vmul.f32 %v3111, -2.0
        %v3496 = vmul.f32 %v3112, -2.0
        %v3497 = vmul.f32 %v3113, -2.0
        %v3498 = vmul.f32 %v3114, -2.0
        %v3499 = vmul.f32 %v3115, -2.0
        %v3500 = vmul.f32 %v3116, -2.0
        %v3501 = vmul.f32 %v3485, %v3341
        %v3502 = vmul.f32 %v3486, %v3342
        %v3503 = vmul.f32 %v3487, %v3343
        %v3504 = vmul.f32 %v3488, %v3344
        %v3505 = vmul.f32 %v3489, %v3345
        %v3506 = vmul.f32 %v3490, %v3346
        %v3507 = vmul.f32 %v3491, %v3347
        %v3508 = vmul.f32 %v3492, %v3348
        %v3509 = vmul.f32 %v3493, %v3349
        %v3510 = vmul.f32 %v3494, %v3350
        %v3511 = vmul.f32 %v3495, %v3351
        %v3512 = vmul.f32 %v3496, %v3352
        %v3513 = vmul.f32 %v3497, %v3353
        %v3514 = vmul.f32 %v3498, %v3354
        %v3515 = vmul.f32 %v3499, %v3355
        %v3516 = vmul.f32 %v3500, %v3356
        %v3517 = vadd.f32 %v3469, %v3501
        %v3518 = vadd.f32 %v3470, %v3502
        %v3519 = vadd.f32 %v3471, %v3503
        %v3520 = vadd.f32 %v3472, %v3504
        %v3521 = vadd.f32 %v3473, %v3505
        %v3522 = vadd.f32 %v3474, %v3506
        %v3523 = vadd.f32 %v3475, %v3507
        %v3524 = vadd.f32 %v3476, %v3508
        %v3525 = vadd.f32 %v3477, %v3509
        %v3526 = vadd.f32 %v3478, %v3510
        %v3527 = vadd.f32 %v3479, %v3511
        %v3528 = vadd.f32 %v3480, %v3512
        %v3529 = vadd.f32 %v3481, %v3513
        %v3530 = vadd.f32 %v3482, %v3514
        %v3531 = vadd.f32 %v3483, %v3515
        %v3532 = vadd.f32 %v3484, %v3516
        %v3533 = vsub.f32 %v3069, %v2931
        %v3534 = vsub.f32 %v3070, %v2938
        %v3535 = vsub.f32 %v3071, %v2945
        %v3536 = vsub.f32 %v3072, %v2952
        %v3537 = vsub.f32 %v3073, %v2959
        %v3538 = vsub.f32 %v3074, %v2966
        %v3539 = vsub.f32 %v3075, %v2973
        %v3540 = vsub.f32 %v3076, %v2980
        %v3541 = vsub.f32 %v3077, %v2987
        %v3542 = vsub.f32 %v3078, %v2994
        %v3543 = vsub.f32 %v3079, %v3001
        %v3544 = vsub.f32 %v3080, %v3008
        %v3545 = vsub.f32 %v3081, %v3015
        %v3546 = vsub.f32 %v3082, %v3022
        %v3547 = vsub.f32 %v3083, %v3029
        %v3548 = vsub.f32 %v3084, %v3036
        %v3549 = vrcp.pop %v3533
        %v3550 = vrcp.pop %v3534
        %v3551 = vrcp.pop %v3535
        %v3552 = vrcp.pop %v3536
        %v3553 = vrcp.pop %v3537
        %v3554 = vrcp.pop %v3538
        %v3555 = vrcp.pop %v3539
        %v3556 = vrcp.pop %v3540
        %v3557 = vrcp.pop %v3541
        %v3558 = vrcp.pop %v3542
        %v3559 = vrcp.pop %v3543
        %v3560 = vrcp.pop %v3544
        %v3561 = vrcp.pop %v3545
        %v3562 = vrcp.pop %v3546
        %v3563 = vrcp.pop %v3547
        %v3564 = vrcp.pop %v3548
        %v3565 = vsub.f32 %v742, %v2931
        %v3566 = vsub.f32 %v743, %v2938
        %v3567 = vsub.f32 %v744, %v2945
        %v3568 = vsub.f32 %v745, %v2952
        %v3569 = vsub.f32 %v746, %v2959
        %v3570 = vsub.f32 %v747, %v2966
        %v3571 = vsub.f32 %v748, %v2973
        %v3572 = vsub.f32 %v749, %v2980
        %v3573 = vsub.f32 %v750, %v2987
        %v3574 = vsub.f32 %v751, %v2994
        %v3575 = vsub.f32 %v752, %v3001
        %v3576 = vsub.f32 %v753, %v3008
        %v3577 = vsub.f32 %v754, %v3015
        %v3578 = vsub.f32 %v755, %v3022
        %v3579 = vsub.f32 %v756, %v3029
        %v3580 = vsub.f32 %v757, %v3036
        %v3581 = vmul.f32 %v3565, %v3549
        %v3582 = vmul.f32 %v3566, %v3550
        %v3583 = vmul.f32 %v3567, %v3551
        %v3584 = vmul.f32 %v3568, %v3552
        %v3585 = vmul.f32 %v3569, %v3553
        %v3586 = vmul.f32 %v3570, %v3554
        %v3587 = vmul.f32 %v3571, %v3555
        %v3588 = vmul.f32 %v3572, %v3556
        %v3589 = vmul.f32 %v3573, %v3557
        %v3590 = vmul.f32 %v3574, %v3558
        %v3591 = vmul.f32 %v3575, %v3559
        %v3592 = vmul.f32 %v3576, %v3560
        %v3593 = vmul.f32 %v3577, %v3561
        %v3594 = vmul.f32 %v3578, %v3562
        %v3595 = vmul.f32 %v3579, %v3563
        %v3596 = vmul.f32 %v3580, %v3564
        %v3597 = vmul.f32 %v3581, %v3581
        %v3598 = vmul.f32 %v3582, %v3582
        %v3599 = vmul.f32 %v3583, %v3583
        %v3600 = vmul.f32 %v3584, %v3584
        %v3601 = vmul.f32 %v3585, %v3585
        %v3602 = vmul.f32 %v3586, %v3586
        %v3603 = vmul.f32 %v3587, %v3587
        %v3604 = vmul.f32 %v3588, %v3588
        %v3605 = vmul.f32 %v3589, %v3589
        %v3606 = vmul.f32 %v3590, %v3590
        %v3607 = vmul.f32 %v3591, %v3591
        %v3608 = vmul.f32 %v3592, %v3592
        %v3609 = vmul.f32 %v3593, %v3593
        %v3610 = vmul.f32 %v3594, %v3594
        %v3611 = vmul.f32 %v3595, %v3595
        %v3612 = vmul.f32 %v3596, %v3596
        %v3613 = vmul.f32 %v3597, %v3581
        %v3614 = vmul.f32 %v3598, %v3582
        %v3615 = vmul.f32 %v3599, %v3583
        %v3616 = vmul.f32 %v3600, %v3584
        %v3617 = vmul.f32 %v3601, %v3585
        %v3618 = vmul.f32 %v3602, %v3586
        %v3619 = vmul.f32 %v3603, %v3587
        %v3620 = vmul.f32 %v3604, %v3588
        %v3621 = vmul.f32 %v3605, %v3589
        %v3622 = vmul.f32 %v3606, %v3590
        %v3623 = vmul.f32 %v3607, %v3591
        %v3624 = vmul.f32 %v3608, %v3592
        %v3625 = vmul.f32 %v3609, %v3593
        %v3626 = vmul.f32 %v3610, %v3594
        %v3627 = vmul.f32 %v3611, %v3595
        %v3628 = vmul.f32 %v3612, %v3596
        %v3629 = vmul.f32 %v3613, 2.0
        %v3630 = vmul.f32 %v3614, 2.0
        %v3631 = vmul.f32 %v3615, 2.0
        %v3632 = vmul.f32 %v3616, 2.0
        %v3633 = vmul.f32 %v3617, 2.0
        %v3634 = vmul.f32 %v3618, 2.0
        %v3635 = vmul.f32 %v3619, 2.0
        %v3636 = vmul.f32 %v3620, 2.0
        %v3637 = vmul.f32 %v3621, 2.0
        %v3638 = vmul.f32 %v3622, 2.0
        %v3639 = vmul.f32 %v3623, 2.0
        %v3640 = vmul.f32 %v3624, 2.0
        %v3641 = vmul.f32 %v3625, 2.0
        %v3642 = vmul.f32 %v3626, 2.0
        %v3643 = vmul.f32 %v3627, 2.0
        %v3644 = vmul.f32 %v3628, 2.0
        %v3645 = vmul.f32 %v3597, 3.0
        %v3646 = vmul.f32 %v3598, 3.0
        %v3647 = vmul.f32 %v3599, 3.0
        %v3648 = vmul.f32 %v3600, 3.0
        %v3649 = vmul.f32 %v3601, 3.0
        %v3650 = vmul.f32 %v3602, 3.0
        %v3651 = vmul.f32 %v3603, 3.0
        %v3652 = vmul.f32 %v3604, 3.0
        %v3653 = vmul.f32 %v3605, 3.0
        %v3654 = vmul.f32 %v3606, 3.0
        %v3655 = vmul.f32 %v3607, 3.0
        %v3656 = vmul.f32 %v3608, 3.0
        %v3657 = vmul.f32 %v3609, 3.0
        %v3658 = vmul.f32 %v3610, 3.0
        %v3659 = vmul.f32 %v3611, 3.0
        %v3660 = vmul.f32 %v3612, 3.0
        %v3661 = vsub.f32 %v3629, %v3645
        %v3662 = vsub.f32 %v3630, %v3646
        %v3663 = vsub.f32 %v3631, %v3647
        %v3664 = vsub.f32 %v3632, %v3648
        %v3665 = vsub.f32 %v3633, %v3649
        %v3666 = vsub.f32 %v3634, %v3650
        %v3667 = vsub.f32 %v3635, %v3651
        %v3668 = vsub.f32 %v3636, %v3652
        %v3669 = vsub.f32 %v3637, %v3653
        %v3670 = vsub.f32 %v3638, %v3654
        %v3671 = vsub.f32 %v3639, %v3655
        %v3672 = vsub.f32 %v3640, %v3656
        %v3673 = vsub.f32 %v3641, %v3657
        %v3674 = vsub.f32 %v3642, %v3658
        %v3675 = vsub.f32 %v3643, %v3659
        %v3676 = vsub.f32 %v3644, %v3660
        %v3677 = vadd.f32 %v3661, 1.0
        %v3678 = vadd.f32 %v3662, 1.0
        %v3679 = vadd.f32 %v3663, 1.0
        %v3680 = vadd.f32 %v3664, 1.0
        %v3681 = vadd.f32 %v3665, 1.0
        %v3682 = vadd.f32 %v3666, 1.0
        %v3683 = vadd.f32 %v3667, 1.0
        %v3684 = vadd.f32 %v3668, 1.0
        %v3685 = vadd.f32 %v3669, 1.0
        %v3686 = vadd.f32 %v3670, 1.0
        %v3687 = vadd.f32 %v3671, 1.0
        %v3688 = vadd.f32 %v3672, 1.0
        %v3689 = vadd.f32 %v3673, 1.0
        %v3690 = vadd.f32 %v3674, 1.0
        %v3691 = vadd.f32 %v3675, 1.0
        %v3692 = vadd.f32 %v3676, 1.0
        %v3693 = vmul.f32 %v3677, %v2877
        %v3694 = vmul.f32 %v3678, %v2878
        %v3695 = vmul.f32 %v3679, %v2879
        %v3696 = vmul.f32 %v3680, %v2880
        %v3697 = vmul.f32 %v3681, %v2881
        %v3698 = vmul.f32 %v3682, %v2882
        %v3699 = vmul.f32 %v3683, %v2883
        %v3700 = vmul.f32 %v3684, %v2884
        %v3701 = vmul.f32 %v3685, %v2885
        %v3702 = vmul.f32 %v3686, %v2886
        %v3703 = vmul.f32 %v3687, %v2887
        %v3704 = vmul.f32 %v3688, %v2888
        %v3705 = vmul.f32 %v3689, %v2889
        %v3706 = vmul.f32 %v3690, %v2890
        %v3707 = vmul.f32 %v3691, %v2891
        %v3708 = vmul.f32 %v3692, %v2892
        %v3709 = vmul.f32 %v3597, 2.0
        %v3710 = vmul.f32 %v3598, 2.0
        %v3711 = vmul.f32 %v3599, 2.0
        %v3712 = vmul.f32 %v3600, 2.0
        %v3713 = vmul.f32 %v3601, 2.0
        %v3714 = vmul.f32 %v3602, 2.0
        %v3715 = vmul.f32 %v3603, 2.0
        %v3716 = vmul.f32 %v3604, 2.0
        %v3717 = vmul.f32 %v3605, 2.0
        %v3718 = vmul.f32 %v3606, 2.0
        %v3719 = vmul.f32 %v3607, 2.0
        %v3720 = vmul.f32 %v3608, 2.0
        %v3721 = vmul.f32 %v3609, 2.0
        %v3722 = vmul.f32 %v3610, 2.0
        %v3723 = vmul.f32 %v3611, 2.0
        %v3724 = vmul.f32 %v3612, 2.0
        %v3725 = vsub.f32 %v3613, %v3709
        %v3726 = vsub.f32 %v3614, %v3710
        %v3727 = vsub.f32 %v3615, %v3711
        %v3728 = vsub.f32 %v3616, %v3712
        %v3729 = vsub.f32 %v3617, %v3713
        %v3730 = vsub.f32 %v3618, %v3714
        %v3731 = vsub.f32 %v3619, %v3715
        %v3732 = vsub.f32 %v3620, %v3716
        %v3733 = vsub.f32 %v3621, %v3717
        %v3734 = vsub.f32 %v3622, %v3718
        %v3735 = vsub.f32 %v3623, %v3719
        %v3736 = vsub.f32 %v3624, %v3720
        %v3737 = vsub.f32 %v3625, %v3721
        %v3738 = vsub.f32 %v3626, %v3722
        %v3739 = vsub.f32 %v3627, %v3723
        %v3740 = vsub.f32 %v3628, %v3724
        %v3741 = vadd.f32 %v3725, %v3581
        %v3742 = vadd.f32 %v3726, %v3582
        %v3743 = vadd.f32 %v3727, %v3583
        %v3744 = vadd.f32 %v3728, %v3584
        %v3745 = vadd.f32 %v3729, %v3585
        %v3746 = vadd.f32 %v3730, %v3586
        %v3747 = vadd.f32 %v3731, %v3587
        %v3748 = vadd.f32 %v3732, %v3588
        %v3749 = vadd.f32 %v3733, %v3589
        %v3750 = vadd.f32 %v3734, %v3590
        %v3751 = vadd.f32 %v3735, %v3591
        %v3752 = vadd.f32 %v3736, %v3592
        %v3753 = vadd.f32 %v3737, %v3593
        %v3754 = vadd.f32 %v3738, %v3594
        %v3755 = vadd.f32 %v3739, %v3595
        %v3756 = vadd.f32 %v3740, %v3596
        %v3757 = vmul.f32 %v3741, %v3533
        %v3758 = vmul.f32 %v3742, %v3534
        %v3759 = vmul.f32 %v3743, %v3535
        %v3760 = vmul.f32 %v3744, %v3536
        %v3761 = vmul.f32 %v3745, %v3537
        %v3762 = vmul.f32 %v3746, %v3538
        %v3763 = vmul.f32 %v3747, %v3539
        %v3764 = vmul.f32 %v3748, %v3540
        %v3765 = vmul.f32 %v3749, %v3541
        %v3766 = vmul.f32 %v3750, %v3542
        %v3767 = vmul.f32 %v3751, %v3543
        %v3768 = vmul.f32 %v3752, %v3544
        %v3769 = vmul.f32 %v3753, %v3545
        %v3770 = vmul.f32 %v3754, %v3546
        %v3771 = vmul.f32 %v3755, %v3547
        %v3772 = vmul.f32 %v3756, %v3548
        %v3773 = vmul.f32 %v3757, 0.0
        %v3774 = vmul.f32 %v3758, 0.0
        %v3775 = vmul.f32 %v3759, 0.0
        %v3776 = vmul.f32 %v3760, 0.0
        %v3777 = vmul.f32 %v3761, 0.0
        %v3778 = vmul.f32 %v3762, 0.0
        %v3779 = vmul.f32 %v3763, 0.0
        %v3780 = vmul.f32 %v3764, 0.0
        %v3781 = vmul.f32 %v3765, 0.0
        %v3782 = vmul.f32 %v3766, 0.0
        %v3783 = vmul.f32 %v3767, 0.0
        %v3784 = vmul.f32 %v3768, 0.0
        %v3785 = vmul.f32 %v3769, 0.0
        %v3786 = vmul.f32 %v3770, 0.0
        %v3787 = vmul.f32 %v3771, 0.0
        %v3788 = vmul.f32 %v3772, 0.0
        %v3789 = vadd.f32 %v3693, %v3773
        %v3790 = vadd.f32 %v3694, %v3774
        %v3791 = vadd.f32 %v3695, %v3775
        %v3792 = vadd.f32 %v3696, %v3776
        %v3793 = vadd.f32 %v3697, %v3777
        %v3794 = vadd.f32 %v3698, %v3778
        %v3795 = vadd.f32 %v3699, %v3779
        %v3796 = vadd.f32 %v3700, %v3780
        %v3797 = vadd.f32 %v3701, %v3781
        %v3798 = vadd.f32 %v3702, %v3782
        %v3799 = vadd.f32 %v3703, %v3783
        %v3800 = vadd.f32 %v3704, %v3784
        %v3801 = vadd.f32 %v3705, %v3785
        %v3802 = vadd.f32 %v3706, %v3786
        %v3803 = vadd.f32 %v3707, %v3787
        %v3804 = vadd.f32 %v3708, %v3788
        %v3805 = vmul.f32 %v3613, -2.0
        %v3806 = vmul.f32 %v3614, -2.0
        %v3807 = vmul.f32 %v3615, -2.0
        %v3808 = vmul.f32 %v3616, -2.0
        %v3809 = vmul.f32 %v3617, -2.0
        %v3810 = vmul.f32 %v3618, -2.0
        %v3811 = vmul.f32 %v3619, -2.0
        %v3812 = vmul.f32 %v3620, -2.0
        %v3813 = vmul.f32 %v3621, -2.0
        %v3814 = vmul.f32 %v3622, -2.0
        %v3815 = vmul.f32 %v3623, -2.0
        %v3816 = vmul.f32 %v3624, -2.0
        %v3817 = vmul.f32 %v3625, -2.0
        %v3818 = vmul.f32 %v3626, -2.0
        %v3819 = vmul.f32 %v3627, -2.0
        %v3820 = vmul.f32 %v3628, -2.0
        %v3821 = vadd.f32 %v3805, %v3645
        %v3822 = vadd.f32 %v3806, %v3646
        %v3823 = vadd.f32 %v3807, %v3647
        %v3824 = vadd.f32 %v3808, %v3648
        %v3825 = vadd.f32 %v3809, %v3649
        %v3826 = vadd.f32 %v3810, %v3650
        %v3827 = vadd.f32 %v3811, %v3651
        %v3828 = vadd.f32 %v3812, %v3652
        %v3829 = vadd.f32 %v3813, %v3653
        %v3830 = vadd.f32 %v3814, %v3654
        %v3831 = vadd.f32 %v3815, %v3655
        %v3832 = vadd.f32 %v3816, %v3656
        %v3833 = vadd.f32 %v3817, %v3657
        %v3834 = vadd.f32 %v3818, %v3658
        %v3835 = vadd.f32 %v3819, %v3659
        %v3836 = vadd.f32 %v3820, %v3660
        %v3837 = vmul.f32 %v3821, %v3357
        %v3838 = vmul.f32 %v3822, %v3358
        %v3839 = vmul.f32 %v3823, %v3359
        %v3840 = vmul.f32 %v3824, %v3360
        %v3841 = vmul.f32 %v3825, %v3361
        %v3842 = vmul.f32 %v3826, %v3362
        %v3843 = vmul.f32 %v3827, %v3363
        %v3844 = vmul.f32 %v3828, %v3364
        %v3845 = vmul.f32 %v3829, %v3365
        %v3846 = vmul.f32 %v3830, %v3366
        %v3847 = vmul.f32 %v3831, %v3367
        %v3848 = vmul.f32 %v3832, %v3368
        %v3849 = vmul.f32 %v3833, %v3369
        %v3850 = vmul.f32 %v3834, %v3370
        %v3851 = vmul.f32 %v3835, %v3371
        %v3852 = vmul.f32 %v3836, %v3372
        %v3853 = vadd.f32 %v3789, %v3837
        %v3854 = vadd.f32 %v3790, %v3838
        %v3855 = vadd.f32 %v3791, %v3839
        %v3856 = vadd.f32 %v3792, %v3840
        %v3857 = vadd.f32 %v3793, %v3841
        %v3858 = vadd.f32 %v3794, %v3842
        %v3859 = vadd.f32 %v3795, %v3843
        %v3860 = vadd.f32 %v3796, %v3844
        %v3861 = vadd.f32 %v3797, %v3845
        %v3862 = vadd.f32 %v3798, %v3846
        %v3863 = vadd.f32 %v3799, %v3847
        %v3864 = vadd.f32 %v3800, %v3848
        %v3865 = vadd.f32 %v3801, %v3849
        %v3866 = vadd.f32 %v3802, %v3850
        %v3867 = vadd.f32 %v3803, %v3851
        %v3868 = vadd.f32 %v3804, %v3852
        %v3869 = vsub.f32 %v3613, %v3597
        %v3870 = vsub.f32 %v3614, %v3598
        %v3871 = vsub.f32 %v3615, %v3599
        %v3872 = vsub.f32 %v3616, %v3600
        %v3873 = vsub.f32 %v3617, %v3601
        %v3874 = vsub.f32 %v3618, %v3602
        %v3875 = vsub.f32 %v3619, %v3603
        %v3876 = vsub.f32 %v3620, %v3604
        %v3877 = vsub.f32 %v3621, %v3605
        %v3878 = vsub.f32 %v3622, %v3606
        %v3879 = vsub.f32 %v3623, %v3607
        %v3880 = vsub.f32 %v3624, %v3608
        %v3881 = vsub.f32 %v3625, %v3609
        %v3882 = vsub.f32 %v3626, %v3610
        %v3883 = vsub.f32 %v3627, %v3611
        %v3884 = vsub.f32 %v3628, %v3612
        %v3885 = vmul.f32 %v3869, %v3533
        %v3886 = vmul.f32 %v3870, %v3534
        %v3887 = vmul.f32 %v3871, %v3535
        %v3888 = vmul.f32 %v3872, %v3536
        %v3889 = vmul.f32 %v3873, %v3537
        %v3890 = vmul.f32 %v3874, %v3538
        %v3891 = vmul.f32 %v3875, %v3539
        %v3892 = vmul.f32 %v3876, %v3540
        %v3893 = vmul.f32 %v3877, %v3541
        %v3894 = vmul.f32 %v3878, %v3542
        %v3895 = vmul.f32 %v3879, %v3543
        %v3896 = vmul.f32 %v3880, %v3544
        %v3897 = vmul.f32 %v3881, %v3545
        %v3898 = vmul.f32 %v3882, %v3546
        %v3899 = vmul.f32 %v3883, %v3547
        %v3900 = vmul.f32 %v3884, %v3548
        %v3901 = vmul.f32 %v3885, %v3517
        %v3902 = vmul.f32 %v3886, %v3518
        %v3903 = vmul.f32 %v3887, %v3519
        %v3904 = vmul.f32 %v3888, %v3520
        %v3905 = vmul.f32 %v3889, %v3521
        %v3906 = vmul.f32 %v3890, %v3522
        %v3907 = vmul.f32 %v3891, %v3523
        %v3908 = vmul.f32 %v3892, %v3524
        %v3909 = vmul.f32 %v3893, %v3525
        %v3910 = vmul.f32 %v3894, %v3526
        %v3911 = vmul.f32 %v3895, %v3527
        %v3912 = vmul.f32 %v3896, %v3528
        %v3913 = vmul.f32 %v3897, %v3529
        %v3914 = vmul.f32 %v3898, %v3530
        %v3915 = vmul.f32 %v3899, %v3531
        %v3916 = vmul.f32 %v3900, %v3532
        %v3917 = vadd.f32 %v3853, %v3901
        %v3918 = vadd.f32 %v3854, %v3902
        %v3919 = vadd.f32 %v3855, %v3903
        %v3920 = vadd.f32 %v3856, %v3904
        %v3921 = vadd.f32 %v3857, %v3905
        %v3922 = vadd.f32 %v3858, %v3906
        %v3923 = vadd.f32 %v3859, %v3907
        %v3924 = vadd.f32 %v3860, %v3908
        %v3925 = vadd.f32 %v3861, %v3909
        %v3926 = vadd.f32 %v3862, %v3910
        %v3927 = vadd.f32 %v3863, %v3911
        %v3928 = vadd.f32 %v3864, %v3912
        %v3929 = vadd.f32 %v3865, %v3913
        %v3930 = vadd.f32 %v3866, %v3914
        %v3931 = vadd.f32 %v3867, %v3915
        %v3932 = vadd.f32 %v3868, %v3916
        %v3933 = vsub.f32 %v742, %v883
        %v3934 = vsub.f32 %v743, %v887
        %v3935 = vsub.f32 %v744, %v891
        %v3936 = vsub.f32 %v745, %v895
        %v3937 = vsub.f32 %v746, %v899
        %v3938 = vsub.f32 %v747, %v903
        %v3939 = vsub.f32 %v748, %v907
        %v3940 = vsub.f32 %v749, %v911
        %v3941 = vsub.f32 %v750, %v915
        %v3942 = vsub.f32 %v751, %v919
        %v3943 = vsub.f32 %v752, %v923
        %v3944 = vsub.f32 %v753, %v927
        %v3945 = vsub.f32 %v754, %v931
        %v3946 = vsub.f32 %v755, %v935
        %v3947 = vsub.f32 %v756, %v939
        %v3948 = vsub.f32 %v757, %v943
        %v3949 = vmul.f32 %v3933, %v2386
        %v3950 = vmul.f32 %v3934, %v2390
        %v3951 = vmul.f32 %v3935, %v2394
        %v3952 = vmul.f32 %v3936, %v2398
        %v3953 = vmul.f32 %v3937, %v2402
        %v3954 = vmul.f32 %v3938, %v2406
        %v3955 = vmul.f32 %v3939, %v2410
        %v3956 = vmul.f32 %v3940, %v2414
        %v3957 = vmul.f32 %v3941, %v2418
        %v3958 = vmul.f32 %v3942, %v2422
        %v3959 = vmul.f32 %v3943, %v2426
        %v3960 = vmul.f32 %v3944, %v2430
        %v3961 = vmul.f32 %v3945, %v2434
        %v3962 = vmul.f32 %v3946, %v2438
        %v3963 = vmul.f32 %v3947, %v2442
        %v3964 = vmul.f32 %v3948, %v2446
        %v3965 = vsub.f32 %v742, %v948
        %v3966 = vsub.f32 %v743, %v948
        %v3967 = vsub.f32 %v744, %v948
        %v3968 = vsub.f32 %v745, %v948
        %v3969 = vsub.f32 %v746, %v948
        %v3970 = vsub.f32 %v747, %v948
        %v3971 = vsub.f32 %v748, %v948
        %v3972 = vsub.f32 %v749, %v948
        %v3973 = vsub.f32 %v750, %v948
        %v3974 = vsub.f32 %v751, %v948
        %v3975 = vsub.f32 %v752, %v948
        %v3976 = vsub.f32 %v753, %v948
        %v3977 = vsub.f32 %v754, %v948
        %v3978 = vsub.f32 %v755, %v948
        %v3979 = vsub.f32 %v756, %v948
        %v3980 = vsub.f32 %v757, %v948
        %v3981 = vmul.f32 %v3965, %v2483
        %v3982 = vmul.f32 %v3966, %v2483
        %v3983 = vmul.f32 %v3967, %v2483
        %v3984 = vmul.f32 %v3968, %v2483
        %v3985 = vmul.f32 %v3969, %v2483
        %v3986 = vmul.f32 %v3970, %v2483
        %v3987 = vmul.f32 %v3971, %v2483
        %v3988 = vmul.f32 %v3972, %v2483
        %v3989 = vmul.f32 %v3973, %v2483
        %v3990 = vmul.f32 %v3974, %v2483
        %v3991 = vmul.f32 %v3975, %v2483
        %v3992 = vmul.f32 %v3976, %v2483
        %v3993 = vmul.f32 %v3977, %v2483
        %v3994 = vmul.f32 %v3978, %v2483
        %v3995 = vmul.f32 %v3979, %v2483
        %v3996 = vmul.f32 %v3980, %v2483
        %v3997 = vsub.f32 0.0, %v3949
        %v3998 = vsub.f32 0.0, %v3950
        %v3999 = vsub.f32 0.0, %v3951
        %v4000 = vsub.f32 0.0, %v3952
        %v4001 = vsub.f32 0.0, %v3953
        %v4002 = vsub.f32 0.0, %v3954
        %v4003 = vsub.f32 0.0, %v3955
        %v4004 = vsub.f32 0.0, %v3956
        %v4005 = vsub.f32 0.0, %v3957
        %v4006 = vsub.f32 0.0, %v3958
        %v4007 = vsub.f32 0.0, %v3959
        %v4008 = vsub.f32 0.0, %v3960
        %v4009 = vsub.f32 0.0, %v3961
        %v4010 = vsub.f32 0.0, %v3962
        %v4011 = vsub.f32 0.0, %v3963
        %v4012 = vsub.f32 0.0, %v3964
        %v4013 = vmul.f32 %v3997, %v3949
        %v4014 = vmul.f32 %v3998, %v3950
        %v4015 = vmul.f32 %v3999, %v3951
        %v4016 = vmul.f32 %v4000, %v3952
        %v4017 = vmul.f32 %v4001, %v3953
        %v4018 = vmul.f32 %v4002, %v3954
        %v4019 = vmul.f32 %v4003, %v3955
        %v4020 = vmul.f32 %v4004, %v3956
        %v4021 = vmul.f32 %v4005, %v3957
        %v4022 = vmul.f32 %v4006, %v3958
        %v4023 = vmul.f32 %v4007, %v3959
        %v4024 = vmul.f32 %v4008, %v3960
        %v4025 = vmul.f32 %v4009, %v3961
        %v4026 = vmul.f32 %v4010, %v3962
        %v4027 = vmul.f32 %v4011, %v3963
        %v4028 = vmul.f32 %v4012, %v3964
        %v4029 = vmul.f32 %v4013, 1.442695
        %v4030 = vpow.pop %v4029
        %v4031 = vmul.f32 %v4014, 1.442695
        %v4032 = vpow.pop %v4031
        %v4033 = vmul.f32 %v4015, 1.442695
        %v4034 = vpow.pop %v4033
        %v4035 = vmul.f32 %v4016, 1.442695
        %v4036 = vpow.pop %v4035
        %v4037 = vmul.f32 %v4017, 1.442695
        %v4038 = vpow.pop %v4037
        %v4039 = vmul.f32 %v4018, 1.442695
        %v4040 = vpow.pop %v4039
        %v4041 = vmul.f32 %v4019, 1.442695
        %v4042 = vpow.pop %v4041
        %v4043 = vmul.f32 %v4020, 1.442695
        %v4044 = vpow.pop %v4043
        %v4045 = vmul.f32 %v4021, 1.442695
        %v4046 = vpow.pop %v4045
        %v4047 = vmul.f32 %v4022, 1.442695
        %v4048 = vpow.pop %v4047
        %v4049 = vmul.f32 %v4023, 1.442695
        %v4050 = vpow.pop %v4049
        %v4051 = vmul.f32 %v4024, 1.442695
        %v4052 = vpow.pop %v4051
        %v4053 = vmul.f32 %v4025, 1.442695
        %v4054 = vpow.pop %v4053
        %v4055 = vmul.f32 %v4026, 1.442695
        %v4056 = vpow.pop %v4055
        %v4057 = vmul.f32 %v4027, 1.442695
        %v4058 = vpow.pop %v4057
        %v4059 = vmul.f32 %v4028, 1.442695
        %v4060 = vpow.pop %v4059
        %v4061 = vmul.f32 %v2569, %v4030
        %v4062 = vmul.f32 %v2570, %v4032
        %v4063 = vmul.f32 %v2571, %v4034
        %v4064 = vmul.f32 %v2572, %v4036
        %v4065 = vmul.f32 %v2573, %v4038
        %v4066 = vmul.f32 %v2574, %v4040
        %v4067 = vmul.f32 %v2575, %v4042
        %v4068 = vmul.f32 %v2576, %v4044
        %v4069 = vmul.f32 %v2577, %v4046
        %v4070 = vmul.f32 %v2578, %v4048
        %v4071 = vmul.f32 %v2579, %v4050
        %v4072 = vmul.f32 %v2580, %v4052
        %v4073 = vmul.f32 %v2581, %v4054
        %v4074 = vmul.f32 %v2582, %v4056
        %v4075 = vmul.f32 %v2583, %v4058
        %v4076 = vmul.f32 %v2584, %v4060
        %v4077 = vsub.f32 0.0, %v3981
        %v4078 = vsub.f32 0.0, %v3982
        %v4079 = vsub.f32 0.0, %v3983
        %v4080 = vsub.f32 0.0, %v3984
        %v4081 = vsub.f32 0.0, %v3985
        %v4082 = vsub.f32 0.0, %v3986
        %v4083 = vsub.f32 0.0, %v3987
        %v4084 = vsub.f32 0.0, %v3988
        %v4085 = vsub.f32 0.0, %v3989
        %v4086 = vsub.f32 0.0, %v3990
        %v4087 = vsub.f32 0.0, %v3991
        %v4088 = vsub.f32 0.0, %v3992
        %v4089 = vsub.f32 0.0, %v3993
        %v4090 = vsub.f32 0.0, %v3994
        %v4091 = vsub.f32 0.0, %v3995
        %v4092 = vsub.f32 0.0, %v3996
        %v4093 = vmul.f32 %v4077, %v3981
        %v4094 = vmul.f32 %v4078, %v3982
        %v4095 = vmul.f32 %v4079, %v3983
        %v4096 = vmul.f32 %v4080, %v3984
        %v4097 = vmul.f32 %v4081, %v3985
        %v4098 = vmul.f32 %v4082, %v3986
        %v4099 = vmul.f32 %v4083, %v3987
        %v4100 = vmul.f32 %v4084, %v3988
        %v4101 = vmul.f32 %v4085, %v3989
        %v4102 = vmul.f32 %v4086, %v3990
        %v4103 = vmul.f32 %v4087, %v3991
        %v4104 = vmul.f32 %v4088, %v3992
        %v4105 = vmul.f32 %v4089, %v3993
        %v4106 = vmul.f32 %v4090, %v3994
        %v4107 = vmul.f32 %v4091, %v3995
        %v4108 = vmul.f32 %v4092, %v3996
        %v4109 = vmul.f32 %v4093, 1.442695
        %v4110 = vpow.pop %v4109
        %v4111 = vmul.f32 %v4094, 1.442695
        %v4112 = vpow.pop %v4111
        %v4113 = vmul.f32 %v4095, 1.442695
        %v4114 = vpow.pop %v4113
        %v4115 = vmul.f32 %v4096, 1.442695
        %v4116 = vpow.pop %v4115
        %v4117 = vmul.f32 %v4097, 1.442695
        %v4118 = vpow.pop %v4117
        %v4119 = vmul.f32 %v4098, 1.442695
        %v4120 = vpow.pop %v4119
        %v4121 = vmul.f32 %v4099, 1.442695
        %v4122 = vpow.pop %v4121
        %v4123 = vmul.f32 %v4100, 1.442695
        %v4124 = vpow.pop %v4123
        %v4125 = vmul.f32 %v4101, 1.442695
        %v4126 = vpow.pop %v4125
        %v4127 = vmul.f32 %v4102, 1.442695
        %v4128 = vpow.pop %v4127
        %v4129 = vmul.f32 %v4103, 1.442695
        %v4130 = vpow.pop %v4129
        %v4131 = vmul.f32 %v4104, 1.442695
        %v4132 = vpow.pop %v4131
        %v4133 = vmul.f32 %v4105, 1.442695
        %v4134 = vpow.pop %v4133
        %v4135 = vmul.f32 %v4106, 1.442695
        %v4136 = vpow.pop %v4135
        %v4137 = vmul.f32 %v4107, 1.442695
        %v4138 = vpow.pop %v4137
        %v4139 = vmul.f32 %v4108, 1.442695
        %v4140 = vpow.pop %v4139
        %v4141 = vmul.f32 %v2765, %v4110
        %v4142 = vmul.f32 %v2766, %v4112
        %v4143 = vmul.f32 %v2767, %v4114
        %v4144 = vmul.f32 %v2768, %v4116
        %v4145 = vmul.f32 %v2769, %v4118
        %v4146 = vmul.f32 %v2770, %v4120
        %v4147 = vmul.f32 %v2771, %v4122
        %v4148 = vmul.f32 %v2772, %v4124
        %v4149 = vmul.f32 %v2773, %v4126
        %v4150 = vmul.f32 %v2774, %v4128
        %v4151 = vmul.f32 %v2775, %v4130
        %v4152 = vmul.f32 %v2776, %v4132
        %v4153 = vmul.f32 %v2777, %v4134
        %v4154 = vmul.f32 %v2778, %v4136
        %v4155 = vmul.f32 %v2779, %v4138
        %v4156 = vmul.f32 %v2780, %v4140
        %v4157 = vadd.f32 %v4061, %v4141
        %v4158 = vadd.f32 %v4062, %v4142
        %v4159 = vadd.f32 %v4063, %v4143
        %v4160 = vadd.f32 %v4064, %v4144
        %v4161 = vadd.f32 %v4065, %v4145
        %v4162 = vadd.f32 %v4066, %v4146
        %v4163 = vadd.f32 %v4067, %v4147
        %v4164 = vadd.f32 %v4068, %v4148
        %v4165 = vadd.f32 %v4069, %v4149
        %v4166 = vadd.f32 %v4070, %v4150
        %v4167 = vadd.f32 %v4071, %v4151
        %v4168 = vadd.f32 %v4072, %v4152
        %v4169 = vadd.f32 %v4073, %v4153
        %v4170 = vadd.f32 %v4074, %v4154
        %v4171 = vadd.f32 %v4075, %v4155
        %v4172 = vadd.f32 %v4076, %v4156
        %v4173 = vmul.f32 %v4157, %v758
        %v4174 = vmul.f32 %v4158, %v759
        %v4175 = vmul.f32 %v4159, %v760
        %v4176 = vmul.f32 %v4160, %v761
        %v4177 = vmul.f32 %v4161, %v762
        %v4178 = vmul.f32 %v4162, %v763
        %v4179 = vmul.f32 %v4163, %v764
        %v4180 = vmul.f32 %v4164, %v765
        %v4181 = vmul.f32 %v4165, %v766
        %v4182 = vmul.f32 %v4166, %v767
        %v4183 = vmul.f32 %v4167, %v768
        %v4184 = vmul.f32 %v4168, %v769
        %v4185 = vmul.f32 %v4169, %v770
        %v4186 = vmul.f32 %v4170, %v771
        %v4187 = vmul.f32 %v4171, %v772
        %v4188 = vmul.f32 %v4172, %v773
        %v4189 = vsub.f32 4.5, %v343
        %v4190 = vsub.f32 4.5, %v344
        %v4191 = vsub.f32 4.5, %v345
        %v4192 = vsub.f32 4.5, %v346
        %v4193 = vsub.f32 4.5, %v347
        %v4194 = vsub.f32 4.5, %v348
        %v4195 = vsub.f32 4.5, %v349
        %v4196 = vsub.f32 4.5, %v350
        %v4197 = vsub.f32 4.5, %v351
        %v4198 = vsub.f32 4.5, %v352
        %v4199 = vsub.f32 4.5, %v353
        %v4200 = vsub.f32 4.5, %v354
        %v4201 = vsub.f32 4.5, %v355
        %v4202 = vsub.f32 4.5, %v356
        %v4203 = vsub.f32 4.5, %v357
        %v4204 = vsub.f32 4.5, %v358
        %4205 = vrot.lane.b32.xlu0 %v343, 125
        %v4206 = vpop.permute.xlu0 %4205
        %4207 = vrot.lane.b32.xlu0 %v344, 125
        %v4208 = vpop.permute.xlu0 %4207
        %4209 = vrot.lane.b32.xlu0 %v345, 125
        %v4210 = vpop.permute.xlu0 %4209
        %4211 = vrot.lane.b32.xlu0 %v346, 125
        %v4212 = vpop.permute.xlu0 %4211
        %4213 = vrot.lane.b32.xlu0 %v347, 125
        %v4214 = vpop.permute.xlu0 %4213
        %4215 = vrot.lane.b32.xlu0 %v348, 125
        %v4216 = vpop.permute.xlu0 %4215
        %4217 = vrot.lane.b32.xlu0 %v349, 125
        %v4218 = vpop.permute.xlu0 %4217
        %4219 = vrot.lane.b32.xlu0 %v350, 125
        %v4220 = vpop.permute.xlu0 %4219
        %4221 = vrot.lane.b32.xlu0 %v351, 125
        %v4222 = vpop.permute.xlu0 %4221
        %4223 = vrot.lane.b32.xlu0 %v352, 125
        %v4224 = vpop.permute.xlu0 %4223
        %4225 = vrot.lane.b32.xlu0 %v353, 125
        %v4226 = vpop.permute.xlu0 %4225
        %4227 = vrot.lane.b32.xlu0 %v354, 125
        %v4228 = vpop.permute.xlu0 %4227
        %4229 = vrot.lane.b32.xlu0 %v355, 125
        %v4230 = vpop.permute.xlu0 %4229
        %4231 = vrot.lane.b32.xlu0 %v356, 125
        %v4232 = vpop.permute.xlu0 %4231
        %4233 = vrot.lane.b32.xlu0 %v357, 125
        %v4234 = vpop.permute.xlu0 %4233
        %4235 = vrot.lane.b32.xlu0 %v358, 125
        %v4236 = vpop.permute.xlu0 %4235
        %v4253 = vmul.f32 %v4189, %v4206
        %v4254 = vmul.f32 %v4190, %v4208
        %v4255 = vmul.f32 %v4191, %v4210
        %v4256 = vmul.f32 %v4192, %v4212
        %v4257 = vmul.f32 %v4193, %v4214
        %v4258 = vmul.f32 %v4194, %v4216
        %v4259 = vmul.f32 %v4195, %v4218
        %v4260 = vmul.f32 %v4196, %v4220
        %v4261 = vmul.f32 %v4197, %v4222
        %v4262 = vmul.f32 %v4198, %v4224
        %v4263 = vmul.f32 %v4199, %v4226
        %v4264 = vmul.f32 %v4200, %v4228
        %v4265 = vmul.f32 %v4201, %v4230
        %v4266 = vmul.f32 %v4202, %v4232
        %v4267 = vmul.f32 %v4203, %v4234
        %v4268 = vmul.f32 %v4204, %v4236
        %v4269 = vsub.f32 4.5, %v879
        %v4270 = vmul.f32 %v4269, %v2303
        %v4271 = vsub.f32 0.0, %v4253
        %v4272 = vsub.f32 0.0, %v4254
        %v4273 = vsub.f32 0.0, %v4255
        %v4274 = vsub.f32 0.0, %v4256
        %v4275 = vsub.f32 0.0, %v4257
        %v4276 = vsub.f32 0.0, %v4258
        %v4277 = vsub.f32 0.0, %v4259
        %v4278 = vsub.f32 0.0, %v4260
        %v4279 = vsub.f32 0.0, %v4261
        %v4280 = vsub.f32 0.0, %v4262
        %v4281 = vsub.f32 0.0, %v4263
        %v4282 = vsub.f32 0.0, %v4264
        %v4283 = vsub.f32 0.0, %v4265
        %v4284 = vsub.f32 0.0, %v4266
        %v4285 = vsub.f32 0.0, %v4267
        %v4286 = vsub.f32 0.0, %v4268
        %v4287 = vmul.f32 %v4271, %v4253
        %v4288 = vmul.f32 %v4272, %v4254
        %v4289 = vmul.f32 %v4273, %v4255
        %v4290 = vmul.f32 %v4274, %v4256
        %v4291 = vmul.f32 %v4275, %v4257
        %v4292 = vmul.f32 %v4276, %v4258
        %v4293 = vmul.f32 %v4277, %v4259
        %v4294 = vmul.f32 %v4278, %v4260
        %v4295 = vmul.f32 %v4279, %v4261
        %v4296 = vmul.f32 %v4280, %v4262
        %v4297 = vmul.f32 %v4281, %v4263
        %v4298 = vmul.f32 %v4282, %v4264
        %v4299 = vmul.f32 %v4283, %v4265
        %v4300 = vmul.f32 %v4284, %v4266
        %v4301 = vmul.f32 %v4285, %v4267
        %v4302 = vmul.f32 %v4286, %v4268
        %v4303 = vmul.f32 %v4287, 1.442695
        %v4304 = vpow.pop %v4303
        %v4305 = vmul.f32 %v4288, 1.442695
        %v4306 = vpow.pop %v4305
        %v4307 = vmul.f32 %v4289, 1.442695
        %v4308 = vpow.pop %v4307
        %v4309 = vmul.f32 %v4290, 1.442695
        %v4310 = vpow.pop %v4309
        %v4311 = vmul.f32 %v4291, 1.442695
        %v4312 = vpow.pop %v4311
        %v4313 = vmul.f32 %v4292, 1.442695
        %v4314 = vpow.pop %v4313
        %v4315 = vmul.f32 %v4293, 1.442695
        %v4316 = vpow.pop %v4315
        %v4317 = vmul.f32 %v4294, 1.442695
        %v4318 = vpow.pop %v4317
        %v4319 = vmul.f32 %v4295, 1.442695
        %v4320 = vpow.pop %v4319
        %v4321 = vmul.f32 %v4296, 1.442695
        %v4322 = vpow.pop %v4321
        %v4323 = vmul.f32 %v4297, 1.442695
        %v4324 = vpow.pop %v4323
        %v4325 = vmul.f32 %v4298, 1.442695
        %v4326 = vpow.pop %v4325
        %v4327 = vmul.f32 %v4299, 1.442695
        %v4328 = vpow.pop %v4327
        %v4329 = vmul.f32 %v4300, 1.442695
        %v4330 = vpow.pop %v4329
        %v4331 = vmul.f32 %v4301, 1.442695
        %v4332 = vpow.pop %v4331
        %v4333 = vmul.f32 %v4302, 1.442695
        %v4334 = vpow.pop %v4333
        %4336 = vset.pattern.permute.xlu0 3
        %4337 = vperm.xlu0 %4336, %v4304
        %v4338 = vpop.permute.xlu0 %4337
        %4341 = vset.pattern.permute.xlu0 3
        %4342 = vperm.xlu0 %4341, %v4306
        %v4343 = vpop.permute.xlu0 %4342
        %4346 = vset.pattern.permute.xlu0 3
        %4347 = vperm.xlu0 %4346, %v4308
        %v4348 = vpop.permute.xlu0 %4347
        %4351 = vset.pattern.permute.xlu0 3
        %4352 = vperm.xlu0 %4351, %v4310
        %v4353 = vpop.permute.xlu0 %4352
        %4356 = vset.pattern.permute.xlu0 3
        %4357 = vperm.xlu0 %4356, %v4312
        %v4358 = vpop.permute.xlu0 %4357
        %4361 = vset.pattern.permute.xlu0 3
        %4362 = vperm.xlu0 %4361, %v4314
        %v4363 = vpop.permute.xlu0 %4362
        %4366 = vset.pattern.permute.xlu0 3
        %4367 = vperm.xlu0 %4366, %v4316
        %v4368 = vpop.permute.xlu0 %4367
        %4371 = vset.pattern.permute.xlu0 3
        %4372 = vperm.xlu0 %4371, %v4318
        %v4373 = vpop.permute.xlu0 %4372
        %4376 = vset.pattern.permute.xlu0 3
        %4377 = vperm.xlu0 %4376, %v4320
        %v4378 = vpop.permute.xlu0 %4377
        %4381 = vset.pattern.permute.xlu0 3
        %4382 = vperm.xlu0 %4381, %v4322
        %v4383 = vpop.permute.xlu0 %4382
        %4386 = vset.pattern.permute.xlu0 3
        %4387 = vperm.xlu0 %4386, %v4324
        %v4388 = vpop.permute.xlu0 %4387
        %4391 = vset.pattern.permute.xlu0 3
        %4392 = vperm.xlu0 %4391, %v4326
        %v4393 = vpop.permute.xlu0 %4392
        %4396 = vset.pattern.permute.xlu0 3
        %4397 = vperm.xlu0 %4396, %v4328
        %v4398 = vpop.permute.xlu0 %4397
        %4401 = vset.pattern.permute.xlu0 3
        %4402 = vperm.xlu0 %4401, %v4330
        %v4403 = vpop.permute.xlu0 %4402
        %4406 = vset.pattern.permute.xlu0 3
        %4407 = vperm.xlu0 %4406, %v4332
        %v4408 = vpop.permute.xlu0 %4407
        %4411 = vset.pattern.permute.xlu0 3
        %4412 = vperm.xlu0 %4411, %v4334
        %v4413 = vpop.permute.xlu0 %4412
        %v4415 = vmul.f32 %v2569, %v4338
        %v4416 = vmul.f32 %v2570, %v4343
        %v4417 = vmul.f32 %v2571, %v4348
        %v4418 = vmul.f32 %v2572, %v4353
        %v4419 = vmul.f32 %v2573, %v4358
        %v4420 = vmul.f32 %v2574, %v4363
        %v4421 = vmul.f32 %v2575, %v4368
        %v4422 = vmul.f32 %v2576, %v4373
        %v4423 = vmul.f32 %v2577, %v4378
        %v4424 = vmul.f32 %v2578, %v4383
        %v4425 = vmul.f32 %v2579, %v4388
        %v4426 = vmul.f32 %v2580, %v4393
        %v4427 = vmul.f32 %v2581, %v4398
        %v4428 = vmul.f32 %v2582, %v4403
        %v4429 = vmul.f32 %v2583, %v4408
        %v4430 = vmul.f32 %v2584, %v4413
        %v4431 = vsub.f32 0.0, %v4270
        %v4432 = vmul.f32 %v4431, %v4270
        %v4433 = vmul.f32 %v4432, 1.442695
        %v4434 = vpow.pop %v4433
        %v4435 = vlaneseq
        %v4436 = vshrl.u32 %v4435, 7
        %v4437 = vsub.s32 0, %v4436
        %v4438 = vrot.slane %v4434, %v4437
        %v4439 = vmul.f32 %v2765, %v4438
        %v4440 = vmul.f32 %v2766, %v4438
        %v4441 = vmul.f32 %v2767, %v4438
        %v4442 = vmul.f32 %v2768, %v4438
        %v4443 = vmul.f32 %v2769, %v4438
        %v4444 = vmul.f32 %v2770, %v4438
        %v4445 = vmul.f32 %v2771, %v4438
        %v4446 = vmul.f32 %v2772, %v4438
        %v4447 = vmul.f32 %v2773, %v4438
        %v4448 = vmul.f32 %v2774, %v4438
        %v4449 = vmul.f32 %v2775, %v4438
        %v4450 = vmul.f32 %v2776, %v4438
        %v4451 = vmul.f32 %v2777, %v4438
        %v4452 = vmul.f32 %v2778, %v4438
        %v4453 = vmul.f32 %v2779, %v4438
        %v4454 = vmul.f32 %v2780, %v4438
        %v4455 = vadd.f32 %v4415, %v4439
        %v4456 = vadd.f32 %v4416, %v4440
        %v4457 = vadd.f32 %v4417, %v4441
        %v4458 = vadd.f32 %v4418, %v4442
        %v4459 = vadd.f32 %v4419, %v4443
        %v4460 = vadd.f32 %v4420, %v4444
        %v4461 = vadd.f32 %v4421, %v4445
        %v4462 = vadd.f32 %v4422, %v4446
        %v4463 = vadd.f32 %v4423, %v4447
        %v4464 = vadd.f32 %v4424, %v4448
        %v4465 = vadd.f32 %v4425, %v4449
        %v4466 = vadd.f32 %v4426, %v4450
        %v4467 = vadd.f32 %v4427, %v4451
        %v4468 = vadd.f32 %v4428, %v4452
        %v4469 = vadd.f32 %v4429, %v4453
        %v4470 = vadd.f32 %v4430, %v4454
        %v4471 = vmul.f32 %v4455, 0.049382716
        %v4472 = vmul.f32 %v4456, 0.049382716
        %v4473 = vmul.f32 %v4457, 0.049382716
        %v4474 = vmul.f32 %v4458, 0.049382716
        %v4475 = vmul.f32 %v4459, 0.049382716
        %v4476 = vmul.f32 %v4460, 0.049382716
        %v4477 = vmul.f32 %v4461, 0.049382716
        %v4478 = vmul.f32 %v4462, 0.049382716
        %v4479 = vmul.f32 %v4463, 0.049382716
        %v4480 = vmul.f32 %v4464, 0.049382716
        %v4481 = vmul.f32 %v4465, 0.049382716
        %v4482 = vmul.f32 %v4466, 0.049382716
        %v4483 = vmul.f32 %v4467, 0.049382716
        %v4484 = vmul.f32 %v4468, 0.049382716
        %v4485 = vmul.f32 %v4469, 0.049382716
        %v4486 = vmul.f32 %v4470, 0.049382716
        %4488 = vset.pattern.permute.xlu0 3
        %4489 = vperm.xlu0 %4488, %v4253
        %v4490 = vpop.permute.xlu0 %4489
        %4493 = vset.pattern.permute.xlu0 3
        %4494 = vperm.xlu0 %4493, %v4254
        %v4495 = vpop.permute.xlu0 %4494
        %4498 = vset.pattern.permute.xlu0 3
        %4499 = vperm.xlu0 %4498, %v4255
        %v4500 = vpop.permute.xlu0 %4499
        %4503 = vset.pattern.permute.xlu0 3
        %4504 = vperm.xlu0 %4503, %v4256
        %v4505 = vpop.permute.xlu0 %4504
        %4508 = vset.pattern.permute.xlu0 3
        %4509 = vperm.xlu0 %4508, %v4257
        %v4510 = vpop.permute.xlu0 %4509
        %4513 = vset.pattern.permute.xlu0 3
        %4514 = vperm.xlu0 %4513, %v4258
        %v4515 = vpop.permute.xlu0 %4514
        %4518 = vset.pattern.permute.xlu0 3
        %4519 = vperm.xlu0 %4518, %v4259
        %v4520 = vpop.permute.xlu0 %4519
        %4523 = vset.pattern.permute.xlu0 3
        %4524 = vperm.xlu0 %4523, %v4260
        %v4525 = vpop.permute.xlu0 %4524
        %4528 = vset.pattern.permute.xlu0 3
        %4529 = vperm.xlu0 %4528, %v4261
        %v4530 = vpop.permute.xlu0 %4529
        %4533 = vset.pattern.permute.xlu0 3
        %4534 = vperm.xlu0 %4533, %v4262
        %v4535 = vpop.permute.xlu0 %4534
        %4538 = vset.pattern.permute.xlu0 3
        %4539 = vperm.xlu0 %4538, %v4263
        %v4540 = vpop.permute.xlu0 %4539
        %4543 = vset.pattern.permute.xlu0 3
        %4544 = vperm.xlu0 %4543, %v4264
        %v4545 = vpop.permute.xlu0 %4544
        %4548 = vset.pattern.permute.xlu0 3
        %4549 = vperm.xlu0 %4548, %v4265
        %v4550 = vpop.permute.xlu0 %4549
        %4553 = vset.pattern.permute.xlu0 3
        %4554 = vperm.xlu0 %4553, %v4266
        %v4555 = vpop.permute.xlu0 %4554
        %4558 = vset.pattern.permute.xlu0 3
        %4559 = vperm.xlu0 %4558, %v4267
        %v4560 = vpop.permute.xlu0 %4559
        %4563 = vset.pattern.permute.xlu0 3
        %4564 = vperm.xlu0 %4563, %v4268
        %v4565 = vpop.permute.xlu0 %4564
        %v4567 = vmul.f32 %v4415, %v4490
        %v4568 = vmul.f32 %v4416, %v4495
        %v4569 = vmul.f32 %v4417, %v4500
        %v4570 = vmul.f32 %v4418, %v4505
        %v4571 = vmul.f32 %v4419, %v4510
        %v4572 = vmul.f32 %v4420, %v4515
        %v4573 = vmul.f32 %v4421, %v4520
        %v4574 = vmul.f32 %v4422, %v4525
        %v4575 = vmul.f32 %v4423, %v4530
        %v4576 = vmul.f32 %v4424, %v4535
        %v4577 = vmul.f32 %v4425, %v4540
        %v4578 = vmul.f32 %v4426, %v4545
        %v4579 = vmul.f32 %v4427, %v4550
        %v4580 = vmul.f32 %v4428, %v4555
        %v4581 = vmul.f32 %v4429, %v4560
        %v4582 = vmul.f32 %v4430, %v4565
        %v4583 = vmul.f32 %v4567, %v2386
        %v4584 = vmul.f32 %v4568, %v2390
        %v4585 = vmul.f32 %v4569, %v2394
        %v4586 = vmul.f32 %v4570, %v2398
        %v4587 = vmul.f32 %v4571, %v2402
        %v4588 = vmul.f32 %v4572, %v2406
        %v4589 = vmul.f32 %v4573, %v2410
        %v4590 = vmul.f32 %v4574, %v2414
        %v4591 = vmul.f32 %v4575, %v2418
        %v4592 = vmul.f32 %v4576, %v2422
        %v4593 = vmul.f32 %v4577, %v2426
        %v4594 = vmul.f32 %v4578, %v2430
        %v4595 = vmul.f32 %v4579, %v2434
        %v4596 = vmul.f32 %v4580, %v2438
        %v4597 = vmul.f32 %v4581, %v2442
        %v4598 = vmul.f32 %v4582, %v2446
        %v4599 = vlaneseq
        %v4600 = vshrl.u32 %v4599, 7
        %v4601 = vsub.s32 0, %v4600
        %v4602 = vrot.slane %v4270, %v4601
        %v4603 = vmul.f32 %v4439, %v4602
        %v4604 = vmul.f32 %v4440, %v4602
        %v4605 = vmul.f32 %v4441, %v4602
        %v4606 = vmul.f32 %v4442, %v4602
        %v4607 = vmul.f32 %v4443, %v4602
        %v4608 = vmul.f32 %v4444, %v4602
        %v4609 = vmul.f32 %v4445, %v4602
        %v4610 = vmul.f32 %v4446, %v4602
        %v4611 = vmul.f32 %v4447, %v4602
        %v4612 = vmul.f32 %v4448, %v4602
        %v4613 = vmul.f32 %v4449, %v4602
        %v4614 = vmul.f32 %v4450, %v4602
        %v4615 = vmul.f32 %v4451, %v4602
        %v4616 = vmul.f32 %v4452, %v4602
        %v4617 = vmul.f32 %v4453, %v4602
        %v4618 = vmul.f32 %v4454, %v4602
        %v4619 = vmul.f32 %v4603, %v2483
        %v4620 = vmul.f32 %v4604, %v2483
        %v4621 = vmul.f32 %v4605, %v2483
        %v4622 = vmul.f32 %v4606, %v2483
        %v4623 = vmul.f32 %v4607, %v2483
        %v4624 = vmul.f32 %v4608, %v2483
        %v4625 = vmul.f32 %v4609, %v2483
        %v4626 = vmul.f32 %v4610, %v2483
        %v4627 = vmul.f32 %v4611, %v2483
        %v4628 = vmul.f32 %v4612, %v2483
        %v4629 = vmul.f32 %v4613, %v2483
        %v4630 = vmul.f32 %v4614, %v2483
        %v4631 = vmul.f32 %v4615, %v2483
        %v4632 = vmul.f32 %v4616, %v2483
        %v4633 = vmul.f32 %v4617, %v2483
        %v4634 = vmul.f32 %v4618, %v2483
        %v4635 = vadd.f32 %v4583, %v4619
        %v4636 = vadd.f32 %v4584, %v4620
        %v4637 = vadd.f32 %v4585, %v4621
        %v4638 = vadd.f32 %v4586, %v4622
        %v4639 = vadd.f32 %v4587, %v4623
        %v4640 = vadd.f32 %v4588, %v4624
        %v4641 = vadd.f32 %v4589, %v4625
        %v4642 = vadd.f32 %v4590, %v4626
        %v4643 = vadd.f32 %v4591, %v4627
        %v4644 = vadd.f32 %v4592, %v4628
        %v4645 = vadd.f32 %v4593, %v4629
        %v4646 = vadd.f32 %v4594, %v4630
        %v4647 = vadd.f32 %v4595, %v4631
        %v4648 = vadd.f32 %v4596, %v4632
        %v4649 = vadd.f32 %v4597, %v4633
        %v4650 = vadd.f32 %v4598, %v4634
        %v4651 = vmul.f32 %v4635, -0.09876543
        %v4652 = vmul.f32 %v4636, -0.09876543
        %v4653 = vmul.f32 %v4637, -0.09876543
        %v4654 = vmul.f32 %v4638, -0.09876543
        %v4655 = vmul.f32 %v4639, -0.09876543
        %v4656 = vmul.f32 %v4640, -0.09876543
        %v4657 = vmul.f32 %v4641, -0.09876543
        %v4658 = vmul.f32 %v4642, -0.09876543
        %v4659 = vmul.f32 %v4643, -0.09876543
        %v4660 = vmul.f32 %v4644, -0.09876543
        %v4661 = vmul.f32 %v4645, -0.09876543
        %v4662 = vmul.f32 %v4646, -0.09876543
        %v4663 = vmul.f32 %v4647, -0.09876543
        %v4664 = vmul.f32 %v4648, -0.09876543
        %v4665 = vmul.f32 %v4649, -0.09876543
        %v4666 = vmul.f32 %v4650, -0.09876543
        %v4667 = vmul.f32 %v4455, -0.021947874
        %v4668 = vmul.f32 %v4456, -0.021947874
        %v4669 = vmul.f32 %v4457, -0.021947874
        %v4670 = vmul.f32 %v4458, -0.021947874
        %v4671 = vmul.f32 %v4459, -0.021947874
        %v4672 = vmul.f32 %v4460, -0.021947874
        %v4673 = vmul.f32 %v4461, -0.021947874
        %v4674 = vmul.f32 %v4462, -0.021947874
        %v4675 = vmul.f32 %v4463, -0.021947874
        %v4676 = vmul.f32 %v4464, -0.021947874
        %v4677 = vmul.f32 %v4465, -0.021947874
        %v4678 = vmul.f32 %v4466, -0.021947874
        %v4679 = vmul.f32 %v4467, -0.021947874
        %v4680 = vmul.f32 %v4468, -0.021947874
        %v4681 = vmul.f32 %v4469, -0.021947874
        %v4682 = vmul.f32 %v4470, -0.021947874
        %v4683 = vadd.f32 %v4651, %v4667
        %v4684 = vadd.f32 %v4652, %v4668
        %v4685 = vadd.f32 %v4653, %v4669
        %v4686 = vadd.f32 %v4654, %v4670
        %v4687 = vadd.f32 %v4655, %v4671
        %v4688 = vadd.f32 %v4656, %v4672
        %v4689 = vadd.f32 %v4657, %v4673
        %v4690 = vadd.f32 %v4658, %v4674
        %v4691 = vadd.f32 %v4659, %v4675
        %v4692 = vadd.f32 %v4660, %v4676
        %v4693 = vadd.f32 %v4661, %v4677
        %v4694 = vadd.f32 %v4662, %v4678
        %v4695 = vadd.f32 %v4663, %v4679
        %v4696 = vadd.f32 %v4664, %v4680
        %v4697 = vadd.f32 %v4665, %v4681
        %v4698 = vadd.f32 %v4666, %v4682
        %v4699 = vmul.f32 %v2077, %v4471
        %v4700 = vmul.f32 %v2078, %v4472
        %v4701 = vmul.f32 %v2079, %v4473
        %v4702 = vmul.f32 %v2080, %v4474
        %v4703 = vmul.f32 %v2081, %v4475
        %v4704 = vmul.f32 %v2082, %v4476
        %v4705 = vmul.f32 %v2083, %v4477
        %v4706 = vmul.f32 %v2084, %v4478
        %v4707 = vmul.f32 %v2085, %v4479
        %v4708 = vmul.f32 %v2086, %v4480
        %v4709 = vmul.f32 %v2087, %v4481
        %v4710 = vmul.f32 %v2088, %v4482
        %v4711 = vmul.f32 %v2089, %v4483
        %v4712 = vmul.f32 %v2090, %v4484
        %v4713 = vmul.f32 %v2091, %v4485
        %v4714 = vmul.f32 %v2092, %v4486
        %v4715 = vmul.f32 %v2157, %v4683
        %v4716 = vmul.f32 %v2158, %v4684
        %v4717 = vmul.f32 %v2159, %v4685
        %v4718 = vmul.f32 %v2160, %v4686
        %v4719 = vmul.f32 %v2161, %v4687
        %v4720 = vmul.f32 %v2162, %v4688
        %v4721 = vmul.f32 %v2163, %v4689
        %v4722 = vmul.f32 %v2164, %v4690
        %v4723 = vmul.f32 %v2165, %v4691
        %v4724 = vmul.f32 %v2166, %v4692
        %v4725 = vmul.f32 %v2167, %v4693
        %v4726 = vmul.f32 %v2168, %v4694
        %v4727 = vmul.f32 %v2169, %v4695
        %v4728 = vmul.f32 %v2170, %v4696
        %v4729 = vmul.f32 %v2171, %v4697
        %v4730 = vmul.f32 %v2172, %v4698
        %v4731 = vadd.f32 %v4699, %v4715
        %v4732 = vadd.f32 %v4700, %v4716
        %v4733 = vadd.f32 %v4701, %v4717
        %v4734 = vadd.f32 %v4702, %v4718
        %v4735 = vadd.f32 %v4703, %v4719
        %v4736 = vadd.f32 %v4704, %v4720
        %v4737 = vadd.f32 %v4705, %v4721
        %v4738 = vadd.f32 %v4706, %v4722
        %v4739 = vadd.f32 %v4707, %v4723
        %v4740 = vadd.f32 %v4708, %v4724
        %v4741 = vadd.f32 %v4709, %v4725
        %v4742 = vadd.f32 %v4710, %v4726
        %v4743 = vadd.f32 %v4711, %v4727
        %v4744 = vadd.f32 %v4712, %v4728
        %v4745 = vadd.f32 %v4713, %v4729
        %v4746 = vadd.f32 %v4714, %v4730
        %vm4747 = vcmp.lt.f32.partialorder %v742, %v2931
        %vm4748 = vcmp.lt.f32.partialorder %v743, %v2938
        %vm4749 = vcmp.lt.f32.partialorder %v744, %v2945
        %vm4750 = vcmp.lt.f32.partialorder %v745, %v2952
        %vm4751 = vcmp.lt.f32.partialorder %v746, %v2959
        %vm4752 = vcmp.lt.f32.partialorder %v747, %v2966
        %vm4753 = vcmp.lt.f32.partialorder %v748, %v2973
        %vm4754 = vcmp.lt.f32.partialorder %v749, %v2980
        %vm4755 = vcmp.lt.f32.partialorder %v750, %v2987
        %vm4756 = vcmp.lt.f32.partialorder %v751, %v2994
        %vm4757 = vcmp.lt.f32.partialorder %v752, %v3001
        %vm4758 = vcmp.lt.f32.partialorder %v753, %v3008
        %vm4759 = vcmp.lt.f32.partialorder %v754, %v3015
        %vm4760 = vcmp.lt.f32.partialorder %v755, %v3022
        %vm4761 = vcmp.lt.f32.partialorder %v756, %v3029
        %vm4762 = vcmp.lt.f32.partialorder %v757, %v3036
        %vm4763 = vcmp.lt.f32.partialorder %v742, %v3069
        %vm4764 = vcmp.lt.f32.partialorder %v743, %v3070
        %vm4765 = vcmp.lt.f32.partialorder %v744, %v3071
        %vm4766 = vcmp.lt.f32.partialorder %v745, %v3072
        %vm4767 = vcmp.lt.f32.partialorder %v746, %v3073
        %vm4768 = vcmp.lt.f32.partialorder %v747, %v3074
        %vm4769 = vcmp.lt.f32.partialorder %v748, %v3075
        %vm4770 = vcmp.lt.f32.partialorder %v749, %v3076
        %vm4771 = vcmp.lt.f32.partialorder %v750, %v3077
        %vm4772 = vcmp.lt.f32.partialorder %v751, %v3078
        %vm4773 = vcmp.lt.f32.partialorder %v752, %v3079
        %vm4774 = vcmp.lt.f32.partialorder %v753, %v3080
        %vm4775 = vcmp.lt.f32.partialorder %v754, %v3081
        %vm4776 = vcmp.lt.f32.partialorder %v755, %v3082
        %vm4777 = vcmp.lt.f32.partialorder %v756, %v3083
        %vm4778 = vcmp.lt.f32.partialorder %v757, %v3084
        %v4779 = vsel %vm2237, %v4731, 0.0
        %v4780 = vsel %vm2238, %v4732, 0.0
        %v4781 = vsel %vm2239, %v4733, 0.0
        %v4782 = vsel %vm2240, %v4734, 0.0
        %v4783 = vsel %vm2241, %v4735, 0.0
        %v4784 = vsel %vm2242, %v4736, 0.0
        %v4785 = vsel %vm2243, %v4737, 0.0
        %v4786 = vsel %vm2244, %v4738, 0.0
        %v4787 = vsel %vm2245, %v4739, 0.0
        %v4788 = vsel %vm2246, %v4740, 0.0
        %v4789 = vsel %vm2247, %v4741, 0.0
        %v4790 = vsel %vm2248, %v4742, 0.0
        %v4791 = vsel %vm2249, %v4743, 0.0
        %v4792 = vsel %vm2250, %v4744, 0.0
        %v4793 = vsel %vm2251, %v4745, 0.0
        %v4794 = vsel %vm2252, %v4746, 0.0
        %v4795 = vsel %vm2221, %v4173, %v4779
        %v4796 = vsel %vm2222, %v4174, %v4780
        %v4797 = vsel %vm2223, %v4175, %v4781
        %v4798 = vsel %vm2224, %v4176, %v4782
        %v4799 = vsel %vm2225, %v4177, %v4783
        %v4800 = vsel %vm2226, %v4178, %v4784
        %v4801 = vsel %vm2227, %v4179, %v4785
        %v4802 = vsel %vm2228, %v4180, %v4786
        %v4803 = vsel %vm2229, %v4181, %v4787
        %v4804 = vsel %vm2230, %v4182, %v4788
        %v4805 = vsel %vm2231, %v4183, %v4789
        %v4806 = vsel %vm2232, %v4184, %v4790
        %v4807 = vsel %vm2233, %v4185, %v4791
        %v4808 = vsel %vm2234, %v4186, %v4792
        %v4809 = vsel %vm2235, %v4187, %v4793
        %v4810 = vsel %vm2236, %v4188, %v4794
        %v4811 = vsel %vm4763, %v3917, %v4795
        %v4812 = vsel %vm4764, %v3918, %v4796
        %v4813 = vsel %vm4765, %v3919, %v4797
        %v4814 = vsel %vm4766, %v3920, %v4798
        %v4815 = vsel %vm4767, %v3921, %v4799
        %v4816 = vsel %vm4768, %v3922, %v4800
        %v4817 = vsel %vm4769, %v3923, %v4801
        %v4818 = vsel %vm4770, %v3924, %v4802
        %v4819 = vsel %vm4771, %v3925, %v4803
        %v4820 = vsel %vm4772, %v3926, %v4804
        %v4821 = vsel %vm4773, %v3927, %v4805
        %v4822 = vsel %vm4774, %v3928, %v4806
        %v4823 = vsel %vm4775, %v3929, %v4807
        %v4824 = vsel %vm4776, %v3930, %v4808
        %v4825 = vsel %vm4777, %v3931, %v4809
        %v4826 = vsel %vm4778, %v3932, %v4810
        %v4827 = vsel %vm4747, %v2877, %v4811
        %v4828 = vsel %vm4748, %v2878, %v4812
        %v4829 = vsel %vm4749, %v2879, %v4813
        %v4830 = vsel %vm4750, %v2880, %v4814
        %v4831 = vsel %vm4751, %v2881, %v4815
        %v4832 = vsel %vm4752, %v2882, %v4816
        %v4833 = vsel %vm4753, %v2883, %v4817
        %v4834 = vsel %vm4754, %v2884, %v4818
        %v4835 = vsel %vm4755, %v2885, %v4819
        %v4836 = vsel %vm4756, %v2886, %v4820
        %v4837 = vsel %vm4757, %v2887, %v4821
        %v4838 = vsel %vm4758, %v2888, %v4822
        %v4839 = vsel %vm4759, %v2889, %v4823
        %v4840 = vsel %vm4760, %v2890, %v4824
        %v4841 = vsel %vm4761, %v2891, %v4825
        %v4842 = vsel %vm4762, %v2892, %v4826
        %v4843 = vld [vmem:[#allocation2] sm:$0xff]
        %v4844 = vld [vmem:[#allocation2 + $0x8] sm:$0xff]
        %v4845 = vld [vmem:[#allocation2 + $0x10] sm:$0xff]
        %v4846 = vld [vmem:[#allocation2 + $0x18] sm:$0xff]
        %v4847 = vld [vmem:[#allocation2 + $0x20] sm:$0xff]
        %v4848 = vld [vmem:[#allocation2 + $0x28] sm:$0xff]
        %v4849 = vld [vmem:[#allocation2 + $0x30] sm:$0xff]
        %v4850 = vld [vmem:[#allocation2 + $0x38] sm:$0xff]
        %v4851 = vld [vmem:[#allocation2 + $0x40] sm:$0xff]
        %v4852 = vld [vmem:[#allocation2 + $0x48] sm:$0xff]
        %v4853 = vld [vmem:[#allocation2 + $0x50] sm:$0xff]
        %v4854 = vld [vmem:[#allocation2 + $0x58] sm:$0xff]
        %v4855 = vld [vmem:[#allocation2 + $0x60] sm:$0xff]
        %v4856 = vld [vmem:[#allocation2 + $0x68] sm:$0xff]
        %v4857 = vld [vmem:[#allocation2 + $0x70] sm:$0xff]
        %v4858 = vld [vmem:[#allocation2 + $0x78] sm:$0xff]
        %v4859 = vmul.f32 %v2285, %v863
        %v4860 = vmul.f32 %v2286, %v864
        %v4861 = vmul.f32 %v2287, %v865
        %v4862 = vmul.f32 %v2288, %v866
        %v4863 = vmul.f32 %v2289, %v867
        %v4864 = vmul.f32 %v2290, %v868
        %v4865 = vmul.f32 %v2291, %v869
        %v4866 = vmul.f32 %v2292, %v870
        %v4867 = vmul.f32 %v2293, %v871
        %v4868 = vmul.f32 %v2294, %v872
        %v4869 = vmul.f32 %v2295, %v873
        %v4870 = vmul.f32 %v2296, %v874
        %v4871 = vmul.f32 %v2297, %v875
        %v4872 = vmul.f32 %v2298, %v876
        %v4873 = vmul.f32 %v2299, %v877
        %v4874 = vmul.f32 %v2300, %v878
        %v4875 = vadd.f32 %v4843, %v4859
        %v4876 = vadd.f32 %v4844, %v4860
        %v4877 = vadd.f32 %v4845, %v4861
        %v4878 = vadd.f32 %v4846, %v4862
        %v4879 = vadd.f32 %v4847, %v4863
        %v4880 = vadd.f32 %v4848, %v4864
        %v4881 = vadd.f32 %v4849, %v4865
        %v4882 = vadd.f32 %v4850, %v4866
        %v4883 = vadd.f32 %v4851, %v4867
        %v4884 = vadd.f32 %v4852, %v4868
        %v4885 = vadd.f32 %v4853, %v4869
        %v4886 = vadd.f32 %v4854, %v4870
        %v4887 = vadd.f32 %v4855, %v4871
        %v4888 = vadd.f32 %v4856, %v4872
        %v4889 = vadd.f32 %v4857, %v4873
        %v4890 = vadd.f32 %v4858, %v4874
        %4891 = vst [vmem:[#allocation2] sm:$0xff] %v4875
        %4892 = vst [vmem:[#allocation2 + $0x8] sm:$0xff] %v4876
        %4893 = vst [vmem:[#allocation2 + $0x10] sm:$0xff] %v4877
        %4894 = vst [vmem:[#allocation2 + $0x18] sm:$0xff] %v4878
        %4895 = vst [vmem:[#allocation2 + $0x20] sm:$0xff] %v4879
        %4896 = vst [vmem:[#allocation2 + $0x28] sm:$0xff] %v4880
        %4897 = vst [vmem:[#allocation2 + $0x30] sm:$0xff] %v4881
        %4898 = vst [vmem:[#allocation2 + $0x38] sm:$0xff] %v4882
        %4899 = vst [vmem:[#allocation2 + $0x40] sm:$0xff] %v4883
        %4900 = vst [vmem:[#allocation2 + $0x48] sm:$0xff] %v4884
        %4901 = vst [vmem:[#allocation2 + $0x50] sm:$0xff] %v4885
        %4902 = vst [vmem:[#allocation2 + $0x58] sm:$0xff] %v4886
        %4903 = vst [vmem:[#allocation2 + $0x60] sm:$0xff] %v4887
        %4904 = vst [vmem:[#allocation2 + $0x68] sm:$0xff] %v4888
        %4905 = vst [vmem:[#allocation2 + $0x70] sm:$0xff] %v4889
        %4906 = vst [vmem:[#allocation2 + $0x78] sm:$0xff] %v4890
        %v4907 = vld [vmem:[#allocation3] sm:$0xff]
        %v4908 = vld [vmem:[#allocation3 + $0x8] sm:$0xff]
        %v4909 = vld [vmem:[#allocation3 + $0x10] sm:$0xff]
        %v4910 = vld [vmem:[#allocation3 + $0x18] sm:$0xff]
        %v4911 = vld [vmem:[#allocation3 + $0x20] sm:$0xff]
        %v4912 = vld [vmem:[#allocation3 + $0x28] sm:$0xff]
        %v4913 = vld [vmem:[#allocation3 + $0x30] sm:$0xff]
        %v4914 = vld [vmem:[#allocation3 + $0x38] sm:$0xff]
        %v4915 = vld [vmem:[#allocation3 + $0x40] sm:$0xff]
        %v4916 = vld [vmem:[#allocation3 + $0x48] sm:$0xff]
        %v4917 = vld [vmem:[#allocation3 + $0x50] sm:$0xff]
        %v4918 = vld [vmem:[#allocation3 + $0x58] sm:$0xff]
        %v4919 = vld [vmem:[#allocation3 + $0x60] sm:$0xff]
        %v4920 = vld [vmem:[#allocation3 + $0x68] sm:$0xff]
        %v4921 = vld [vmem:[#allocation3 + $0x70] sm:$0xff]
        %v4922 = vld [vmem:[#allocation3 + $0x78] sm:$0xff]
        %v4923 = vmul.f32 %v4827, %v863
        %v4924 = vmul.f32 %v4828, %v864
        %v4925 = vmul.f32 %v4829, %v865
        %v4926 = vmul.f32 %v4830, %v866
        %v4927 = vmul.f32 %v4831, %v867
        %v4928 = vmul.f32 %v4832, %v868
        %v4929 = vmul.f32 %v4833, %v869
        %v4930 = vmul.f32 %v4834, %v870
        %v4931 = vmul.f32 %v4835, %v871
        %v4932 = vmul.f32 %v4836, %v872
        %v4933 = vmul.f32 %v4837, %v873
        %v4934 = vmul.f32 %v4838, %v874
        %v4935 = vmul.f32 %v4839, %v875
        %v4936 = vmul.f32 %v4840, %v876
        %v4937 = vmul.f32 %v4841, %v877
        %v4938 = vmul.f32 %v4842, %v878
        %v4939 = vadd.f32 %v4907, %v4923
        %v4940 = vadd.f32 %v4908, %v4924
        %v4941 = vadd.f32 %v4909, %v4925
        %v4942 = vadd.f32 %v4910, %v4926
        %v4943 = vadd.f32 %v4911, %v4927
        %v4944 = vadd.f32 %v4912, %v4928
        %v4945 = vadd.f32 %v4913, %v4929
        %v4946 = vadd.f32 %v4914, %v4930
        %v4947 = vadd.f32 %v4915, %v4931
        %v4948 = vadd.f32 %v4916, %v4932
        %v4949 = vadd.f32 %v4917, %v4933
        %v4950 = vadd.f32 %v4918, %v4934
        %v4951 = vadd.f32 %v4919, %v4935
        %v4952 = vadd.f32 %v4920, %v4936
        %v4953 = vadd.f32 %v4921, %v4937
        %v4954 = vadd.f32 %v4922, %v4938
        %4955 = vst [vmem:[#allocation3] sm:$0xff] %v4939
        %4956 = vst [vmem:[#allocation3 + $0x8] sm:$0xff] %v4940
        %4957 = vst [vmem:[#allocation3 + $0x10] sm:$0xff] %v4941
        %4958 = vst [vmem:[#allocation3 + $0x18] sm:$0xff] %v4942
        %4959 = vst [vmem:[#allocation3 + $0x20] sm:$0xff] %v4943
        %4960 = vst [vmem:[#allocation3 + $0x28] sm:$0xff] %v4944
        %4961 = vst [vmem:[#allocation3 + $0x30] sm:$0xff] %v4945
        %4962 = vst [vmem:[#allocation3 + $0x38] sm:$0xff] %v4946
        %4963 = vst [vmem:[#allocation3 + $0x40] sm:$0xff] %v4947
        %4964 = vst [vmem:[#allocation3 + $0x48] sm:$0xff] %v4948
        %4965 = vst [vmem:[#allocation3 + $0x50] sm:$0xff] %v4949
        %4966 = vst [vmem:[#allocation3 + $0x58] sm:$0xff] %v4950
        %4967 = vst [vmem:[#allocation3 + $0x60] sm:$0xff] %v4951
        %4968 = vst [vmem:[#allocation3 + $0x68] sm:$0xff] %v4952
        %4969 = vst [vmem:[#allocation3 + $0x70] sm:$0xff] %v4953
        %4970 = vst [vmem:[#allocation3 + $0x78] sm:$0xff] %v4954
        // Predicated region
        $region37: #{tpu_custom_call.1} parent=31 // pred_check
          %p4971 = pneg %p307
        $region38: #{tpu_custom_call.1} parent=31 // pred_check_branch
          %4973 = sbr.rel (%p4971) target = $region40
        $region39: #{tpu_custom_call.1} parent=31 // pred_region
          %v4974 = vld [vmem:[#allocation2] sm:$0xff]
          %v4975 = vld [vmem:[#allocation2 + $0x8] sm:$0xff]
          %v4976 = vld [vmem:[#allocation2 + $0x10] sm:$0xff]
          %v4977 = vld [vmem:[#allocation2 + $0x18] sm:$0xff]
          %v4978 = vld [vmem:[#allocation2 + $0x20] sm:$0xff]
          %v4979 = vld [vmem:[#allocation2 + $0x28] sm:$0xff]
          %v4980 = vld [vmem:[#allocation2 + $0x30] sm:$0xff]
          %v4981 = vld [vmem:[#allocation2 + $0x38] sm:$0xff]
          %v4982 = vld [vmem:[#allocation2 + $0x40] sm:$0xff]
          %v4983 = vld [vmem:[#allocation2 + $0x48] sm:$0xff]
          %v4984 = vld [vmem:[#allocation2 + $0x50] sm:$0xff]
          %v4985 = vld [vmem:[#allocation2 + $0x58] sm:$0xff]
          %v4986 = vld [vmem:[#allocation2 + $0x60] sm:$0xff]
          %v4987 = vld [vmem:[#allocation2 + $0x68] sm:$0xff]
          %v4988 = vld [vmem:[#allocation2 + $0x70] sm:$0xff]
          %v4989 = vld [vmem:[#allocation2 + $0x78] sm:$0xff]
          %v4990 = vadd.f32 %v4974, %v4975
          %v4991 = vadd.f32 %v4990, %v4976
          %v4992 = vadd.f32 %v4991, %v4977
          %v4993 = vadd.f32 %v4992, %v4978
          %v4994 = vadd.f32 %v4993, %v4979
          %v4995 = vadd.f32 %v4994, %v4980
          %v4996 = vadd.f32 %v4995, %v4981
          %v4997 = vadd.f32 %v4996, %v4982
          %v4998 = vadd.f32 %v4997, %v4983
          %v4999 = vadd.f32 %v4998, %v4984
          %v5000 = vadd.f32 %v4999, %v4985
          %v5001 = vadd.f32 %v5000, %v4986
          %v5002 = vadd.f32 %v5001, %v4987
          %v5003 = vadd.f32 %v5002, %v4988
          %v5004 = vadd.f32 %v5003, %v4989
          %5005 = vadd.xlane.f32.xlu0 %v5004
          %v5006 = vpop.xlane.xlu0 %5005
          %v5007 = vrot.slane %v5006, 4
          %v5008 = vadd.f32 %v5006, %v5007
          %v5009 = vrot.slane %v5008, 2
          %v5010 = vadd.f32 %v5008, %v5009
          %v5011 = vrot.slane %v5010, 1
          %v5012 = vadd.f32 %v5010, %v5011
          %s5013 = vtos %v5012
          %v5014 = vld [vmem:[#allocation3] sm:$0xff]
          %v5015 = vld [vmem:[#allocation3 + $0x8] sm:$0xff]
          %v5016 = vld [vmem:[#allocation3 + $0x10] sm:$0xff]
          %v5017 = vld [vmem:[#allocation3 + $0x18] sm:$0xff]
          %v5018 = vld [vmem:[#allocation3 + $0x20] sm:$0xff]
          %v5019 = vld [vmem:[#allocation3 + $0x28] sm:$0xff]
          %v5020 = vld [vmem:[#allocation3 + $0x30] sm:$0xff]
          %v5021 = vld [vmem:[#allocation3 + $0x38] sm:$0xff]
          %v5022 = vld [vmem:[#allocation3 + $0x40] sm:$0xff]
          %v5023 = vld [vmem:[#allocation3 + $0x48] sm:$0xff]
          %v5024 = vld [vmem:[#allocation3 + $0x50] sm:$0xff]
          %v5025 = vld [vmem:[#allocation3 + $0x58] sm:$0xff]
          %v5026 = vld [vmem:[#allocation3 + $0x60] sm:$0xff]
          %v5027 = vld [vmem:[#allocation3 + $0x68] sm:$0xff]
          %v5028 = vld [vmem:[#allocation3 + $0x70] sm:$0xff]
          %v5029 = vld [vmem:[#allocation3 + $0x78] sm:$0xff]
          %v5030 = vadd.f32 %v5014, %v5015
          %v5031 = vadd.f32 %v5030, %v5016
          %v5032 = vadd.f32 %v5031, %v5017
          %v5033 = vadd.f32 %v5032, %v5018
          %v5034 = vadd.f32 %v5033, %v5019
          %v5035 = vadd.f32 %v5034, %v5020
          %v5036 = vadd.f32 %v5035, %v5021
          %v5037 = vadd.f32 %v5036, %v5022
          %v5038 = vadd.f32 %v5037, %v5023
          %v5039 = vadd.f32 %v5038, %v5024
          %v5040 = vadd.f32 %v5039, %v5025
          %v5041 = vadd.f32 %v5040, %v5026
          %v5042 = vadd.f32 %v5041, %v5027
          %v5043 = vadd.f32 %v5042, %v5028
          %v5044 = vadd.f32 %v5043, %v5029
          %5045 = vadd.xlane.f32.xlu0 %v5044
          %v5046 = vpop.xlane.xlu0 %5045
          %v5047 = vrot.slane %v5046, 4
          %v5048 = vadd.f32 %v5046, %v5047
          %v5049 = vrot.slane %v5048, 2
          %v5050 = vadd.f32 %v5048, %v5049
          %v5051 = vrot.slane %v5050, 1
          %v5052 = vadd.f32 %v5050, %v5051
          %s5053 = vtos %v5052
          %v5054 = vlaneseq
          %v5055 = vshrl.u32 %v5054, 7
          %v5056 = vlaneseq
          %v5057 = vand.u32 %v5056, 127
          %vm5058 = vcmp.eq.s32.totalorder %v5055, 0
          %vm5059 = vcmp.eq.s32.totalorder %v5057, 0
          %vm5060 = vmand %vm5058, %vm5059
          %vm5061 = vcmp.eq.s32.totalorder %v5057, 1
          %vm5062 = vmand %vm5058, %vm5061
          %v5063 = vstv %s5053
          %v5064 = vsel %vm5062, %v5063, 0.0
          %v5065 = vstv %s5013
          %v5066 = vsel %vm5060, %v5065, %v5064
          %5067 = vst [vmem:[%s267] sm:$0xff] %v5066
        $region40: #{tpu_custom_call.1} parent=31 // pred_fallthru
          _
        %s5068 = sand.u32 %s135, 1
        %s5069 = scalar_lea.sflag [#allocation8], %s5068
        %s5070 = sand.u32 %s135, 1
        %s5071 = smul.addr %s5070, 8
        %s5072 = scalar_lea.vmem [#allocation7], %s5071
        // Predicated region
        $region41: #{tpu_custom_call.1} parent=31 // pred_check
          %p5073 = pneg %p145
        $region42: #{tpu_custom_call.1} parent=31 // pred_check_branch
          %5075 = sbr.rel (%p5073) target = $region44
        $region43: #{tpu_custom_call.1} parent=31 // pred_region
          %s5077 = ssub.s32 128, 128
          %5078 = vsyncadd %s5069, %s5077
          %s5079 = smul.addr %s25, 128
          %s5080 = scalar_lea.hbm %s5, %s5079
          %s5082 = sshll.u32 %s5072, 4
          %s5083 = int_to_ptr.vmem [resolvable:$true] %s5082
          %5085 = dma.vmem_to_hbm [thread:$0]  %s5083, 128, %s5080, %s5069
        $region44: #{tpu_custom_call.1} parent=31 // pred_fallthru
          _
      $region32: #{tpu_custom_call.1} parent=5 // pred_fallthru
        _
      %p5086 = scmp.le.s32.totalorder 2, %s16
      // Predicated region
      $region45: #{tpu_custom_call.1} parent=5 // pred_check
        %p5087 = pneg %p5086
      $region46: #{tpu_custom_call.1} parent=5 // pred_check_branch
        %5089 = sbr.rel (%p5087) target = $region48
      $region47: #{tpu_custom_call.1} parent=5 // pred_region
        %s5090 = ssub.s32 %s16, 2
        // Predicated region
        $region49: #{tpu_custom_call.1} parent=47 // pred_check
          %p5091 = pneg %p151
        $region50: #{tpu_custom_call.1} parent=47 // pred_check_branch
          %5093 = sbr.rel (%p5091) target = $region52
        $region51: #{tpu_custom_call.1} parent=47 // pred_region
          %s5094 = sand.u32 %s136, 1
          %s5095 = scalar_lea.sflag [#allocation8], %s5094
          %s5096 = sand.u32 %s136, 1
          %s5097 = smul.addr %s5096, 8
          %s5098 = scalar_lea.vmem [#allocation7], %s5097
          %5099 = dma.done %s5095, 128
        $region52: #{tpu_custom_call.1} parent=47 // pred_fallthru
          _
      $region48: #{tpu_custom_call.1} parent=5 // pred_fallthru
        _
    $region6: #{tpu_custom_call.1} parent=1 // loop_footer
      %s20 = sadd.s32 1, %s16
    $region7: #{tpu_custom_call.1} parent=1 // loop_footer_branch
      %15 = sbr.rel target = $region3
    $region8: #{tpu_custom_call.1} parent=1 // loop_exit
      _
    %5100 = vsyncpa [#allocation8], 1
    %s5101 = scalar_lea.sflag [#allocation8], 1
    %5102 = vsyncpa %s5101, 1

</llo_original>
